<compile_context>
chip_gen: v5e
topology: v5e:2x2
jax: 0.10.0
libtpu: 0.0.40
codegen_flags: <defaults>
</compile_context>

<pallas_src>
import numpy as np
import jax
import jax.numpy as jnp
from jax.experimental import pallas as pl
from jax.experimental.pallas import tpu as pltpu

# ---- model dimensions (implied by the PyTorch module) ------------------------
L_IN = 28                  # seq length implied by fc1: 32 * ((28-2-2)//2) = 384
L_PAD = 32                 # time padded to a sublane multiple (row 28 = ones)
C1, C2, K = 64, 32, 3
L1 = L_IN - (K - 1)        # 26
L2 = L1 - (K - 1)          # 24
LP = L2 // 2               # 12
FLAT = C2 * LP             # 384
ROWS1 = L1 * C1            # 1664  conv1 rows: t*64 + c
G_T = 6                    # conv2 output time-steps fused per matmul (even!)
N_G = L2 // G_T            # 4 conv2 matmuls per slab
K2 = (G_T + K - 1) * C1    # 512   contraction depth of grouped conv2 matmul
M2 = G_T * C2              # 192   rows produced per grouped conv2 matmul
P_G = (G_T // 2) * C2      # 96    pooled rows produced per group
DEFAULT_BT = 512           # samples per grid step (batch on the lane axis)


def _round_up(n, m):
    return ((n + m - 1) // m) * m


def net_kernel(xT_ref, w1_ref, w2_ref, b2_ref, wf_ref, bf_ref,
               o_ref, h1_ref, pool_ref):
    # xT:(32,BT)  w1:(1664,32)  w2:(192,512)  b2:(32,1)  wf:(8,384)  bf:(1,1)
    # o:(8,BT)  h1 scratch:(1664,BT)  pool scratch:(384,BT)
    bt = xT_ref.shape[-1]

    # ---- conv1 + bias (folded via ones-row of xT) + ReLU ---------------------
    h1 = jnp.dot(w1_ref[...], xT_ref[...], preferred_element_type=jnp.float32)
    h1_ref[...] = jnp.maximum(h1, 0.0)                           # (1664, BT)

    # ---- conv2 + bias + ReLU + MaxPool1d(2), fused per 6-step group ----------
    for g in range(N_G):
        lo = g * G_T * C1                                        # 384 * g
        part = jnp.dot(w2_ref[...], h1_ref[lo:lo + K2, :],
                       preferred_element_type=jnp.float32)       # (192, BT)
        act = jnp.maximum(part.reshape(G_T, C2, bt) + b2_ref[...][None], 0.0)
        act2 = act.reshape(G_T // 2, 2 * C2, bt)                 # (3, 64, BT)
        pooled = jnp.maximum(act2[:, :C2, :], act2[:, C2:, :]).reshape(P_G, bt)
        pool_ref[g * P_G:(g + 1) * P_G, :] = pooled

    # ---- fc1 (384 -> 1, M padded to 8) + sigmoid -----------------------------
    z = jnp.dot(wf_ref[...], pool_ref[...],
                preferred_element_type=jnp.float32)              # (8, BT)
    o_ref[...] = 1.0 / (1.0 + jnp.exp(-(z + bf_ref[...])))       # row 0 is real


def _pack_params(params):
    """Repack the PyTorch-layout weights into the kernel's matmul layouts."""
    w1, b1, w2, b2, wf, bf = [p.astype(jnp.float32) for p in params]
    f32 = jnp.float32

    # conv1 -> banded matmul weight: w1t[t*64+c, s] = w1[c, 0, s-t] (0<=s-t<3)
    # plus the bias folded into column 28 (the ones-row of xT).
    w1k = jnp.transpose(w1[:, 0, :], (1, 0))                     # (3, 64)
    w1t = jnp.zeros((L1, C1, L_PAD), f32)
    for j in range(K):
        sel = jnp.eye(L1, L_PAD, k=j, dtype=f32)                 # (26, 32)
        w1t = w1t + sel[:, None, :] * w1k[j][None, :, None]
    w1t = w1t.reshape(ROWS1, L_PAD)                              # (1664, 32)
    w1t = w1t.at[:, L_IN].set(jnp.tile(b1, (L1,)))               # bias column

    # conv2 -> grouped weight: w2g[tl*32+c', s*64+c] = w2[c', c, s-tl]
    w2t = jnp.transpose(w2, (2, 0, 1))                           # (3, 32, 64)
    w2g = jnp.zeros((G_T, C2, G_T + K - 1, C1), f32)             # (6, 32, 8, 64)
    for j in range(K):
        sel = jnp.eye(G_T, G_T + K - 1, k=j, dtype=f32)          # (6, 8)
        w2g = w2g + sel[:, None, :, None] * w2t[j][None, :, None, :]
    w2g = w2g.reshape(M2, K2)                                    # (192, 512)
    b2c = b2.reshape(C2, 1)                                      # (32, 1)

    # fc: pooled rows are p*32+c ; PyTorch flatten of (32,12) is c*12+p
    wf_row = jnp.transpose(wf.reshape(C2, LP), (1, 0)).reshape(1, FLAT)
    wf_mat = jnp.zeros((8, FLAT), f32).at[0:1, :].set(wf_row)    # pad M to 8
    bfc = bf.reshape(1, 1)
    return w1t, w2g, b2c, wf_mat, bfc


def net_forward(x, params, block_b=DEFAULT_BT):
    B = x.shape[0]
    w1t, w2g, b2c, wf_mat, bfc = _pack_params(params)

    # batch on lanes: x (B, 28, 1) -> xT (32, B_pad); row 28 = 1.0 (bias hook)
    x2 = x.reshape(B, L_IN).astype(jnp.float32)
    bt = min(block_b, _round_up(B, 128))
    b_pad = _round_up(B, bt)
    xT = jnp.zeros((L_PAD, b_pad), jnp.float32)
    xT = xT.at[:L_IN, :B].set(jnp.transpose(x2, (1, 0)))
    xT = xT.at[L_IN, :].set(1.0)
    n_blocks = b_pad // bt

    out = pl.pallas_call(
        net_kernel,
        out_shape=jax.ShapeDtypeStruct((8, b_pad), jnp.float32),
        grid=(n_blocks,),
        in_specs=[
            pl.BlockSpec((L_PAD, bt), lambda i: (0, i)),          # xT slab
            pl.BlockSpec((ROWS1, L_PAD), lambda i: (0, 0)),       # conv1 weight
            pl.BlockSpec((M2, K2), lambda i: (0, 0)),             # conv2 weight
            pl.BlockSpec((C2, 1), lambda i: (0, 0)),              # conv2 bias col
            pl.BlockSpec((8, FLAT), lambda i: (0, 0)),            # fc weight
            pl.BlockSpec((1, 1), lambda i: (0, 0)),               # fc bias
        ],
        out_specs=pl.BlockSpec((8, bt), lambda i: (0, i)),        # lane-dense out
        scratch_shapes=[pltpu.VMEM((ROWS1, bt), jnp.float32),
                        pltpu.VMEM((FLAT, bt), jnp.float32)],
        compiler_params=pltpu.CompilerParams(
            dimension_semantics=("parallel",),
            vmem_limit_bytes=32 * 1024 * 1024),
    )(xT, w1t, w2g, b2c, wf_mat, bfc)
    return out[0, :B].reshape(B, 1)


def init_params(key):
    """Deterministic init mimicking PyTorch's default uniform(-1/sqrt(fan_in))."""
    ks = jax.random.split(key, 6)

    def u(k, shape, fan_in):
        bound = 1.0 / np.sqrt(fan_in)
        return jax.random.uniform(k, shape, jnp.float32, -bound, bound)

    w1 = u(ks[0], (C1, 1, K), 1 * K)
    b1 = u(ks[1], (C1,), 1 * K)
    w2 = u(ks[2], (C2, C1, K), C1 * K)
    b2 = u(ks[3], (C2,), C1 * K)
    wf = u(ks[4], (1, FLAT), FLAT)
    bf = u(ks[5], (1,), FLAT)
    return w1, b1, w2, b2, wf, bf


def ref_forward(x, params):
    """Pure numpy reference following the PyTorch semantics exactly."""
    w1, b1, w2, b2, wf, bf = [np.asarray(p, np.float64) for p in params]
    xn = np.asarray(x, np.float64)
    B = xn.shape[0]
    xc = np.transpose(xn, (0, 2, 1))                      # (B, 1, 28)   NCL
    h1 = np.zeros((B, C1, L1))
    for b in range(B):
        for c in range(C1):
            for t in range(L1):
                h1[b, c, t] = np.sum(w1[c, :, :] * xc[b, :, t:t + K]) + b1[c]
    h1 = np.maximum(h1, 0.0)
    h2 = np.zeros((B, C2, L2))
    for b in range(B):
        for c in range(C2):
            for t in range(L2):
                h2[b, c, t] = np.sum(w2[c, :, :] * h1[b, :, t:t + K]) + b2[c]
    h2 = np.maximum(h2, 0.0)
    pooled = np.maximum(h2[:, :, 0::2], h2[:, :, 1::2])   # (B, 32, 12)
    flat = pooled.reshape(B, FLAT)                        # channel-major flatten
    z = flat @ wf.T + bf                                  # (B, 1)
    return 1.0 / (1.0 + np.exp(-z))


if __name__ == "__main__":
    key = jax.random.PRNGKey(0)
    k_x, k_p = jax.random.split(key)
    B = 2
    x = jax.random.normal(k_x, (B, L_IN, 1), jnp.float32)
    params = init_params(k_p)

    out = jax.jit(net_forward)(x, params)
    out = jax.block_until_ready(out)

    ref = ref_forward(x, params)
    assert out.shape == (B, 1), out.shape
    np.testing.assert_allclose(np.asarray(out), ref, rtol=2e-3, atol=2e-3)
    print("KERNEL_OK")
</pallas_src>

<mosaic_0001>
module attributes {stable_mosaic.version = 11 : i64} {
  func.func @net_kernel(%arg0: i32, %arg1: memref<32x128xf32, #tpu.memory_space<vmem>>, %arg2: memref<1664x32xf32, #tpu.memory_space<vmem>>, %arg3: memref<192x512xf32, #tpu.memory_space<vmem>>, %arg4: memref<32x1xf32, #tpu.memory_space<vmem>>, %arg5: memref<8x384xf32, #tpu.memory_space<vmem>>, %arg6: memref<1x1xf32, #tpu.memory_space<vmem>>, %arg7: memref<8x128xf32, #tpu.memory_space<vmem>>, %arg8: memref<1664x128xf32, #tpu.memory_space<vmem>>, %arg9: memref<384x128xf32, #tpu.memory_space<vmem>>) attributes {dimension_semantics = [#tpu.dimension_semantics<parallel>], iteration_bounds = array<i64: 1>, scalar_prefetch = 0 : i64, scratch_operands = 2 : i64, tpu.core_type = #tpu.core_type<tc>, window_params = [{transform_indices = @transform_0, window_bounds = array<i64: 32, 128>}, {pipeline_mode = #tpu.pipeline_mode<synchronous>, transform_indices = @transform_1, window_bounds = array<i64: 1664, 32>}, {pipeline_mode = #tpu.pipeline_mode<synchronous>, transform_indices = @transform_2, window_bounds = array<i64: 192, 512>}, {pipeline_mode = #tpu.pipeline_mode<synchronous>, transform_indices = @transform_3, window_bounds = array<i64: 32, 1>}, {pipeline_mode = #tpu.pipeline_mode<synchronous>, transform_indices = @transform_4, window_bounds = array<i64: 8, 384>}, {pipeline_mode = #tpu.pipeline_mode<synchronous>, transform_indices = @transform_5, window_bounds = array<i64: 1, 1>}, {transform_indices = @transform_6, window_bounds = array<i64: 8, 128>}]} {
    %c0 = arith.constant 0 : index
    %c0_0 = arith.constant 0 : index
    %0 = vector.load %arg2[%c0, %c0_0] : memref<1664x32xf32, #tpu.memory_space<vmem>>, vector<1664x32xf32>
    %c0_1 = arith.constant 0 : index
    %c0_2 = arith.constant 0 : index
    %1 = vector.load %arg1[%c0_1, %c0_2] : memref<32x128xf32, #tpu.memory_space<vmem>>, vector<32x128xf32>
    %cst = arith.constant dense<0.000000e+00> : vector<1664x128xf32>
    %2 = tpu.matmul %0, %1, %cst {dimension_numbers = #tpu.dot_dimension_numbers<[1], [0], [0], [1], [0, 0, 1, 1], [], []>} : vector<1664x32xf32>, vector<32x128xf32>, vector<1664x128xf32> -> vector<1664x128xf32>
    %cst_3 = arith.constant 0.000000e+00 : f32
    %3 = vector.broadcast %cst_3 : f32 to vector<1664x128xf32>
    %4 = arith.maximumf %2, %3 : vector<1664x128xf32>
    %c0_4 = arith.constant 0 : index
    %c0_5 = arith.constant 0 : index
    %5 = vector.load %arg8[%c0_4, %c0_5] : memref<1664x128xf32, #tpu.memory_space<vmem>>, vector<1664x128xf32>
    tpu.vector_store %arg8[%c0_4, %c0_5], %4 {strides = array<i32>} : memref<1664x128xf32, #tpu.memory_space<vmem>>, vector<1664x128xf32>,
    %c0_6 = arith.constant 0 : index
    %c0_7 = arith.constant 0 : index
    %6 = vector.load %arg3[%c0_6, %c0_7] : memref<192x512xf32, #tpu.memory_space<vmem>>, vector<192x512xf32>
    %c0_8 = arith.constant 0 : index
    %c0_9 = arith.constant 0 : index
    %7 = vector.load %arg8[%c0_8, %c0_9] : memref<1664x128xf32, #tpu.memory_space<vmem>>, vector<512x128xf32>
    %cst_10 = arith.constant dense<0.000000e+00> : vector<192x128xf32>
    %8 = tpu.matmul %6, %7, %cst_10 {dimension_numbers = #tpu.dot_dimension_numbers<[1], [0], [0], [1], [0, 0, 1, 1], [], []>} : vector<192x512xf32>, vector<512x128xf32>, vector<192x128xf32> -> vector<192x128xf32>
    %9 = vector.shape_cast %8 : vector<192x128xf32> to vector<6x32x128xf32>
    %c0_11 = arith.constant 0 : index
    %c0_12 = arith.constant 0 : index
    %10 = vector.load %arg4[%c0_11, %c0_12] : memref<32x1xf32, #tpu.memory_space<vmem>>, vector<32x1xf32>
    %11 = vector.shape_cast %10 : vector<32x1xf32> to vector<1x32x1xf32>
    %12 = vector.broadcast %11 : vector<1x32x1xf32> to vector<6x32x128xf32>
    %13 = arith.addf %9, %12 : vector<6x32x128xf32>
    %cst_13 = arith.constant 0.000000e+00 : f32
    %14 = vector.broadcast %cst_13 : f32 to vector<6x32x128xf32>
    %15 = arith.maximumf %13, %14 : vector<6x32x128xf32>
    %16 = vector.shape_cast %15 : vector<6x32x128xf32> to vector<3x64x128xf32>
    %17 = vector.extract_strided_slice %16 {offsets = [0, 0, 0], sizes = [3, 32, 128], strides = [1, 1, 1]} : vector<3x64x128xf32> to vector<3x32x128xf32>
    %18 = vector.extract_strided_slice %16 {offsets = [0, 32, 0], sizes = [3, 32, 128], strides = [1, 1, 1]} : vector<3x64x128xf32> to vector<3x32x128xf32>
    %19 = arith.maximumf %17, %18 : vector<3x32x128xf32>
    %20 = vector.shape_cast %19 : vector<3x32x128xf32> to vector<96x128xf32>
    %c0_14 = arith.constant 0 : index
    %c0_15 = arith.constant 0 : index
    %21 = vector.load %arg9[%c0_14, %c0_15] : memref<384x128xf32, #tpu.memory_space<vmem>>, vector<96x128xf32>
    tpu.vector_store %arg9[%c0_14, %c0_15], %20 {strides = array<i32>} : memref<384x128xf32, #tpu.memory_space<vmem>>, vector<96x128xf32>,
    %c0_16 = arith.constant 0 : index
    %c0_17 = arith.constant 0 : index
    %22 = vector.load %arg3[%c0_16, %c0_17] : memref<192x512xf32, #tpu.memory_space<vmem>>, vector<192x512xf32>
    %c384 = arith.constant 384 : index
    %c0_18 = arith.constant 0 : index
    %23 = vector.load %arg8[%c384, %c0_18] : memref<1664x128xf32, #tpu.memory_space<vmem>>, vector<512x128xf32>
    %cst_19 = arith.constant dense<0.000000e+00> : vector<192x128xf32>
    %24 = tpu.matmul %22, %23, %cst_19 {dimension_numbers = #tpu.dot_dimension_numbers<[1], [0], [0], [1], [0, 0, 1, 1], [], []>} : vector<192x512xf32>, vector<512x128xf32>, vector<192x128xf32> -> vector<192x128xf32>
    %25 = vector.shape_cast %24 : vector<192x128xf32> to vector<6x32x128xf32>
    %c0_20 = arith.constant 0 : index
    %c0_21 = arith.constant 0 : index
    %26 = vector.load %arg4[%c0_20, %c0_21] : memref<32x1xf32, #tpu.memory_space<vmem>>, vector<32x1xf32>
    %27 = vector.shape_cast %26 : vector<32x1xf32> to vector<1x32x1xf32>
    %28 = vector.broadcast %27 : vector<1x32x1xf32> to vector<6x32x128xf32>
    %29 = arith.addf %25, %28 : vector<6x32x128xf32>
    %cst_22 = arith.constant 0.000000e+00 : f32
    %30 = vector.broadcast %cst_22 : f32 to vector<6x32x128xf32>
    %31 = arith.maximumf %29, %30 : vector<6x32x128xf32>
    %32 = vector.shape_cast %31 : vector<6x32x128xf32> to vector<3x64x128xf32>
    %33 = vector.extract_strided_slice %32 {offsets = [0, 0, 0], sizes = [3, 32, 128], strides = [1, 1, 1]} : vector<3x64x128xf32> to vector<3x32x128xf32>
    %34 = vector.extract_strided_slice %32 {offsets = [0, 32, 0], sizes = [3, 32, 128], strides = [1, 1, 1]} : vector<3x64x128xf32> to vector<3x32x128xf32>
    %35 = arith.maximumf %33, %34 : vector<3x32x128xf32>
    %36 = vector.shape_cast %35 : vector<3x32x128xf32> to vector<96x128xf32>
    %c96 = arith.constant 96 : index
    %c0_23 = arith.constant 0 : index
    %37 = vector.load %arg9[%c96, %c0_23] : memref<384x128xf32, #tpu.memory_space<vmem>>, vector<96x128xf32>
    tpu.vector_store %arg9[%c96, %c0_23], %36 {strides = array<i32>} : memref<384x128xf32, #tpu.memory_space<vmem>>, vector<96x128xf32>,
    %c0_24 = arith.constant 0 : index
    %c0_25 = arith.constant 0 : index
    %38 = vector.load %arg3[%c0_24, %c0_25] : memref<192x512xf32, #tpu.memory_space<vmem>>, vector<192x512xf32>
    %c768 = arith.constant 768 : index
    %c0_26 = arith.constant 0 : index
    %39 = vector.load %arg8[%c768, %c0_26] : memref<1664x128xf32, #tpu.memory_space<vmem>>, vector<512x128xf32>
    %cst_27 = arith.constant dense<0.000000e+00> : vector<192x128xf32>
    %40 = tpu.matmul %38, %39, %cst_27 {dimension_numbers = #tpu.dot_dimension_numbers<[1], [0], [0], [1], [0, 0, 1, 1], [], []>} : vector<192x512xf32>, vector<512x128xf32>, vector<192x128xf32> -> vector<192x128xf32>
    %41 = vector.shape_cast %40 : vector<192x128xf32> to vector<6x32x128xf32>
    %c0_28 = arith.constant 0 : index
    %c0_29 = arith.constant 0 : index
    %42 = vector.load %arg4[%c0_28, %c0_29] : memref<32x1xf32, #tpu.memory_space<vmem>>, vector<32x1xf32>
    %43 = vector.shape_cast %42 : vector<32x1xf32> to vector<1x32x1xf32>
    %44 = vector.broadcast %43 : vector<1x32x1xf32> to vector<6x32x128xf32>
    %45 = arith.addf %41, %44 : vector<6x32x128xf32>
    %cst_30 = arith.constant 0.000000e+00 : f32
    %46 = vector.broadcast %cst_30 : f32 to vector<6x32x128xf32>
    %47 = arith.maximumf %45, %46 : vector<6x32x128xf32>
    %48 = vector.shape_cast %47 : vector<6x32x128xf32> to vector<3x64x128xf32>
    %49 = vector.extract_strided_slice %48 {offsets = [0, 0, 0], sizes = [3, 32, 128], strides = [1, 1, 1]} : vector<3x64x128xf32> to vector<3x32x128xf32>
    %50 = vector.extract_strided_slice %48 {offsets = [0, 32, 0], sizes = [3, 32, 128], strides = [1, 1, 1]} : vector<3x64x128xf32> to vector<3x32x128xf32>
    %51 = arith.maximumf %49, %50 : vector<3x32x128xf32>
    %52 = vector.shape_cast %51 : vector<3x32x128xf32> to vector<96x128xf32>
    %c192 = arith.constant 192 : index
    %c0_31 = arith.constant 0 : index
    %53 = vector.load %arg9[%c192, %c0_31] : memref<384x128xf32, #tpu.memory_space<vmem>>, vector<96x128xf32>
    tpu.vector_store %arg9[%c192, %c0_31], %52 {strides = array<i32>} : memref<384x128xf32, #tpu.memory_space<vmem>>, vector<96x128xf32>,
    %c0_32 = arith.constant 0 : index
    %c0_33 = arith.constant 0 : index
    %54 = vector.load %arg3[%c0_32, %c0_33] : memref<192x512xf32, #tpu.memory_space<vmem>>, vector<192x512xf32>
    %c1152 = arith.constant 1152 : index
    %c0_34 = arith.constant 0 : index
    %55 = vector.load %arg8[%c1152, %c0_34] : memref<1664x128xf32, #tpu.memory_space<vmem>>, vector<512x128xf32>
    %cst_35 = arith.constant dense<0.000000e+00> : vector<192x128xf32>
    %56 = tpu.matmul %54, %55, %cst_35 {dimension_numbers = #tpu.dot_dimension_numbers<[1], [0], [0], [1], [0, 0, 1, 1], [], []>} : vector<192x512xf32>, vector<512x128xf32>, vector<192x128xf32> -> vector<192x128xf32>
    %57 = vector.shape_cast %56 : vector<192x128xf32> to vector<6x32x128xf32>
    %c0_36 = arith.constant 0 : index
    %c0_37 = arith.constant 0 : index
    %58 = vector.load %arg4[%c0_36, %c0_37] : memref<32x1xf32, #tpu.memory_space<vmem>>, vector<32x1xf32>
    %59 = vector.shape_cast %58 : vector<32x1xf32> to vector<1x32x1xf32>
    %60 = vector.broadcast %59 : vector<1x32x1xf32> to vector<6x32x128xf32>
    %61 = arith.addf %57, %60 : vector<6x32x128xf32>
    %cst_38 = arith.constant 0.000000e+00 : f32
    %62 = vector.broadcast %cst_38 : f32 to vector<6x32x128xf32>
    %63 = arith.maximumf %61, %62 : vector<6x32x128xf32>
    %64 = vector.shape_cast %63 : vector<6x32x128xf32> to vector<3x64x128xf32>
    %65 = vector.extract_strided_slice %64 {offsets = [0, 0, 0], sizes = [3, 32, 128], strides = [1, 1, 1]} : vector<3x64x128xf32> to vector<3x32x128xf32>
    %66 = vector.extract_strided_slice %64 {offsets = [0, 32, 0], sizes = [3, 32, 128], strides = [1, 1, 1]} : vector<3x64x128xf32> to vector<3x32x128xf32>
    %67 = arith.maximumf %65, %66 : vector<3x32x128xf32>
    %68 = vector.shape_cast %67 : vector<3x32x128xf32> to vector<96x128xf32>
    %c288 = arith.constant 288 : index
    %c0_39 = arith.constant 0 : index
    %69 = vector.load %arg9[%c288, %c0_39] : memref<384x128xf32, #tpu.memory_space<vmem>>, vector<96x128xf32>
    tpu.vector_store %arg9[%c288, %c0_39], %68 {strides = array<i32>} : memref<384x128xf32, #tpu.memory_space<vmem>>, vector<96x128xf32>,
    %c0_40 = arith.constant 0 : index
    %c0_41 = arith.constant 0 : index
    %70 = vector.load %arg5[%c0_40, %c0_41] : memref<8x384xf32, #tpu.memory_space<vmem>>, vector<8x384xf32>
    %c0_42 = arith.constant 0 : index
    %c0_43 = arith.constant 0 : index
    %71 = vector.load %arg9[%c0_42, %c0_43] : memref<384x128xf32, #tpu.memory_space<vmem>>, vector<384x128xf32>
    %cst_44 = arith.constant dense<0.000000e+00> : vector<8x128xf32>
    %72 = tpu.matmul %70, %71, %cst_44 {dimension_numbers = #tpu.dot_dimension_numbers<[1], [0], [0], [1], [0, 0, 1, 1], [], []>} : vector<8x384xf32>, vector<384x128xf32>, vector<8x128xf32> -> vector<8x128xf32>
    %c0_45 = arith.constant 0 : index
    %c0_46 = arith.constant 0 : index
    %73 = vector.load %arg6[%c0_45, %c0_46] : memref<1x1xf32, #tpu.memory_space<vmem>>, vector<1x1xf32>
    %74 = vector.broadcast %73 : vector<1x1xf32> to vector<8x128xf32>
    %75 = arith.addf %72, %74 : vector<8x128xf32>
    %cst_47 = arith.constant 0.000000e+00 : f32
    %76 = vector.broadcast %cst_47 : f32 to vector<8x128xf32>
    %77 = arith.subf %76, %75 : vector<8x128xf32>
    %78 = math.exp %77 : vector<8x128xf32>
    %cst_48 = arith.constant 1.000000e+00 : f32
    %79 = vector.broadcast %cst_48 : f32 to vector<8x128xf32>
    %80 = arith.addf %79, %78 : vector<8x128xf32>
    %cst_49 = arith.constant 1.000000e+00 : f32
    %81 = vector.broadcast %cst_49 : f32 to vector<8x128xf32>
    %82 = arith.divf %81, %80 : vector<8x128xf32>
    %c0_50 = arith.constant 0 : index
    %c0_51 = arith.constant 0 : index
    %83 = vector.load %arg7[%c0_50, %c0_51] : memref<8x128xf32, #tpu.memory_space<vmem>>, vector<8x128xf32>
    tpu.vector_store %arg7[%c0_50, %c0_51], %82 {strides = array<i32>} : memref<8x128xf32, #tpu.memory_space<vmem>>, vector<8x128xf32>,
    return
  }
  func.func @transform_0(%arg0: i32) -> (i32, i32) {
    %c0_i32 = arith.constant 0 : i32
    %c0_i32_0 = arith.constant 0 : i32
    return %c0_i32, %arg0 : i32, i32
  }
  func.func @transform_1(%arg0: i32) -> (i32, i32) {
    %c0_i32 = arith.constant 0 : i32
    %c0_i32_0 = arith.constant 0 : i32
    %c0_i32_1 = arith.constant 0 : i32
    return %c0_i32, %c0_i32_0 : i32, i32
  }
  func.func @transform_2(%arg0: i32) -> (i32, i32) {
    %c0_i32 = arith.constant 0 : i32
    %c0_i32_0 = arith.constant 0 : i32
    %c0_i32_1 = arith.constant 0 : i32
    return %c0_i32, %c0_i32_0 : i32, i32
  }
  func.func @transform_3(%arg0: i32) -> (i32, i32) {
    %c0_i32 = arith.constant 0 : i32
    %c0_i32_0 = arith.constant 0 : i32
    %c0_i32_1 = arith.constant 0 : i32
    return %c0_i32, %c0_i32_0 : i32, i32
  }
  func.func @transform_4(%arg0: i32) -> (i32, i32) {
    %c0_i32 = arith.constant 0 : i32
    %c0_i32_0 = arith.constant 0 : i32
    %c0_i32_1 = arith.constant 0 : i32
    return %c0_i32, %c0_i32_0 : i32, i32
  }
  func.func @transform_5(%arg0: i32) -> (i32, i32) {
    %c0_i32 = arith.constant 0 : i32
    %c0_i32_0 = arith.constant 0 : i32
    %c0_i32_1 = arith.constant 0 : i32
    return %c0_i32, %c0_i32_0 : i32, i32
  }
  func.func @transform_6(%arg0: i32) -> (i32, i32) {
    %c0_i32 = arith.constant 0 : i32
    %c0_i32_0 = arith.constant 0 : i32
    return %c0_i32, %arg0 : i32, i32
  }
}

</mosaic_0001>

<llo_original>
// kernel: net_forward.1
$region0: #{net_forward.1}
  #allocation0 [shape = 'u32[]', space=smem, size = 0x4, offset = 0x4, fixed_abs, tag = 'smem constant byte address 0x4 - core index']
  #allocation1 [shape = 'u32[72,128]{1,0:T(1,128)}', space=vmem, size = 0x9000, scoped, tag = 'internal scratch']
  #allocation2 [shape = 'f32[1664,128]{1,0:T(8,128)}', space=vmem, size = 0xd0000, scoped, tag = 'scratch operand']
  #allocation3 [shape = 'f32[384,128]{1,0:T(8,128)}', space=vmem, size = 0x30000, scoped, tag = 'scratch operand']
  #allocation4 [shape = 'f32[1,1]{1,0:T(1,128)S(1)}', space=vmem, size = 0x200, scoped, tag = 'scoped memory for net_forward.1']
  %s0 = inlined_call_operand.vmem [shape: f32[32,128], index: 0, kind: input, shape index: {}]
  %s1 = inlined_call_operand.vmem [shape: f32[1664,32], index: 1, kind: input, shape index: {}]
  %s2 = inlined_call_operand.vmem [shape: f32[192,512], index: 2, kind: input, shape index: {}]
  %s3 = inlined_call_operand.vmem [shape: f32[32,1], index: 3, kind: input, shape index: {}]
  %s4 = inlined_call_operand.vmem [shape: f32[8,384], index: 4, kind: input, shape index: {}]
  %s5 = inlined_call_operand.<no memory space> [shape: f32[1,1], index: 5, kind: input, shape index: {}]
  %s6 = inlined_call_operand.vmem [shape: f32[8,128], index: 6, kind: output, shape index: {}]
  %s7 = sld [smem:[#allocation0]]
  $region34: #{net_forward.1} parent=0
    _
  %s9 = ssub.s32 1, %s7
  %s10 = scalar_select 0, %s9, %s7
  %v11 = vstv %s5
  %12 = vst [vmem:[#allocation4] sm:$0x1] %v11
  // Predicated region
  $region2: #{net_forward.1} parent=0 // pred_check
    _
  $region3: #{net_forward.1} parent=0 // pred_check_branch
    %14 = sbr.rel (0) target = $region5
  $region4: #{net_forward.1} parent=0 // pred_region
    _
  $region5: #{net_forward.1} parent=0 // pred_fallthru
    _
  // Predicated region
  $region6: #{net_forward.1} parent=0 // pred_check
    _
  $region7: #{net_forward.1} parent=0 // pred_check_branch
    %16 = sbr.rel (0) target = $region9
  $region8: #{net_forward.1} parent=0 // pred_region
    _
  $region9: #{net_forward.1} parent=0 // pred_fallthru
    _
  // Predicated region
  $region10: #{net_forward.1} parent=0 // pred_check
    _
  $region11: #{net_forward.1} parent=0 // pred_check_branch
    %18 = sbr.rel (0) target = $region13
  $region12: #{net_forward.1} parent=0 // pred_region
    _
  $region13: #{net_forward.1} parent=0 // pred_fallthru
    _
  // Predicated region
  $region14: #{net_forward.1} parent=0 // pred_check
    _
  $region15: #{net_forward.1} parent=0 // pred_check_branch
    %20 = sbr.rel (0) target = $region17
  $region16: #{net_forward.1} parent=0 // pred_region
    _
  $region17: #{net_forward.1} parent=0 // pred_fallthru
    _
  // Predicated region
  $region18: #{net_forward.1} parent=0 // pred_check
    _
  $region19: #{net_forward.1} parent=0 // pred_check_branch
    %22 = sbr.rel (0) target = $region21
  $region20: #{net_forward.1} parent=0 // pred_region
    _
  $region21: #{net_forward.1} parent=0 // pred_fallthru
    _
  // Predicated region
  $region22: #{net_forward.1} parent=0 // pred_check
    _
  $region23: #{net_forward.1} parent=0 // pred_check_branch
    %24 = sbr.rel (0) target = $region25
  $region24: #{net_forward.1} parent=0 // pred_region
    _
  $region25: #{net_forward.1} parent=0 // pred_fallthru
    _
  %v25 = vld [vmem:[%s1] sm:$0xff]
  %v26 = vld [vmem:[%s1 + $0x8] sm:$0xff]
  %v27 = vld [vmem:[%s1 + $0x10] sm:$0xff]
  %v28 = vld [vmem:[%s1 + $0x18] sm:$0xff]
  %v29 = vld [vmem:[%s1 + $0x20] sm:$0xff]
  %v30 = vld [vmem:[%s1 + $0x28] sm:$0xff]
  %v31 = vld [vmem:[%s1 + $0x30] sm:$0xff]
  %v32 = vld [vmem:[%s1 + $0x38] sm:$0xff]
  %v33 = vld [vmem:[%s1 + $0x40] sm:$0xff]
  %v34 = vld [vmem:[%s1 + $0x48] sm:$0xff]
  %v35 = vld [vmem:[%s1 + $0x50] sm:$0xff]
  %v36 = vld [vmem:[%s1 + $0x58] sm:$0xff]
  %v37 = vld [vmem:[%s1 + $0x60] sm:$0xff]
  %v38 = vld [vmem:[%s1 + $0x68] sm:$0xff]
  %v39 = vld [vmem:[%s1 + $0x70] sm:$0xff]
  %v40 = vld [vmem:[%s1 + $0x78] sm:$0xff]
  %v41 = vld [vmem:[%s1 + $0x80] sm:$0xff]
  %v42 = vld [vmem:[%s1 + $0x88] sm:$0xff]
  %v43 = vld [vmem:[%s1 + $0x90] sm:$0xff]
  %v44 = vld [vmem:[%s1 + $0x98] sm:$0xff]
  %v45 = vld [vmem:[%s1 + $0xa0] sm:$0xff]
  %v46 = vld [vmem:[%s1 + $0xa8] sm:$0xff]
  %v47 = vld [vmem:[%s1 + $0xb0] sm:$0xff]
  %v48 = vld [vmem:[%s1 + $0xb8] sm:$0xff]
  %v49 = vld [vmem:[%s1 + $0xc0] sm:$0xff]
  %v50 = vld [vmem:[%s1 + $0xc8] sm:$0xff]
  %v51 = vld [vmem:[%s1 + $0xd0] sm:$0xff]
  %v52 = vld [vmem:[%s1 + $0xd8] sm:$0xff]
  %v53 = vld [vmem:[%s1 + $0xe0] sm:$0xff]
  %v54 = vld [vmem:[%s1 + $0xe8] sm:$0xff]
  %v55 = vld [vmem:[%s1 + $0xf0] sm:$0xff]
  %v56 = vld [vmem:[%s1 + $0xf8] sm:$0xff]
  %v57 = vld [vmem:[%s1 + $0x100] sm:$0xff]
  %v58 = vld [vmem:[%s1 + $0x108] sm:$0xff]
  %v59 = vld [vmem:[%s1 + $0x110] sm:$0xff]
  %v60 = vld [vmem:[%s1 + $0x118] sm:$0xff]
  %v61 = vld [vmem:[%s1 + $0x120] sm:$0xff]
  %v62 = vld [vmem:[%s1 + $0x128] sm:$0xff]
  %v63 = vld [vmem:[%s1 + $0x130] sm:$0xff]
  %v64 = vld [vmem:[%s1 + $0x138] sm:$0xff]
  %v65 = vld [vmem:[%s1 + $0x140] sm:$0xff]
  %v66 = vld [vmem:[%s1 + $0x148] sm:$0xff]
  %v67 = vld [vmem:[%s1 + $0x150] sm:$0xff]
  %v68 = vld [vmem:[%s1 + $0x158] sm:$0xff]
  %v69 = vld [vmem:[%s1 + $0x160] sm:$0xff]
  %v70 = vld [vmem:[%s1 + $0x168] sm:$0xff]
  %v71 = vld [vmem:[%s1 + $0x170] sm:$0xff]
  %v72 = vld [vmem:[%s1 + $0x178] sm:$0xff]
  %v73 = vld [vmem:[%s1 + $0x180] sm:$0xff]
  %v74 = vld [vmem:[%s1 + $0x188] sm:$0xff]
  %v75 = vld [vmem:[%s1 + $0x190] sm:$0xff]
  %v76 = vld [vmem:[%s1 + $0x198] sm:$0xff]
  %v77 = vld [vmem:[%s1 + $0x1a0] sm:$0xff]
  %v78 = vld [vmem:[%s1 + $0x1a8] sm:$0xff]
  %v79 = vld [vmem:[%s1 + $0x1b0] sm:$0xff]
  %v80 = vld [vmem:[%s1 + $0x1b8] sm:$0xff]
  %v81 = vld [vmem:[%s1 + $0x1c0] sm:$0xff]
  %v82 = vld [vmem:[%s1 + $0x1c8] sm:$0xff]
  %v83 = vld [vmem:[%s1 + $0x1d0] sm:$0xff]
  %v84 = vld [vmem:[%s1 + $0x1d8] sm:$0xff]
  %v85 = vld [vmem:[%s1 + $0x1e0] sm:$0xff]
  %v86 = vld [vmem:[%s1 + $0x1e8] sm:$0xff]
  %v87 = vld [vmem:[%s1 + $0x1f0] sm:$0xff]
  %v88 = vld [vmem:[%s1 + $0x1f8] sm:$0xff]
  %v89 = vld [vmem:[%s1 + $0x200] sm:$0xff]
  %v90 = vld [vmem:[%s1 + $0x208] sm:$0xff]
  %v91 = vld [vmem:[%s1 + $0x210] sm:$0xff]
  %v92 = vld [vmem:[%s1 + $0x218] sm:$0xff]
  %v93 = vld [vmem:[%s1 + $0x220] sm:$0xff]
  %v94 = vld [vmem:[%s1 + $0x228] sm:$0xff]
  %v95 = vld [vmem:[%s1 + $0x230] sm:$0xff]
  %v96 = vld [vmem:[%s1 + $0x238] sm:$0xff]
  %v97 = vld [vmem:[%s1 + $0x240] sm:$0xff]
  %v98 = vld [vmem:[%s1 + $0x248] sm:$0xff]
  %v99 = vld [vmem:[%s1 + $0x250] sm:$0xff]
  %v100 = vld [vmem:[%s1 + $0x258] sm:$0xff]
  %v101 = vld [vmem:[%s1 + $0x260] sm:$0xff]
  %v102 = vld [vmem:[%s1 + $0x268] sm:$0xff]
  %v103 = vld [vmem:[%s1 + $0x270] sm:$0xff]
  %v104 = vld [vmem:[%s1 + $0x278] sm:$0xff]
  %v105 = vld [vmem:[%s1 + $0x280] sm:$0xff]
  %v106 = vld [vmem:[%s1 + $0x288] sm:$0xff]
  %v107 = vld [vmem:[%s1 + $0x290] sm:$0xff]
  %v108 = vld [vmem:[%s1 + $0x298] sm:$0xff]
  %v109 = vld [vmem:[%s1 + $0x2a0] sm:$0xff]
  %v110 = vld [vmem:[%s1 + $0x2a8] sm:$0xff]
  %v111 = vld [vmem:[%s1 + $0x2b0] sm:$0xff]
  %v112 = vld [vmem:[%s1 + $0x2b8] sm:$0xff]
  %v113 = vld [vmem:[%s1 + $0x2c0] sm:$0xff]
  %v114 = vld [vmem:[%s1 + $0x2c8] sm:$0xff]
  %v115 = vld [vmem:[%s1 + $0x2d0] sm:$0xff]
  %v116 = vld [vmem:[%s1 + $0x2d8] sm:$0xff]
  %v117 = vld [vmem:[%s1 + $0x2e0] sm:$0xff]
  %v118 = vld [vmem:[%s1 + $0x2e8] sm:$0xff]
  %v119 = vld [vmem:[%s1 + $0x2f0] sm:$0xff]
  %v120 = vld [vmem:[%s1 + $0x2f8] sm:$0xff]
  %v121 = vld [vmem:[%s1 + $0x300] sm:$0xff]
  %v122 = vld [vmem:[%s1 + $0x308] sm:$0xff]
  %v123 = vld [vmem:[%s1 + $0x310] sm:$0xff]
  %v124 = vld [vmem:[%s1 + $0x318] sm:$0xff]
  %v125 = vld [vmem:[%s1 + $0x320] sm:$0xff]
  %v126 = vld [vmem:[%s1 + $0x328] sm:$0xff]
  %v127 = vld [vmem:[%s1 + $0x330] sm:$0xff]
  %v128 = vld [vmem:[%s1 + $0x338] sm:$0xff]
  %v129 = vld [vmem:[%s1 + $0x340] sm:$0xff]
  %v130 = vld [vmem:[%s1 + $0x348] sm:$0xff]
  %v131 = vld [vmem:[%s1 + $0x350] sm:$0xff]
  %v132 = vld [vmem:[%s1 + $0x358] sm:$0xff]
  %v133 = vld [vmem:[%s1 + $0x360] sm:$0xff]
  %v134 = vld [vmem:[%s1 + $0x368] sm:$0xff]
  %v135 = vld [vmem:[%s1 + $0x370] sm:$0xff]
  %v136 = vld [vmem:[%s1 + $0x378] sm:$0xff]
  %v137 = vld [vmem:[%s1 + $0x380] sm:$0xff]
  %v138 = vld [vmem:[%s1 + $0x388] sm:$0xff]
  %v139 = vld [vmem:[%s1 + $0x390] sm:$0xff]
  %v140 = vld [vmem:[%s1 + $0x398] sm:$0xff]
  %v141 = vld [vmem:[%s1 + $0x3a0] sm:$0xff]
  %v142 = vld [vmem:[%s1 + $0x3a8] sm:$0xff]
  %v143 = vld [vmem:[%s1 + $0x3b0] sm:$0xff]
  %v144 = vld [vmem:[%s1 + $0x3b8] sm:$0xff]
  %v145 = vld [vmem:[%s1 + $0x3c0] sm:$0xff]
  %v146 = vld [vmem:[%s1 + $0x3c8] sm:$0xff]
  %v147 = vld [vmem:[%s1 + $0x3d0] sm:$0xff]
  %v148 = vld [vmem:[%s1 + $0x3d8] sm:$0xff]
  %v149 = vld [vmem:[%s1 + $0x3e0] sm:$0xff]
  %v150 = vld [vmem:[%s1 + $0x3e8] sm:$0xff]
  %v151 = vld [vmem:[%s1 + $0x3f0] sm:$0xff]
  %v152 = vld [vmem:[%s1 + $0x3f8] sm:$0xff]
  %v153 = vld [vmem:[%s1 + $0x400] sm:$0xff]
  %v154 = vld [vmem:[%s1 + $0x408] sm:$0xff]
  %v155 = vld [vmem:[%s1 + $0x410] sm:$0xff]
  %v156 = vld [vmem:[%s1 + $0x418] sm:$0xff]
  %v157 = vld [vmem:[%s1 + $0x420] sm:$0xff]
  %v158 = vld [vmem:[%s1 + $0x428] sm:$0xff]
  %v159 = vld [vmem:[%s1 + $0x430] sm:$0xff]
  %v160 = vld [vmem:[%s1 + $0x438] sm:$0xff]
  %v161 = vld [vmem:[%s1 + $0x440] sm:$0xff]
  %v162 = vld [vmem:[%s1 + $0x448] sm:$0xff]
  %v163 = vld [vmem:[%s1 + $0x450] sm:$0xff]
  %v164 = vld [vmem:[%s1 + $0x458] sm:$0xff]
  %v165 = vld [vmem:[%s1 + $0x460] sm:$0xff]
  %v166 = vld [vmem:[%s1 + $0x468] sm:$0xff]
  %v167 = vld [vmem:[%s1 + $0x470] sm:$0xff]
  %v168 = vld [vmem:[%s1 + $0x478] sm:$0xff]
  %v169 = vld [vmem:[%s1 + $0x480] sm:$0xff]
  %v170 = vld [vmem:[%s1 + $0x488] sm:$0xff]
  %v171 = vld [vmem:[%s1 + $0x490] sm:$0xff]
  %v172 = vld [vmem:[%s1 + $0x498] sm:$0xff]
  %v173 = vld [vmem:[%s1 + $0x4a0] sm:$0xff]
  %v174 = vld [vmem:[%s1 + $0x4a8] sm:$0xff]
  %v175 = vld [vmem:[%s1 + $0x4b0] sm:$0xff]
  %v176 = vld [vmem:[%s1 + $0x4b8] sm:$0xff]
  %v177 = vld [vmem:[%s1 + $0x4c0] sm:$0xff]
  %v178 = vld [vmem:[%s1 + $0x4c8] sm:$0xff]
  %v179 = vld [vmem:[%s1 + $0x4d0] sm:$0xff]
  %v180 = vld [vmem:[%s1 + $0x4d8] sm:$0xff]
  %v181 = vld [vmem:[%s1 + $0x4e0] sm:$0xff]
  %v182 = vld [vmem:[%s1 + $0x4e8] sm:$0xff]
  %v183 = vld [vmem:[%s1 + $0x4f0] sm:$0xff]
  %v184 = vld [vmem:[%s1 + $0x4f8] sm:$0xff]
  %v185 = vld [vmem:[%s1 + $0x500] sm:$0xff]
  %v186 = vld [vmem:[%s1 + $0x508] sm:$0xff]
  %v187 = vld [vmem:[%s1 + $0x510] sm:$0xff]
  %v188 = vld [vmem:[%s1 + $0x518] sm:$0xff]
  %v189 = vld [vmem:[%s1 + $0x520] sm:$0xff]
  %v190 = vld [vmem:[%s1 + $0x528] sm:$0xff]
  %v191 = vld [vmem:[%s1 + $0x530] sm:$0xff]
  %v192 = vld [vmem:[%s1 + $0x538] sm:$0xff]
  %v193 = vld [vmem:[%s1 + $0x540] sm:$0xff]
  %v194 = vld [vmem:[%s1 + $0x548] sm:$0xff]
  %v195 = vld [vmem:[%s1 + $0x550] sm:$0xff]
  %v196 = vld [vmem:[%s1 + $0x558] sm:$0xff]
  %v197 = vld [vmem:[%s1 + $0x560] sm:$0xff]
  %v198 = vld [vmem:[%s1 + $0x568] sm:$0xff]
  %v199 = vld [vmem:[%s1 + $0x570] sm:$0xff]
  %v200 = vld [vmem:[%s1 + $0x578] sm:$0xff]
  %v201 = vld [vmem:[%s1 + $0x580] sm:$0xff]
  %v202 = vld [vmem:[%s1 + $0x588] sm:$0xff]
  %v203 = vld [vmem:[%s1 + $0x590] sm:$0xff]
  %v204 = vld [vmem:[%s1 + $0x598] sm:$0xff]
  %v205 = vld [vmem:[%s1 + $0x5a0] sm:$0xff]
  %v206 = vld [vmem:[%s1 + $0x5a8] sm:$0xff]
  %v207 = vld [vmem:[%s1 + $0x5b0] sm:$0xff]
  %v208 = vld [vmem:[%s1 + $0x5b8] sm:$0xff]
  %v209 = vld [vmem:[%s1 + $0x5c0] sm:$0xff]
  %v210 = vld [vmem:[%s1 + $0x5c8] sm:$0xff]
  %v211 = vld [vmem:[%s1 + $0x5d0] sm:$0xff]
  %v212 = vld [vmem:[%s1 + $0x5d8] sm:$0xff]
  %v213 = vld [vmem:[%s1 + $0x5e0] sm:$0xff]
  %v214 = vld [vmem:[%s1 + $0x5e8] sm:$0xff]
  %v215 = vld [vmem:[%s1 + $0x5f0] sm:$0xff]
  %v216 = vld [vmem:[%s1 + $0x5f8] sm:$0xff]
  %v217 = vld [vmem:[%s1 + $0x600] sm:$0xff]
  %v218 = vld [vmem:[%s1 + $0x608] sm:$0xff]
  %v219 = vld [vmem:[%s1 + $0x610] sm:$0xff]
  %v220 = vld [vmem:[%s1 + $0x618] sm:$0xff]
  %v221 = vld [vmem:[%s1 + $0x620] sm:$0xff]
  %v222 = vld [vmem:[%s1 + $0x628] sm:$0xff]
  %v223 = vld [vmem:[%s1 + $0x630] sm:$0xff]
  %v224 = vld [vmem:[%s1 + $0x638] sm:$0xff]
  %v225 = vld [vmem:[%s1 + $0x640] sm:$0xff]
  %v226 = vld [vmem:[%s1 + $0x648] sm:$0xff]
  %v227 = vld [vmem:[%s1 + $0x650] sm:$0xff]
  %v228 = vld [vmem:[%s1 + $0x658] sm:$0xff]
  %v229 = vld [vmem:[%s1 + $0x660] sm:$0xff]
  %v230 = vld [vmem:[%s1 + $0x668] sm:$0xff]
  %v231 = vld [vmem:[%s1 + $0x670] sm:$0xff]
  %v232 = vld [vmem:[%s1 + $0x678] sm:$0xff]
  %v233 = vld [vmem:[%s0] sm:$0xff]
  %v234 = vld [vmem:[%s0 + $0x8] sm:$0xff]
  %v235 = vld [vmem:[%s0 + $0x10] sm:$0xff]
  %v236 = vld [vmem:[%s0 + $0x18] sm:$0xff]
  %vm237 = vcmask 261120
  %v239 = vsel %vm237, %v25, 0
  %v242 = vsel %vm237, %v26, 0
  %v245 = vsel %vm237, %v27, 0
  %v248 = vsel %vm237, %v28, 0
  %v251 = vsel %vm237, %v29, 0
  %v254 = vsel %vm237, %v30, 0
  %v257 = vsel %vm237, %v31, 0
  %v260 = vsel %vm237, %v32, 0
  %v263 = vsel %vm237, %v33, 0
  %v266 = vsel %vm237, %v34, 0
  %v269 = vsel %vm237, %v35, 0
  %v272 = vsel %vm237, %v36, 0
  %v275 = vsel %vm237, %v37, 0
  %v278 = vsel %vm237, %v38, 0
  %v281 = vsel %vm237, %v39, 0
  %v284 = vsel %vm237, %v40, 0
  %v287 = vsel %vm237, %v41, 0
  %v290 = vsel %vm237, %v42, 0
  %v293 = vsel %vm237, %v43, 0
  %v296 = vsel %vm237, %v44, 0
  %v299 = vsel %vm237, %v45, 0
  %v302 = vsel %vm237, %v46, 0
  %v305 = vsel %vm237, %v47, 0
  %v308 = vsel %vm237, %v48, 0
  %v311 = vsel %vm237, %v49, 0
  %v314 = vsel %vm237, %v50, 0
  %v317 = vsel %vm237, %v51, 0
  %v320 = vsel %vm237, %v52, 0
  %v323 = vsel %vm237, %v53, 0
  %v326 = vsel %vm237, %v54, 0
  %v329 = vsel %vm237, %v55, 0
  %v332 = vsel %vm237, %v56, 0
  %v335 = vsel %vm237, %v57, 0
  %v338 = vsel %vm237, %v58, 0
  %v341 = vsel %vm237, %v59, 0
  %v344 = vsel %vm237, %v60, 0
  %v347 = vsel %vm237, %v61, 0
  %v350 = vsel %vm237, %v62, 0
  %v353 = vsel %vm237, %v63, 0
  %v356 = vsel %vm237, %v64, 0
  %v359 = vsel %vm237, %v65, 0
  %v362 = vsel %vm237, %v66, 0
  %v365 = vsel %vm237, %v67, 0
  %v368 = vsel %vm237, %v68, 0
  %v371 = vsel %vm237, %v69, 0
  %v374 = vsel %vm237, %v70, 0
  %v377 = vsel %vm237, %v71, 0
  %v380 = vsel %vm237, %v72, 0
  %v383 = vsel %vm237, %v73, 0
  %v386 = vsel %vm237, %v74, 0
  %v389 = vsel %vm237, %v75, 0
  %v392 = vsel %vm237, %v76, 0
  %v395 = vsel %vm237, %v77, 0
  %v398 = vsel %vm237, %v78, 0
  %v401 = vsel %vm237, %v79, 0
  %v404 = vsel %vm237, %v80, 0
  %v407 = vsel %vm237, %v81, 0
  %v410 = vsel %vm237, %v82, 0
  %v413 = vsel %vm237, %v83, 0
  %v416 = vsel %vm237, %v84, 0
  %v419 = vsel %vm237, %v85, 0
  %v422 = vsel %vm237, %v86, 0
  %v425 = vsel %vm237, %v87, 0
  %v428 = vsel %vm237, %v88, 0
  %v431 = vsel %vm237, %v89, 0
  %v434 = vsel %vm237, %v90, 0
  %v437 = vsel %vm237, %v91, 0
  %v440 = vsel %vm237, %v92, 0
  %v443 = vsel %vm237, %v93, 0
  %v446 = vsel %vm237, %v94, 0
  %v449 = vsel %vm237, %v95, 0
  %v452 = vsel %vm237, %v96, 0
  %v455 = vsel %vm237, %v97, 0
  %v458 = vsel %vm237, %v98, 0
  %v461 = vsel %vm237, %v99, 0
  %v464 = vsel %vm237, %v100, 0
  %v467 = vsel %vm237, %v101, 0
  %v470 = vsel %vm237, %v102, 0
  %v473 = vsel %vm237, %v103, 0
  %v476 = vsel %vm237, %v104, 0
  %v479 = vsel %vm237, %v105, 0
  %v482 = vsel %vm237, %v106, 0
  %v485 = vsel %vm237, %v107, 0
  %v488 = vsel %vm237, %v108, 0
  %v491 = vsel %vm237, %v109, 0
  %v494 = vsel %vm237, %v110, 0
  %v497 = vsel %vm237, %v111, 0
  %v500 = vsel %vm237, %v112, 0
  %v503 = vsel %vm237, %v113, 0
  %v506 = vsel %vm237, %v114, 0
  %v509 = vsel %vm237, %v115, 0
  %v512 = vsel %vm237, %v116, 0
  %v515 = vsel %vm237, %v117, 0
  %v518 = vsel %vm237, %v118, 0
  %v521 = vsel %vm237, %v119, 0
  %v524 = vsel %vm237, %v120, 0
  %v527 = vsel %vm237, %v121, 0
  %v530 = vsel %vm237, %v122, 0
  %v533 = vsel %vm237, %v123, 0
  %v536 = vsel %vm237, %v124, 0
  %v539 = vsel %vm237, %v125, 0
  %v542 = vsel %vm237, %v126, 0
  %v545 = vsel %vm237, %v127, 0
  %v548 = vsel %vm237, %v128, 0
  %v551 = vsel %vm237, %v129, 0
  %v554 = vsel %vm237, %v130, 0
  %v557 = vsel %vm237, %v131, 0
  %v560 = vsel %vm237, %v132, 0
  %v563 = vsel %vm237, %v133, 0
  %v566 = vsel %vm237, %v134, 0
  %v569 = vsel %vm237, %v135, 0
  %v572 = vsel %vm237, %v136, 0
  %v575 = vsel %vm237, %v137, 0
  %v578 = vsel %vm237, %v138, 0
  %v581 = vsel %vm237, %v139, 0
  %v584 = vsel %vm237, %v140, 0
  %v587 = vsel %vm237, %v141, 0
  %v590 = vsel %vm237, %v142, 0
  %v593 = vsel %vm237, %v143, 0
  %v596 = vsel %vm237, %v144, 0
  %v599 = vsel %vm237, %v145, 0
  %v602 = vsel %vm237, %v146, 0
  %v605 = vsel %vm237, %v147, 0
  %v608 = vsel %vm237, %v148, 0
  %v611 = vsel %vm237, %v149, 0
  %v614 = vsel %vm237, %v150, 0
  %v617 = vsel %vm237, %v151, 0
  %v620 = vsel %vm237, %v152, 0
  %v623 = vsel %vm237, %v153, 0
  %v626 = vsel %vm237, %v154, 0
  %v629 = vsel %vm237, %v155, 0
  %v632 = vsel %vm237, %v156, 0
  %v635 = vsel %vm237, %v157, 0
  %v638 = vsel %vm237, %v158, 0
  %v641 = vsel %vm237, %v159, 0
  %v644 = vsel %vm237, %v160, 0
  %v647 = vsel %vm237, %v161, 0
  %v650 = vsel %vm237, %v162, 0
  %v653 = vsel %vm237, %v163, 0
  %v656 = vsel %vm237, %v164, 0
  %v659 = vsel %vm237, %v165, 0
  %v662 = vsel %vm237, %v166, 0
  %v665 = vsel %vm237, %v167, 0
  %v668 = vsel %vm237, %v168, 0
  %v671 = vsel %vm237, %v169, 0
  %v674 = vsel %vm237, %v170, 0
  %v677 = vsel %vm237, %v171, 0
  %v680 = vsel %vm237, %v172, 0
  %v683 = vsel %vm237, %v173, 0
  %v686 = vsel %vm237, %v174, 0
  %v689 = vsel %vm237, %v175, 0
  %v692 = vsel %vm237, %v176, 0
  %v695 = vsel %vm237, %v177, 0
  %v698 = vsel %vm237, %v178, 0
  %v701 = vsel %vm237, %v179, 0
  %v704 = vsel %vm237, %v180, 0
  %v707 = vsel %vm237, %v181, 0
  %v710 = vsel %vm237, %v182, 0
  %v713 = vsel %vm237, %v183, 0
  %v716 = vsel %vm237, %v184, 0
  %v719 = vsel %vm237, %v185, 0
  %v722 = vsel %vm237, %v186, 0
  %v725 = vsel %vm237, %v187, 0
  %v728 = vsel %vm237, %v188, 0
  %v731 = vsel %vm237, %v189, 0
  %v734 = vsel %vm237, %v190, 0
  %v737 = vsel %vm237, %v191, 0
  %v740 = vsel %vm237, %v192, 0
  %v743 = vsel %vm237, %v193, 0
  %v746 = vsel %vm237, %v194, 0
  %v749 = vsel %vm237, %v195, 0
  %v752 = vsel %vm237, %v196, 0
  %v755 = vsel %vm237, %v197, 0
  %v758 = vsel %vm237, %v198, 0
  %v761 = vsel %vm237, %v199, 0
  %v764 = vsel %vm237, %v200, 0
  %v767 = vsel %vm237, %v201, 0
  %v770 = vsel %vm237, %v202, 0
  %v773 = vsel %vm237, %v203, 0
  %v776 = vsel %vm237, %v204, 0
  %v779 = vsel %vm237, %v205, 0
  %v782 = vsel %vm237, %v206, 0
  %v785 = vsel %vm237, %v207, 0
  %v788 = vsel %vm237, %v208, 0
  %v791 = vsel %vm237, %v209, 0
  %v794 = vsel %vm237, %v210, 0
  %v797 = vsel %vm237, %v211, 0
  %v800 = vsel %vm237, %v212, 0
  %v803 = vsel %vm237, %v213, 0
  %v806 = vsel %vm237, %v214, 0
  %v809 = vsel %vm237, %v215, 0
  %v812 = vsel %vm237, %v216, 0
  %v815 = vsel %vm237, %v217, 0
  %v818 = vsel %vm237, %v218, 0
  %v821 = vsel %vm237, %v219, 0
  %v824 = vsel %vm237, %v220, 0
  %v827 = vsel %vm237, %v221, 0
  %v830 = vsel %vm237, %v222, 0
  %v833 = vsel %vm237, %v223, 0
  %v836 = vsel %vm237, %v224, 0
  %v839 = vsel %vm237, %v225, 0
  %v842 = vsel %vm237, %v226, 0
  %v845 = vsel %vm237, %v227, 0
  %v848 = vsel %vm237, %v228, 0
  %v851 = vsel %vm237, %v229, 0
  %v854 = vsel %vm237, %v230, 0
  %v857 = vsel %vm237, %v231, 0
  %v860 = vsel %vm237, %v232, 0
  %862 = vmatpush.msra.mxu0 0.0
  %863 = vmatpush.msra.mxu0 0.0
  %864 = vmatpush.msra.mxu0 0.0
  %865 = vmatpush.msra.mxu0 0.0
  %866 = vmatpush.msra.mxu0 0.0
  %867 = vmatpush.msra.mxu0 0.0
  %868 = vmatpush.msra.mxu0 0.0
  %869 = vmatpush.msra.mxu0 0.0
  %870 = vmatpush.msra.mxu0 0.0
  %871 = vmatpush.msra.mxu0 0.0
  %872 = vmatpush.msra.mxu0 0.0
  %873 = vmatpush.msra.mxu0 0.0
  %874 = vmatpush.msra.mxu0 %v236
  %875 = vmatpush.msra.mxu0 %v235
  %876 = vmatpush.msra.mxu0 %v234
  %877 = vmatpush.msra.mxu0 %v233
  %878 = vmatmul.f32.gmra.mxu0 %v239
  %v879 = vpop.f32.mrf.mxu0
  %v880 = vadd.f32 0.0, %v879
  %881 = vmatmul.f32.gmra.mxu0 %v242
  %v882 = vpop.f32.mrf.mxu0
  %v883 = vadd.f32 0.0, %v882
  %884 = vmatmul.f32.gmra.mxu0 %v245
  %v885 = vpop.f32.mrf.mxu0
  %v886 = vadd.f32 0.0, %v885
  %887 = vmatmul.f32.gmra.mxu0 %v248
  %v888 = vpop.f32.mrf.mxu0
  %v889 = vadd.f32 0.0, %v888
  %890 = vmatmul.f32.gmra.mxu0 %v251
  %v891 = vpop.f32.mrf.mxu0
  %v892 = vadd.f32 0.0, %v891
  %893 = vmatmul.f32.gmra.mxu0 %v254
  %v894 = vpop.f32.mrf.mxu0
  %v895 = vadd.f32 0.0, %v894
  %896 = vmatmul.f32.gmra.mxu0 %v257
  %v897 = vpop.f32.mrf.mxu0
  %v898 = vadd.f32 0.0, %v897
  %899 = vmatmul.f32.gmra.mxu0 %v260
  %v900 = vpop.f32.mrf.mxu0
  %v901 = vadd.f32 0.0, %v900
  %902 = vmatmul.f32.gmra.mxu0 %v263
  %v903 = vpop.f32.mrf.mxu0
  %v904 = vadd.f32 0.0, %v903
  %905 = vmatmul.f32.gmra.mxu0 %v266
  %v906 = vpop.f32.mrf.mxu0
  %v907 = vadd.f32 0.0, %v906
  %908 = vmatmul.f32.gmra.mxu0 %v269
  %v909 = vpop.f32.mrf.mxu0
  %v910 = vadd.f32 0.0, %v909
  %911 = vmatmul.f32.gmra.mxu0 %v272
  %v912 = vpop.f32.mrf.mxu0
  %v913 = vadd.f32 0.0, %v912
  %914 = vmatmul.f32.gmra.mxu0 %v275
  %v915 = vpop.f32.mrf.mxu0
  %v916 = vadd.f32 0.0, %v915
  %917 = vmatmul.f32.gmra.mxu0 %v278
  %v918 = vpop.f32.mrf.mxu0
  %v919 = vadd.f32 0.0, %v918
  %920 = vmatmul.f32.gmra.mxu0 %v281
  %v921 = vpop.f32.mrf.mxu0
  %v922 = vadd.f32 0.0, %v921
  %923 = vmatmul.f32.gmra.mxu0 %v284
  %v924 = vpop.f32.mrf.mxu0
  %v925 = vadd.f32 0.0, %v924
  %926 = vmatmul.f32.gmra.mxu0 %v287
  %v927 = vpop.f32.mrf.mxu0
  %v928 = vadd.f32 0.0, %v927
  %929 = vmatmul.f32.gmra.mxu0 %v290
  %v930 = vpop.f32.mrf.mxu0
  %v931 = vadd.f32 0.0, %v930
  %932 = vmatmul.f32.gmra.mxu0 %v293
  %v933 = vpop.f32.mrf.mxu0
  %v934 = vadd.f32 0.0, %v933
  %935 = vmatmul.f32.gmra.mxu0 %v296
  %v936 = vpop.f32.mrf.mxu0
  %v937 = vadd.f32 0.0, %v936
  %938 = vmatmul.f32.gmra.mxu0 %v299
  %v939 = vpop.f32.mrf.mxu0
  %v940 = vadd.f32 0.0, %v939
  %941 = vmatmul.f32.gmra.mxu0 %v302
  %v942 = vpop.f32.mrf.mxu0
  %v943 = vadd.f32 0.0, %v942
  %944 = vmatmul.f32.gmra.mxu0 %v305
  %v945 = vpop.f32.mrf.mxu0
  %v946 = vadd.f32 0.0, %v945
  %947 = vmatmul.f32.gmra.mxu0 %v308
  %v948 = vpop.f32.mrf.mxu0
  %v949 = vadd.f32 0.0, %v948
  %950 = vmatmul.f32.gmra.mxu0 %v311
  %v951 = vpop.f32.mrf.mxu0
  %v952 = vadd.f32 0.0, %v951
  %953 = vmatmul.f32.gmra.mxu0 %v314
  %v954 = vpop.f32.mrf.mxu0
  %v955 = vadd.f32 0.0, %v954
  %956 = vmatmul.f32.gmra.mxu0 %v317
  %v957 = vpop.f32.mrf.mxu0
  %v958 = vadd.f32 0.0, %v957
  %959 = vmatmul.f32.gmra.mxu0 %v320
  %v960 = vpop.f32.mrf.mxu0
  %v961 = vadd.f32 0.0, %v960
  %962 = vmatmul.f32.gmra.mxu0 %v323
  %v963 = vpop.f32.mrf.mxu0
  %v964 = vadd.f32 0.0, %v963
  %965 = vmatmul.f32.gmra.mxu0 %v326
  %v966 = vpop.f32.mrf.mxu0
  %v967 = vadd.f32 0.0, %v966
  %968 = vmatmul.f32.gmra.mxu0 %v329
  %v969 = vpop.f32.mrf.mxu0
  %v970 = vadd.f32 0.0, %v969
  %971 = vmatmul.f32.gmra.mxu0 %v332
  %v972 = vpop.f32.mrf.mxu0
  %v973 = vadd.f32 0.0, %v972
  %974 = vmatmul.f32.gmra.mxu0 %v335
  %v975 = vpop.f32.mrf.mxu0
  %v976 = vadd.f32 0.0, %v975
  %977 = vmatmul.f32.gmra.mxu0 %v338
  %v978 = vpop.f32.mrf.mxu0
  %v979 = vadd.f32 0.0, %v978
  %980 = vmatmul.f32.gmra.mxu0 %v341
  %v981 = vpop.f32.mrf.mxu0
  %v982 = vadd.f32 0.0, %v981
  %983 = vmatmul.f32.gmra.mxu0 %v344
  %v984 = vpop.f32.mrf.mxu0
  %v985 = vadd.f32 0.0, %v984
  %986 = vmatmul.f32.gmra.mxu0 %v347
  %v987 = vpop.f32.mrf.mxu0
  %v988 = vadd.f32 0.0, %v987
  %989 = vmatmul.f32.gmra.mxu0 %v350
  %v990 = vpop.f32.mrf.mxu0
  %v991 = vadd.f32 0.0, %v990
  %992 = vmatmul.f32.gmra.mxu0 %v353
  %v993 = vpop.f32.mrf.mxu0
  %v994 = vadd.f32 0.0, %v993
  %995 = vmatmul.f32.gmra.mxu0 %v356
  %v996 = vpop.f32.mrf.mxu0
  %v997 = vadd.f32 0.0, %v996
  %998 = vmatmul.f32.gmra.mxu0 %v359
  %v999 = vpop.f32.mrf.mxu0
  %v1000 = vadd.f32 0.0, %v999
  %1001 = vmatmul.f32.gmra.mxu0 %v362
  %v1002 = vpop.f32.mrf.mxu0
  %v1003 = vadd.f32 0.0, %v1002
  %1004 = vmatmul.f32.gmra.mxu0 %v365
  %v1005 = vpop.f32.mrf.mxu0
  %v1006 = vadd.f32 0.0, %v1005
  %1007 = vmatmul.f32.gmra.mxu0 %v368
  %v1008 = vpop.f32.mrf.mxu0
  %v1009 = vadd.f32 0.0, %v1008
  %1010 = vmatmul.f32.gmra.mxu0 %v371
  %v1011 = vpop.f32.mrf.mxu0
  %v1012 = vadd.f32 0.0, %v1011
  %1013 = vmatmul.f32.gmra.mxu0 %v374
  %v1014 = vpop.f32.mrf.mxu0
  %v1015 = vadd.f32 0.0, %v1014
  %1016 = vmatmul.f32.gmra.mxu0 %v377
  %v1017 = vpop.f32.mrf.mxu0
  %v1018 = vadd.f32 0.0, %v1017
  %1019 = vmatmul.f32.gmra.mxu0 %v380
  %v1020 = vpop.f32.mrf.mxu0
  %v1021 = vadd.f32 0.0, %v1020
  %1022 = vmatmul.f32.gmra.mxu0 %v383
  %v1023 = vpop.f32.mrf.mxu0
  %v1024 = vadd.f32 0.0, %v1023
  %1025 = vmatmul.f32.gmra.mxu0 %v386
  %v1026 = vpop.f32.mrf.mxu0
  %v1027 = vadd.f32 0.0, %v1026
  %1028 = vmatmul.f32.gmra.mxu0 %v389
  %v1029 = vpop.f32.mrf.mxu0
  %v1030 = vadd.f32 0.0, %v1029
  %1031 = vmatmul.f32.gmra.mxu0 %v392
  %v1032 = vpop.f32.mrf.mxu0
  %v1033 = vadd.f32 0.0, %v1032
  %1034 = vmatmul.f32.gmra.mxu0 %v395
  %v1035 = vpop.f32.mrf.mxu0
  %v1036 = vadd.f32 0.0, %v1035
  %1037 = vmatmul.f32.gmra.mxu0 %v398
  %v1038 = vpop.f32.mrf.mxu0
  %v1039 = vadd.f32 0.0, %v1038
  %1040 = vmatmul.f32.gmra.mxu0 %v401
  %v1041 = vpop.f32.mrf.mxu0
  %v1042 = vadd.f32 0.0, %v1041
  %1043 = vmatmul.f32.gmra.mxu0 %v404
  %v1044 = vpop.f32.mrf.mxu0
  %v1045 = vadd.f32 0.0, %v1044
  %1046 = vmatmul.f32.gmra.mxu0 %v407
  %v1047 = vpop.f32.mrf.mxu0
  %v1048 = vadd.f32 0.0, %v1047
  %1049 = vmatmul.f32.gmra.mxu0 %v410
  %v1050 = vpop.f32.mrf.mxu0
  %v1051 = vadd.f32 0.0, %v1050
  %1052 = vmatmul.f32.gmra.mxu0 %v413
  %v1053 = vpop.f32.mrf.mxu0
  %v1054 = vadd.f32 0.0, %v1053
  %1055 = vmatmul.f32.gmra.mxu0 %v416
  %v1056 = vpop.f32.mrf.mxu0
  %v1057 = vadd.f32 0.0, %v1056
  %1058 = vmatmul.f32.gmra.mxu0 %v419
  %v1059 = vpop.f32.mrf.mxu0
  %v1060 = vadd.f32 0.0, %v1059
  %1061 = vmatmul.f32.gmra.mxu0 %v422
  %v1062 = vpop.f32.mrf.mxu0
  %v1063 = vadd.f32 0.0, %v1062
  %1064 = vmatmul.f32.gmra.mxu0 %v425
  %v1065 = vpop.f32.mrf.mxu0
  %v1066 = vadd.f32 0.0, %v1065
  %1067 = vmatmul.f32.gmra.mxu0 %v428
  %v1068 = vpop.f32.mrf.mxu0
  %v1069 = vadd.f32 0.0, %v1068
  %1070 = vmatmul.f32.gmra.mxu0 %v431
  %v1071 = vpop.f32.mrf.mxu0
  %v1072 = vadd.f32 0.0, %v1071
  %1073 = vmatmul.f32.gmra.mxu0 %v434
  %v1074 = vpop.f32.mrf.mxu0
  %v1075 = vadd.f32 0.0, %v1074
  %1076 = vmatmul.f32.gmra.mxu0 %v437
  %v1077 = vpop.f32.mrf.mxu0
  %v1078 = vadd.f32 0.0, %v1077
  %1079 = vmatmul.f32.gmra.mxu0 %v440
  %v1080 = vpop.f32.mrf.mxu0
  %v1081 = vadd.f32 0.0, %v1080
  %1082 = vmatmul.f32.gmra.mxu0 %v443
  %v1083 = vpop.f32.mrf.mxu0
  %v1084 = vadd.f32 0.0, %v1083
  %1085 = vmatmul.f32.gmra.mxu0 %v446
  %v1086 = vpop.f32.mrf.mxu0
  %v1087 = vadd.f32 0.0, %v1086
  %1088 = vmatmul.f32.gmra.mxu0 %v449
  %v1089 = vpop.f32.mrf.mxu0
  %v1090 = vadd.f32 0.0, %v1089
  %1091 = vmatmul.f32.gmra.mxu0 %v452
  %v1092 = vpop.f32.mrf.mxu0
  %v1093 = vadd.f32 0.0, %v1092
  %1094 = vmatmul.f32.gmra.mxu0 %v455
  %v1095 = vpop.f32.mrf.mxu0
  %v1096 = vadd.f32 0.0, %v1095
  %1097 = vmatmul.f32.gmra.mxu0 %v458
  %v1098 = vpop.f32.mrf.mxu0
  %v1099 = vadd.f32 0.0, %v1098
  %1100 = vmatmul.f32.gmra.mxu0 %v461
  %v1101 = vpop.f32.mrf.mxu0
  %v1102 = vadd.f32 0.0, %v1101
  %1103 = vmatmul.f32.gmra.mxu0 %v464
  %v1104 = vpop.f32.mrf.mxu0
  %v1105 = vadd.f32 0.0, %v1104
  %1106 = vmatmul.f32.gmra.mxu0 %v467
  %v1107 = vpop.f32.mrf.mxu0
  %v1108 = vadd.f32 0.0, %v1107
  %1109 = vmatmul.f32.gmra.mxu0 %v470
  %v1110 = vpop.f32.mrf.mxu0
  %v1111 = vadd.f32 0.0, %v1110
  %1112 = vmatmul.f32.gmra.mxu0 %v473
  %v1113 = vpop.f32.mrf.mxu0
  %v1114 = vadd.f32 0.0, %v1113
  %1115 = vmatmul.f32.gmra.mxu0 %v476
  %v1116 = vpop.f32.mrf.mxu0
  %v1117 = vadd.f32 0.0, %v1116
  %1118 = vmatmul.f32.gmra.mxu0 %v479
  %v1119 = vpop.f32.mrf.mxu0
  %v1120 = vadd.f32 0.0, %v1119
  %1121 = vmatmul.f32.gmra.mxu0 %v482
  %v1122 = vpop.f32.mrf.mxu0
  %v1123 = vadd.f32 0.0, %v1122
  %1124 = vmatmul.f32.gmra.mxu0 %v485
  %v1125 = vpop.f32.mrf.mxu0
  %v1126 = vadd.f32 0.0, %v1125
  %1127 = vmatmul.f32.gmra.mxu0 %v488
  %v1128 = vpop.f32.mrf.mxu0
  %v1129 = vadd.f32 0.0, %v1128
  %1130 = vmatmul.f32.gmra.mxu0 %v491
  %v1131 = vpop.f32.mrf.mxu0
  %v1132 = vadd.f32 0.0, %v1131
  %1133 = vmatmul.f32.gmra.mxu0 %v494
  %v1134 = vpop.f32.mrf.mxu0
  %v1135 = vadd.f32 0.0, %v1134
  %1136 = vmatmul.f32.gmra.mxu0 %v497
  %v1137 = vpop.f32.mrf.mxu0
  %v1138 = vadd.f32 0.0, %v1137
  %1139 = vmatmul.f32.gmra.mxu0 %v500
  %v1140 = vpop.f32.mrf.mxu0
  %v1141 = vadd.f32 0.0, %v1140
  %1142 = vmatmul.f32.gmra.mxu0 %v503
  %v1143 = vpop.f32.mrf.mxu0
  %v1144 = vadd.f32 0.0, %v1143
  %1145 = vmatmul.f32.gmra.mxu0 %v506
  %v1146 = vpop.f32.mrf.mxu0
  %v1147 = vadd.f32 0.0, %v1146
  %1148 = vmatmul.f32.gmra.mxu0 %v509
  %v1149 = vpop.f32.mrf.mxu0
  %v1150 = vadd.f32 0.0, %v1149
  %1151 = vmatmul.f32.gmra.mxu0 %v512
  %v1152 = vpop.f32.mrf.mxu0
  %v1153 = vadd.f32 0.0, %v1152
  %1154 = vmatmul.f32.gmra.mxu0 %v515
  %v1155 = vpop.f32.mrf.mxu0
  %v1156 = vadd.f32 0.0, %v1155
  %1157 = vmatmul.f32.gmra.mxu0 %v518
  %v1158 = vpop.f32.mrf.mxu0
  %v1159 = vadd.f32 0.0, %v1158
  %1160 = vmatmul.f32.gmra.mxu0 %v521
  %v1161 = vpop.f32.mrf.mxu0
  %v1162 = vadd.f32 0.0, %v1161
  %1163 = vmatmul.f32.gmra.mxu0 %v524
  %v1164 = vpop.f32.mrf.mxu0
  %v1165 = vadd.f32 0.0, %v1164
  %1166 = vmatmul.f32.gmra.mxu0 %v527
  %v1167 = vpop.f32.mrf.mxu0
  %v1168 = vadd.f32 0.0, %v1167
  %1169 = vmatmul.f32.gmra.mxu0 %v530
  %v1170 = vpop.f32.mrf.mxu0
  %v1171 = vadd.f32 0.0, %v1170
  %1172 = vmatmul.f32.gmra.mxu0 %v533
  %v1173 = vpop.f32.mrf.mxu0
  %v1174 = vadd.f32 0.0, %v1173
  %1175 = vmatmul.f32.gmra.mxu0 %v536
  %v1176 = vpop.f32.mrf.mxu0
  %v1177 = vadd.f32 0.0, %v1176
  %1178 = vmatmul.f32.gmra.mxu0 %v539
  %v1179 = vpop.f32.mrf.mxu0
  %v1180 = vadd.f32 0.0, %v1179
  %1181 = vmatmul.f32.gmra.mxu0 %v542
  %v1182 = vpop.f32.mrf.mxu0
  %v1183 = vadd.f32 0.0, %v1182
  %1184 = vmatmul.f32.gmra.mxu0 %v545
  %v1185 = vpop.f32.mrf.mxu0
  %v1186 = vadd.f32 0.0, %v1185
  %1187 = vmatmul.f32.gmra.mxu0 %v548
  %v1188 = vpop.f32.mrf.mxu0
  %v1189 = vadd.f32 0.0, %v1188
  %1190 = vmatmul.f32.gmra.mxu0 %v551
  %v1191 = vpop.f32.mrf.mxu0
  %v1192 = vadd.f32 0.0, %v1191
  %1193 = vmatmul.f32.gmra.mxu0 %v554
  %v1194 = vpop.f32.mrf.mxu0
  %v1195 = vadd.f32 0.0, %v1194
  %1196 = vmatmul.f32.gmra.mxu0 %v557
  %v1197 = vpop.f32.mrf.mxu0
  %v1198 = vadd.f32 0.0, %v1197
  %1199 = vmatmul.f32.gmra.mxu0 %v560
  %v1200 = vpop.f32.mrf.mxu0
  %v1201 = vadd.f32 0.0, %v1200
  %1202 = vmatmul.f32.gmra.mxu0 %v563
  %v1203 = vpop.f32.mrf.mxu0
  %v1204 = vadd.f32 0.0, %v1203
  %1205 = vmatmul.f32.gmra.mxu0 %v566
  %v1206 = vpop.f32.mrf.mxu0
  %v1207 = vadd.f32 0.0, %v1206
  %1208 = vmatmul.f32.gmra.mxu0 %v569
  %v1209 = vpop.f32.mrf.mxu0
  %v1210 = vadd.f32 0.0, %v1209
  %1211 = vmatmul.f32.gmra.mxu0 %v572
  %v1212 = vpop.f32.mrf.mxu0
  %v1213 = vadd.f32 0.0, %v1212
  %1214 = vmatmul.f32.gmra.mxu0 %v575
  %v1215 = vpop.f32.mrf.mxu0
  %v1216 = vadd.f32 0.0, %v1215
  %1217 = vmatmul.f32.gmra.mxu0 %v578
  %v1218 = vpop.f32.mrf.mxu0
  %v1219 = vadd.f32 0.0, %v1218
  %1220 = vmatmul.f32.gmra.mxu0 %v581
  %v1221 = vpop.f32.mrf.mxu0
  %v1222 = vadd.f32 0.0, %v1221
  %1223 = vmatmul.f32.gmra.mxu0 %v584
  %v1224 = vpop.f32.mrf.mxu0
  %v1225 = vadd.f32 0.0, %v1224
  %1226 = vmatmul.f32.gmra.mxu0 %v587
  %v1227 = vpop.f32.mrf.mxu0
  %v1228 = vadd.f32 0.0, %v1227
  %1229 = vmatmul.f32.gmra.mxu0 %v590
  %v1230 = vpop.f32.mrf.mxu0
  %v1231 = vadd.f32 0.0, %v1230
  %1232 = vmatmul.f32.gmra.mxu0 %v593
  %v1233 = vpop.f32.mrf.mxu0
  %v1234 = vadd.f32 0.0, %v1233
  %1235 = vmatmul.f32.gmra.mxu0 %v596
  %v1236 = vpop.f32.mrf.mxu0
  %v1237 = vadd.f32 0.0, %v1236
  %1238 = vmatmul.f32.gmra.mxu0 %v599
  %v1239 = vpop.f32.mrf.mxu0
  %v1240 = vadd.f32 0.0, %v1239
  %1241 = vmatmul.f32.gmra.mxu0 %v602
  %v1242 = vpop.f32.mrf.mxu0
  %v1243 = vadd.f32 0.0, %v1242
  %1244 = vmatmul.f32.gmra.mxu0 %v605
  %v1245 = vpop.f32.mrf.mxu0
  %v1246 = vadd.f32 0.0, %v1245
  %1247 = vmatmul.f32.gmra.mxu0 %v608
  %v1248 = vpop.f32.mrf.mxu0
  %v1249 = vadd.f32 0.0, %v1248
  %1250 = vmatmul.f32.gmra.mxu0 %v611
  %v1251 = vpop.f32.mrf.mxu0
  %v1252 = vadd.f32 0.0, %v1251
  %1253 = vmatmul.f32.gmra.mxu0 %v614
  %v1254 = vpop.f32.mrf.mxu0
  %v1255 = vadd.f32 0.0, %v1254
  %1256 = vmatmul.f32.gmra.mxu0 %v617
  %v1257 = vpop.f32.mrf.mxu0
  %v1258 = vadd.f32 0.0, %v1257
  %1259 = vmatmul.f32.gmra.mxu0 %v620
  %v1260 = vpop.f32.mrf.mxu0
  %v1261 = vadd.f32 0.0, %v1260
  %1262 = vmatmul.f32.gmra.mxu0 %v623
  %v1263 = vpop.f32.mrf.mxu0
  %v1264 = vadd.f32 0.0, %v1263
  %1265 = vmatmul.f32.gmra.mxu0 %v626
  %v1266 = vpop.f32.mrf.mxu0
  %v1267 = vadd.f32 0.0, %v1266
  %1268 = vmatmul.f32.gmra.mxu0 %v629
  %v1269 = vpop.f32.mrf.mxu0
  %v1270 = vadd.f32 0.0, %v1269
  %1271 = vmatmul.f32.gmra.mxu0 %v632
  %v1272 = vpop.f32.mrf.mxu0
  %v1273 = vadd.f32 0.0, %v1272
  %1274 = vmatmul.f32.gmra.mxu0 %v635
  %v1275 = vpop.f32.mrf.mxu0
  %v1276 = vadd.f32 0.0, %v1275
  %1277 = vmatmul.f32.gmra.mxu0 %v638
  %v1278 = vpop.f32.mrf.mxu0
  %v1279 = vadd.f32 0.0, %v1278
  %1280 = vmatmul.f32.gmra.mxu0 %v641
  %v1281 = vpop.f32.mrf.mxu0
  %v1282 = vadd.f32 0.0, %v1281
  %1283 = vmatmul.f32.gmra.mxu0 %v644
  %v1284 = vpop.f32.mrf.mxu0
  %v1285 = vadd.f32 0.0, %v1284
  %1286 = vmatmul.f32.gmra.mxu0 %v647
  %v1287 = vpop.f32.mrf.mxu0
  %v1288 = vadd.f32 0.0, %v1287
  %1289 = vmatmul.f32.gmra.mxu0 %v650
  %v1290 = vpop.f32.mrf.mxu0
  %v1291 = vadd.f32 0.0, %v1290
  %1292 = vmatmul.f32.gmra.mxu0 %v653
  %v1293 = vpop.f32.mrf.mxu0
  %v1294 = vadd.f32 0.0, %v1293
  %1295 = vmatmul.f32.gmra.mxu0 %v656
  %v1296 = vpop.f32.mrf.mxu0
  %v1297 = vadd.f32 0.0, %v1296
  %1298 = vmatmul.f32.gmra.mxu0 %v659
  %v1299 = vpop.f32.mrf.mxu0
  %v1300 = vadd.f32 0.0, %v1299
  %1301 = vmatmul.f32.gmra.mxu0 %v662
  %v1302 = vpop.f32.mrf.mxu0
  %v1303 = vadd.f32 0.0, %v1302
  %1304 = vmatmul.f32.gmra.mxu0 %v665
  %v1305 = vpop.f32.mrf.mxu0
  %v1306 = vadd.f32 0.0, %v1305
  %1307 = vmatmul.f32.gmra.mxu0 %v668
  %v1308 = vpop.f32.mrf.mxu0
  %v1309 = vadd.f32 0.0, %v1308
  %1310 = vmatmul.f32.gmra.mxu0 %v671
  %v1311 = vpop.f32.mrf.mxu0
  %v1312 = vadd.f32 0.0, %v1311
  %1313 = vmatmul.f32.gmra.mxu0 %v674
  %v1314 = vpop.f32.mrf.mxu0
  %v1315 = vadd.f32 0.0, %v1314
  %1316 = vmatmul.f32.gmra.mxu0 %v677
  %v1317 = vpop.f32.mrf.mxu0
  %v1318 = vadd.f32 0.0, %v1317
  %1319 = vmatmul.f32.gmra.mxu0 %v680
  %v1320 = vpop.f32.mrf.mxu0
  %v1321 = vadd.f32 0.0, %v1320
  %1322 = vmatmul.f32.gmra.mxu0 %v683
  %v1323 = vpop.f32.mrf.mxu0
  %v1324 = vadd.f32 0.0, %v1323
  %1325 = vmatmul.f32.gmra.mxu0 %v686
  %v1326 = vpop.f32.mrf.mxu0
  %v1327 = vadd.f32 0.0, %v1326
  %1328 = vmatmul.f32.gmra.mxu0 %v689
  %v1329 = vpop.f32.mrf.mxu0
  %v1330 = vadd.f32 0.0, %v1329
  %1331 = vmatmul.f32.gmra.mxu0 %v692
  %v1332 = vpop.f32.mrf.mxu0
  %v1333 = vadd.f32 0.0, %v1332
  %1334 = vmatmul.f32.gmra.mxu0 %v695
  %v1335 = vpop.f32.mrf.mxu0
  %v1336 = vadd.f32 0.0, %v1335
  %1337 = vmatmul.f32.gmra.mxu0 %v698
  %v1338 = vpop.f32.mrf.mxu0
  %v1339 = vadd.f32 0.0, %v1338
  %1340 = vmatmul.f32.gmra.mxu0 %v701
  %v1341 = vpop.f32.mrf.mxu0
  %v1342 = vadd.f32 0.0, %v1341
  %1343 = vmatmul.f32.gmra.mxu0 %v704
  %v1344 = vpop.f32.mrf.mxu0
  %v1345 = vadd.f32 0.0, %v1344
  %1346 = vmatmul.f32.gmra.mxu0 %v707
  %v1347 = vpop.f32.mrf.mxu0
  %v1348 = vadd.f32 0.0, %v1347
  %1349 = vmatmul.f32.gmra.mxu0 %v710
  %v1350 = vpop.f32.mrf.mxu0
  %v1351 = vadd.f32 0.0, %v1350
  %1352 = vmatmul.f32.gmra.mxu0 %v713
  %v1353 = vpop.f32.mrf.mxu0
  %v1354 = vadd.f32 0.0, %v1353
  %1355 = vmatmul.f32.gmra.mxu0 %v716
  %v1356 = vpop.f32.mrf.mxu0
  %v1357 = vadd.f32 0.0, %v1356
  %1358 = vmatmul.f32.gmra.mxu0 %v719
  %v1359 = vpop.f32.mrf.mxu0
  %v1360 = vadd.f32 0.0, %v1359
  %1361 = vmatmul.f32.gmra.mxu0 %v722
  %v1362 = vpop.f32.mrf.mxu0
  %v1363 = vadd.f32 0.0, %v1362
  %1364 = vmatmul.f32.gmra.mxu0 %v725
  %v1365 = vpop.f32.mrf.mxu0
  %v1366 = vadd.f32 0.0, %v1365
  %1367 = vmatmul.f32.gmra.mxu0 %v728
  %v1368 = vpop.f32.mrf.mxu0
  %v1369 = vadd.f32 0.0, %v1368
  %1370 = vmatmul.f32.gmra.mxu0 %v731
  %v1371 = vpop.f32.mrf.mxu0
  %v1372 = vadd.f32 0.0, %v1371
  %1373 = vmatmul.f32.gmra.mxu0 %v734
  %v1374 = vpop.f32.mrf.mxu0
  %v1375 = vadd.f32 0.0, %v1374
  %1376 = vmatmul.f32.gmra.mxu0 %v737
  %v1377 = vpop.f32.mrf.mxu0
  %v1378 = vadd.f32 0.0, %v1377
  %1379 = vmatmul.f32.gmra.mxu0 %v740
  %v1380 = vpop.f32.mrf.mxu0
  %v1381 = vadd.f32 0.0, %v1380
  %1382 = vmatmul.f32.gmra.mxu0 %v743
  %v1383 = vpop.f32.mrf.mxu0
  %v1384 = vadd.f32 0.0, %v1383
  %1385 = vmatmul.f32.gmra.mxu0 %v746
  %v1386 = vpop.f32.mrf.mxu0
  %v1387 = vadd.f32 0.0, %v1386
  %1388 = vmatmul.f32.gmra.mxu0 %v749
  %v1389 = vpop.f32.mrf.mxu0
  %v1390 = vadd.f32 0.0, %v1389
  %1391 = vmatmul.f32.gmra.mxu0 %v752
  %v1392 = vpop.f32.mrf.mxu0
  %v1393 = vadd.f32 0.0, %v1392
  %1394 = vmatmul.f32.gmra.mxu0 %v755
  %v1395 = vpop.f32.mrf.mxu0
  %v1396 = vadd.f32 0.0, %v1395
  %1397 = vmatmul.f32.gmra.mxu0 %v758
  %v1398 = vpop.f32.mrf.mxu0
  %v1399 = vadd.f32 0.0, %v1398
  %1400 = vmatmul.f32.gmra.mxu0 %v761
  %v1401 = vpop.f32.mrf.mxu0
  %v1402 = vadd.f32 0.0, %v1401
  %1403 = vmatmul.f32.gmra.mxu0 %v764
  %v1404 = vpop.f32.mrf.mxu0
  %v1405 = vadd.f32 0.0, %v1404
  %1406 = vmatmul.f32.gmra.mxu0 %v767
  %v1407 = vpop.f32.mrf.mxu0
  %v1408 = vadd.f32 0.0, %v1407
  %1409 = vmatmul.f32.gmra.mxu0 %v770
  %v1410 = vpop.f32.mrf.mxu0
  %v1411 = vadd.f32 0.0, %v1410
  %1412 = vmatmul.f32.gmra.mxu0 %v773
  %v1413 = vpop.f32.mrf.mxu0
  %v1414 = vadd.f32 0.0, %v1413
  %1415 = vmatmul.f32.gmra.mxu0 %v776
  %v1416 = vpop.f32.mrf.mxu0
  %v1417 = vadd.f32 0.0, %v1416
  %1418 = vmatmul.f32.gmra.mxu0 %v779
  %v1419 = vpop.f32.mrf.mxu0
  %v1420 = vadd.f32 0.0, %v1419
  %1421 = vmatmul.f32.gmra.mxu0 %v782
  %v1422 = vpop.f32.mrf.mxu0
  %v1423 = vadd.f32 0.0, %v1422
  %1424 = vmatmul.f32.gmra.mxu0 %v785
  %v1425 = vpop.f32.mrf.mxu0
  %v1426 = vadd.f32 0.0, %v1425
  %1427 = vmatmul.f32.gmra.mxu0 %v788
  %v1428 = vpop.f32.mrf.mxu0
  %v1429 = vadd.f32 0.0, %v1428
  %1430 = vmatmul.f32.gmra.mxu0 %v791
  %v1431 = vpop.f32.mrf.mxu0
  %v1432 = vadd.f32 0.0, %v1431
  %1433 = vmatmul.f32.gmra.mxu0 %v794
  %v1434 = vpop.f32.mrf.mxu0
  %v1435 = vadd.f32 0.0, %v1434
  %1436 = vmatmul.f32.gmra.mxu0 %v797
  %v1437 = vpop.f32.mrf.mxu0
  %v1438 = vadd.f32 0.0, %v1437
  %1439 = vmatmul.f32.gmra.mxu0 %v800
  %v1440 = vpop.f32.mrf.mxu0
  %v1441 = vadd.f32 0.0, %v1440
  %1442 = vmatmul.f32.gmra.mxu0 %v803
  %v1443 = vpop.f32.mrf.mxu0
  %v1444 = vadd.f32 0.0, %v1443
  %1445 = vmatmul.f32.gmra.mxu0 %v806
  %v1446 = vpop.f32.mrf.mxu0
  %v1447 = vadd.f32 0.0, %v1446
  %1448 = vmatmul.f32.gmra.mxu0 %v809
  %v1449 = vpop.f32.mrf.mxu0
  %v1450 = vadd.f32 0.0, %v1449
  %1451 = vmatmul.f32.gmra.mxu0 %v812
  %v1452 = vpop.f32.mrf.mxu0
  %v1453 = vadd.f32 0.0, %v1452
  %1454 = vmatmul.f32.gmra.mxu0 %v815
  %v1455 = vpop.f32.mrf.mxu0
  %v1456 = vadd.f32 0.0, %v1455
  %1457 = vmatmul.f32.gmra.mxu0 %v818
  %v1458 = vpop.f32.mrf.mxu0
  %v1459 = vadd.f32 0.0, %v1458
  %1460 = vmatmul.f32.gmra.mxu0 %v821
  %v1461 = vpop.f32.mrf.mxu0
  %v1462 = vadd.f32 0.0, %v1461
  %1463 = vmatmul.f32.gmra.mxu0 %v824
  %v1464 = vpop.f32.mrf.mxu0
  %v1465 = vadd.f32 0.0, %v1464
  %1466 = vmatmul.f32.gmra.mxu0 %v827
  %v1467 = vpop.f32.mrf.mxu0
  %v1468 = vadd.f32 0.0, %v1467
  %1469 = vmatmul.f32.gmra.mxu0 %v830
  %v1470 = vpop.f32.mrf.mxu0
  %v1471 = vadd.f32 0.0, %v1470
  %1472 = vmatmul.f32.gmra.mxu0 %v833
  %v1473 = vpop.f32.mrf.mxu0
  %v1474 = vadd.f32 0.0, %v1473
  %1475 = vmatmul.f32.gmra.mxu0 %v836
  %v1476 = vpop.f32.mrf.mxu0
  %v1477 = vadd.f32 0.0, %v1476
  %1478 = vmatmul.f32.gmra.mxu0 %v839
  %v1479 = vpop.f32.mrf.mxu0
  %v1480 = vadd.f32 0.0, %v1479
  %1481 = vmatmul.f32.gmra.mxu0 %v842
  %v1482 = vpop.f32.mrf.mxu0
  %v1483 = vadd.f32 0.0, %v1482
  %1484 = vmatmul.f32.gmra.mxu0 %v845
  %v1485 = vpop.f32.mrf.mxu0
  %v1486 = vadd.f32 0.0, %v1485
  %1487 = vmatmul.f32.gmra.mxu0 %v848
  %v1488 = vpop.f32.mrf.mxu0
  %v1489 = vadd.f32 0.0, %v1488
  %1490 = vmatmul.f32.gmra.mxu0 %v851
  %v1491 = vpop.f32.mrf.mxu0
  %v1492 = vadd.f32 0.0, %v1491
  %1493 = vmatmul.f32.gmra.mxu0 %v854
  %v1494 = vpop.f32.mrf.mxu0
  %v1495 = vadd.f32 0.0, %v1494
  %1496 = vmatmul.f32.gmra.mxu0 %v857
  %v1497 = vpop.f32.mrf.mxu0
  %v1498 = vadd.f32 0.0, %v1497
  %1499 = vmatmul.f32.gmra.mxu0 %v860
  %v1500 = vpop.f32.mrf.mxu0
  %v1501 = vadd.f32 0.0, %v1500
  %1502 = vdwg.mxu0
  %v1503 = vmax.f32 %v880, 0.0
  %v1504 = vmax.f32 %v883, 0.0
  %v1505 = vmax.f32 %v886, 0.0
  %v1506 = vmax.f32 %v889, 0.0
  %v1507 = vmax.f32 %v892, 0.0
  %v1508 = vmax.f32 %v895, 0.0
  %v1509 = vmax.f32 %v898, 0.0
  %v1510 = vmax.f32 %v901, 0.0
  %v1511 = vmax.f32 %v904, 0.0
  %v1512 = vmax.f32 %v907, 0.0
  %v1513 = vmax.f32 %v910, 0.0
  %v1514 = vmax.f32 %v913, 0.0
  %v1515 = vmax.f32 %v916, 0.0
  %v1516 = vmax.f32 %v919, 0.0
  %v1517 = vmax.f32 %v922, 0.0
  %v1518 = vmax.f32 %v925, 0.0
  %v1519 = vmax.f32 %v928, 0.0
  %v1520 = vmax.f32 %v931, 0.0
  %v1521 = vmax.f32 %v934, 0.0
  %v1522 = vmax.f32 %v937, 0.0
  %v1523 = vmax.f32 %v940, 0.0
  %v1524 = vmax.f32 %v943, 0.0
  %v1525 = vmax.f32 %v946, 0.0
  %v1526 = vmax.f32 %v949, 0.0
  %v1527 = vmax.f32 %v952, 0.0
  %v1528 = vmax.f32 %v955, 0.0
  %v1529 = vmax.f32 %v958, 0.0
  %v1530 = vmax.f32 %v961, 0.0
  %v1531 = vmax.f32 %v964, 0.0
  %v1532 = vmax.f32 %v967, 0.0
  %v1533 = vmax.f32 %v970, 0.0
  %v1534 = vmax.f32 %v973, 0.0
  %v1535 = vmax.f32 %v976, 0.0
  %v1536 = vmax.f32 %v979, 0.0
  %v1537 = vmax.f32 %v982, 0.0
  %v1538 = vmax.f32 %v985, 0.0
  %v1539 = vmax.f32 %v988, 0.0
  %v1540 = vmax.f32 %v991, 0.0
  %v1541 = vmax.f32 %v994, 0.0
  %v1542 = vmax.f32 %v997, 0.0
  %v1543 = vmax.f32 %v1000, 0.0
  %v1544 = vmax.f32 %v1003, 0.0
  %v1545 = vmax.f32 %v1006, 0.0
  %v1546 = vmax.f32 %v1009, 0.0
  %v1547 = vmax.f32 %v1012, 0.0
  %v1548 = vmax.f32 %v1015, 0.0
  %v1549 = vmax.f32 %v1018, 0.0
  %v1550 = vmax.f32 %v1021, 0.0
  %v1551 = vmax.f32 %v1024, 0.0
  %v1552 = vmax.f32 %v1027, 0.0
  %v1553 = vmax.f32 %v1030, 0.0
  %v1554 = vmax.f32 %v1033, 0.0
  %v1555 = vmax.f32 %v1036, 0.0
  %v1556 = vmax.f32 %v1039, 0.0
  %v1557 = vmax.f32 %v1042, 0.0
  %v1558 = vmax.f32 %v1045, 0.0
  %v1559 = vmax.f32 %v1048, 0.0
  %v1560 = vmax.f32 %v1051, 0.0
  %v1561 = vmax.f32 %v1054, 0.0
  %v1562 = vmax.f32 %v1057, 0.0
  %v1563 = vmax.f32 %v1060, 0.0
  %v1564 = vmax.f32 %v1063, 0.0
  %v1565 = vmax.f32 %v1066, 0.0
  %v1566 = vmax.f32 %v1069, 0.0
  %v1567 = vmax.f32 %v1072, 0.0
  %v1568 = vmax.f32 %v1075, 0.0
  %v1569 = vmax.f32 %v1078, 0.0
  %v1570 = vmax.f32 %v1081, 0.0
  %v1571 = vmax.f32 %v1084, 0.0
  %v1572 = vmax.f32 %v1087, 0.0
  %v1573 = vmax.f32 %v1090, 0.0
  %v1574 = vmax.f32 %v1093, 0.0
  %v1575 = vmax.f32 %v1096, 0.0
  %v1576 = vmax.f32 %v1099, 0.0
  %v1577 = vmax.f32 %v1102, 0.0
  %v1578 = vmax.f32 %v1105, 0.0
  %v1579 = vmax.f32 %v1108, 0.0
  %v1580 = vmax.f32 %v1111, 0.0
  %v1581 = vmax.f32 %v1114, 0.0
  %v1582 = vmax.f32 %v1117, 0.0
  %v1583 = vmax.f32 %v1120, 0.0
  %v1584 = vmax.f32 %v1123, 0.0
  %v1585 = vmax.f32 %v1126, 0.0
  %v1586 = vmax.f32 %v1129, 0.0
  %v1587 = vmax.f32 %v1132, 0.0
  %v1588 = vmax.f32 %v1135, 0.0
  %v1589 = vmax.f32 %v1138, 0.0
  %v1590 = vmax.f32 %v1141, 0.0
  %v1591 = vmax.f32 %v1144, 0.0
  %v1592 = vmax.f32 %v1147, 0.0
  %v1593 = vmax.f32 %v1150, 0.0
  %v1594 = vmax.f32 %v1153, 0.0
  %v1595 = vmax.f32 %v1156, 0.0
  %v1596 = vmax.f32 %v1159, 0.0
  %v1597 = vmax.f32 %v1162, 0.0
  %v1598 = vmax.f32 %v1165, 0.0
  %v1599 = vmax.f32 %v1168, 0.0
  %v1600 = vmax.f32 %v1171, 0.0
  %v1601 = vmax.f32 %v1174, 0.0
  %v1602 = vmax.f32 %v1177, 0.0
  %v1603 = vmax.f32 %v1180, 0.0
  %v1604 = vmax.f32 %v1183, 0.0
  %v1605 = vmax.f32 %v1186, 0.0
  %v1606 = vmax.f32 %v1189, 0.0
  %v1607 = vmax.f32 %v1192, 0.0
  %v1608 = vmax.f32 %v1195, 0.0
  %v1609 = vmax.f32 %v1198, 0.0
  %v1610 = vmax.f32 %v1201, 0.0
  %v1611 = vmax.f32 %v1204, 0.0
  %v1612 = vmax.f32 %v1207, 0.0
  %v1613 = vmax.f32 %v1210, 0.0
  %v1614 = vmax.f32 %v1213, 0.0
  %v1615 = vmax.f32 %v1216, 0.0
  %v1616 = vmax.f32 %v1219, 0.0
  %v1617 = vmax.f32 %v1222, 0.0
  %v1618 = vmax.f32 %v1225, 0.0
  %v1619 = vmax.f32 %v1228, 0.0
  %v1620 = vmax.f32 %v1231, 0.0
  %v1621 = vmax.f32 %v1234, 0.0
  %v1622 = vmax.f32 %v1237, 0.0
  %v1623 = vmax.f32 %v1240, 0.0
  %v1624 = vmax.f32 %v1243, 0.0
  %v1625 = vmax.f32 %v1246, 0.0
  %v1626 = vmax.f32 %v1249, 0.0
  %v1627 = vmax.f32 %v1252, 0.0
  %v1628 = vmax.f32 %v1255, 0.0
  %v1629 = vmax.f32 %v1258, 0.0
  %v1630 = vmax.f32 %v1261, 0.0
  %v1631 = vmax.f32 %v1264, 0.0
  %v1632 = vmax.f32 %v1267, 0.0
  %v1633 = vmax.f32 %v1270, 0.0
  %v1634 = vmax.f32 %v1273, 0.0
  %v1635 = vmax.f32 %v1276, 0.0
  %v1636 = vmax.f32 %v1279, 0.0
  %v1637 = vmax.f32 %v1282, 0.0
  %v1638 = vmax.f32 %v1285, 0.0
  %v1639 = vmax.f32 %v1288, 0.0
  %v1640 = vmax.f32 %v1291, 0.0
  %v1641 = vmax.f32 %v1294, 0.0
  %v1642 = vmax.f32 %v1297, 0.0
  %v1643 = vmax.f32 %v1300, 0.0
  %v1644 = vmax.f32 %v1303, 0.0
  %v1645 = vmax.f32 %v1306, 0.0
  %v1646 = vmax.f32 %v1309, 0.0
  %v1647 = vmax.f32 %v1312, 0.0
  %v1648 = vmax.f32 %v1315, 0.0
  %v1649 = vmax.f32 %v1318, 0.0
  %v1650 = vmax.f32 %v1321, 0.0
  %v1651 = vmax.f32 %v1324, 0.0
  %v1652 = vmax.f32 %v1327, 0.0
  %v1653 = vmax.f32 %v1330, 0.0
  %v1654 = vmax.f32 %v1333, 0.0
  %v1655 = vmax.f32 %v1336, 0.0
  %v1656 = vmax.f32 %v1339, 0.0
  %v1657 = vmax.f32 %v1342, 0.0
  %v1658 = vmax.f32 %v1345, 0.0
  %v1659 = vmax.f32 %v1348, 0.0
  %v1660 = vmax.f32 %v1351, 0.0
  %v1661 = vmax.f32 %v1354, 0.0
  %v1662 = vmax.f32 %v1357, 0.0
  %v1663 = vmax.f32 %v1360, 0.0
  %v1664 = vmax.f32 %v1363, 0.0
  %v1665 = vmax.f32 %v1366, 0.0
  %v1666 = vmax.f32 %v1369, 0.0
  %v1667 = vmax.f32 %v1372, 0.0
  %v1668 = vmax.f32 %v1375, 0.0
  %v1669 = vmax.f32 %v1378, 0.0
  %v1670 = vmax.f32 %v1381, 0.0
  %v1671 = vmax.f32 %v1384, 0.0
  %v1672 = vmax.f32 %v1387, 0.0
  %v1673 = vmax.f32 %v1390, 0.0
  %v1674 = vmax.f32 %v1393, 0.0
  %v1675 = vmax.f32 %v1396, 0.0
  %v1676 = vmax.f32 %v1399, 0.0
  %v1677 = vmax.f32 %v1402, 0.0
  %v1678 = vmax.f32 %v1405, 0.0
  %v1679 = vmax.f32 %v1408, 0.0
  %v1680 = vmax.f32 %v1411, 0.0
  %v1681 = vmax.f32 %v1414, 0.0
  %v1682 = vmax.f32 %v1417, 0.0
  %v1683 = vmax.f32 %v1420, 0.0
  %v1684 = vmax.f32 %v1423, 0.0
  %v1685 = vmax.f32 %v1426, 0.0
  %v1686 = vmax.f32 %v1429, 0.0
  %v1687 = vmax.f32 %v1432, 0.0
  %v1688 = vmax.f32 %v1435, 0.0
  %v1689 = vmax.f32 %v1438, 0.0
  %v1690 = vmax.f32 %v1441, 0.0
  %v1691 = vmax.f32 %v1444, 0.0
  %v1692 = vmax.f32 %v1447, 0.0
  %v1693 = vmax.f32 %v1450, 0.0
  %v1694 = vmax.f32 %v1453, 0.0
  %v1695 = vmax.f32 %v1456, 0.0
  %v1696 = vmax.f32 %v1459, 0.0
  %v1697 = vmax.f32 %v1462, 0.0
  %v1698 = vmax.f32 %v1465, 0.0
  %v1699 = vmax.f32 %v1468, 0.0
  %v1700 = vmax.f32 %v1471, 0.0
  %v1701 = vmax.f32 %v1474, 0.0
  %v1702 = vmax.f32 %v1477, 0.0
  %v1703 = vmax.f32 %v1480, 0.0
  %v1704 = vmax.f32 %v1483, 0.0
  %v1705 = vmax.f32 %v1486, 0.0
  %v1706 = vmax.f32 %v1489, 0.0
  %v1707 = vmax.f32 %v1492, 0.0
  %v1708 = vmax.f32 %v1495, 0.0
  %v1709 = vmax.f32 %v1498, 0.0
  %v1710 = vmax.f32 %v1501, 0.0
  %1711 = vst [vmem:[#allocation2] sm:$0xff] %v1503
  %1712 = vst [vmem:[#allocation2 + $0x8] sm:$0xff] %v1504
  %1713 = vst [vmem:[#allocation2 + $0x10] sm:$0xff] %v1505
  %1714 = vst [vmem:[#allocation2 + $0x18] sm:$0xff] %v1506
  %1715 = vst [vmem:[#allocation2 + $0x20] sm:$0xff] %v1507
  %1716 = vst [vmem:[#allocation2 + $0x28] sm:$0xff] %v1508
  %1717 = vst [vmem:[#allocation2 + $0x30] sm:$0xff] %v1509
  %1718 = vst [vmem:[#allocation2 + $0x38] sm:$0xff] %v1510
  %1719 = vst [vmem:[#allocation2 + $0x40] sm:$0xff] %v1511
  %1720 = vst [vmem:[#allocation2 + $0x48] sm:$0xff] %v1512
  %1721 = vst [vmem:[#allocation2 + $0x50] sm:$0xff] %v1513
  %1722 = vst [vmem:[#allocation2 + $0x58] sm:$0xff] %v1514
  %1723 = vst [vmem:[#allocation2 + $0x60] sm:$0xff] %v1515
  %1724 = vst [vmem:[#allocation2 + $0x68] sm:$0xff] %v1516
  %1725 = vst [vmem:[#allocation2 + $0x70] sm:$0xff] %v1517
  %1726 = vst [vmem:[#allocation2 + $0x78] sm:$0xff] %v1518
  %1727 = vst [vmem:[#allocation2 + $0x80] sm:$0xff] %v1519
  %1728 = vst [vmem:[#allocation2 + $0x88] sm:$0xff] %v1520
  %1729 = vst [vmem:[#allocation2 + $0x90] sm:$0xff] %v1521
  %1730 = vst [vmem:[#allocation2 + $0x98] sm:$0xff] %v1522
  %1731 = vst [vmem:[#allocation2 + $0xa0] sm:$0xff] %v1523
  %1732 = vst [vmem:[#allocation2 + $0xa8] sm:$0xff] %v1524
  %1733 = vst [vmem:[#allocation2 + $0xb0] sm:$0xff] %v1525
  %1734 = vst [vmem:[#allocation2 + $0xb8] sm:$0xff] %v1526
  %1735 = vst [vmem:[#allocation2 + $0xc0] sm:$0xff] %v1527
  %1736 = vst [vmem:[#allocation2 + $0xc8] sm:$0xff] %v1528
  %1737 = vst [vmem:[#allocation2 + $0xd0] sm:$0xff] %v1529
  %1738 = vst [vmem:[#allocation2 + $0xd8] sm:$0xff] %v1530
  %1739 = vst [vmem:[#allocation2 + $0xe0] sm:$0xff] %v1531
  %1740 = vst [vmem:[#allocation2 + $0xe8] sm:$0xff] %v1532
  %1741 = vst [vmem:[#allocation2 + $0xf0] sm:$0xff] %v1533
  %1742 = vst [vmem:[#allocation2 + $0xf8] sm:$0xff] %v1534
  %1743 = vst [vmem:[#allocation2 + $0x100] sm:$0xff] %v1535
  %1744 = vst [vmem:[#allocation2 + $0x108] sm:$0xff] %v1536
  %1745 = vst [vmem:[#allocation2 + $0x110] sm:$0xff] %v1537
  %1746 = vst [vmem:[#allocation2 + $0x118] sm:$0xff] %v1538
  %1747 = vst [vmem:[#allocation2 + $0x120] sm:$0xff] %v1539
  %1748 = vst [vmem:[#allocation2 + $0x128] sm:$0xff] %v1540
  %1749 = vst [vmem:[#allocation2 + $0x130] sm:$0xff] %v1541
  %1750 = vst [vmem:[#allocation2 + $0x138] sm:$0xff] %v1542
  %1751 = vst [vmem:[#allocation2 + $0x140] sm:$0xff] %v1543
  %1752 = vst [vmem:[#allocation2 + $0x148] sm:$0xff] %v1544
  %1753 = vst [vmem:[#allocation2 + $0x150] sm:$0xff] %v1545
  %1754 = vst [vmem:[#allocation2 + $0x158] sm:$0xff] %v1546
  %1755 = vst [vmem:[#allocation2 + $0x160] sm:$0xff] %v1547
  %1756 = vst [vmem:[#allocation2 + $0x168] sm:$0xff] %v1548
  %1757 = vst [vmem:[#allocation2 + $0x170] sm:$0xff] %v1549
  %1758 = vst [vmem:[#allocation2 + $0x178] sm:$0xff] %v1550
  %1759 = vst [vmem:[#allocation2 + $0x180] sm:$0xff] %v1551
  %1760 = vst [vmem:[#allocation2 + $0x188] sm:$0xff] %v1552
  %1761 = vst [vmem:[#allocation2 + $0x190] sm:$0xff] %v1553
  %1762 = vst [vmem:[#allocation2 + $0x198] sm:$0xff] %v1554
  %1763 = vst [vmem:[#allocation2 + $0x1a0] sm:$0xff] %v1555
  %1764 = vst [vmem:[#allocation2 + $0x1a8] sm:$0xff] %v1556
  %1765 = vst [vmem:[#allocation2 + $0x1b0] sm:$0xff] %v1557
  %1766 = vst [vmem:[#allocation2 + $0x1b8] sm:$0xff] %v1558
  %1767 = vst [vmem:[#allocation2 + $0x1c0] sm:$0xff] %v1559
  %1768 = vst [vmem:[#allocation2 + $0x1c8] sm:$0xff] %v1560
  %1769 = vst [vmem:[#allocation2 + $0x1d0] sm:$0xff] %v1561
  %1770 = vst [vmem:[#allocation2 + $0x1d8] sm:$0xff] %v1562
  %1771 = vst [vmem:[#allocation2 + $0x1e0] sm:$0xff] %v1563
  %1772 = vst [vmem:[#allocation2 + $0x1e8] sm:$0xff] %v1564
  %1773 = vst [vmem:[#allocation2 + $0x1f0] sm:$0xff] %v1565
  %1774 = vst [vmem:[#allocation2 + $0x1f8] sm:$0xff] %v1566
  %1775 = vst [vmem:[#allocation2 + $0x200] sm:$0xff] %v1567
  %1776 = vst [vmem:[#allocation2 + $0x208] sm:$0xff] %v1568
  %1777 = vst [vmem:[#allocation2 + $0x210] sm:$0xff] %v1569
  %1778 = vst [vmem:[#allocation2 + $0x218] sm:$0xff] %v1570
  %1779 = vst [vmem:[#allocation2 + $0x220] sm:$0xff] %v1571
  %1780 = vst [vmem:[#allocation2 + $0x228] sm:$0xff] %v1572
  %1781 = vst [vmem:[#allocation2 + $0x230] sm:$0xff] %v1573
  %1782 = vst [vmem:[#allocation2 + $0x238] sm:$0xff] %v1574
  %1783 = vst [vmem:[#allocation2 + $0x240] sm:$0xff] %v1575
  %1784 = vst [vmem:[#allocation2 + $0x248] sm:$0xff] %v1576
  %1785 = vst [vmem:[#allocation2 + $0x250] sm:$0xff] %v1577
  %1786 = vst [vmem:[#allocation2 + $0x258] sm:$0xff] %v1578
  %1787 = vst [vmem:[#allocation2 + $0x260] sm:$0xff] %v1579
  %1788 = vst [vmem:[#allocation2 + $0x268] sm:$0xff] %v1580
  %1789 = vst [vmem:[#allocation2 + $0x270] sm:$0xff] %v1581
  %1790 = vst [vmem:[#allocation2 + $0x278] sm:$0xff] %v1582
  %1791 = vst [vmem:[#allocation2 + $0x280] sm:$0xff] %v1583
  %1792 = vst [vmem:[#allocation2 + $0x288] sm:$0xff] %v1584
  %1793 = vst [vmem:[#allocation2 + $0x290] sm:$0xff] %v1585
  %1794 = vst [vmem:[#allocation2 + $0x298] sm:$0xff] %v1586
  %1795 = vst [vmem:[#allocation2 + $0x2a0] sm:$0xff] %v1587
  %1796 = vst [vmem:[#allocation2 + $0x2a8] sm:$0xff] %v1588
  %1797 = vst [vmem:[#allocation2 + $0x2b0] sm:$0xff] %v1589
  %1798 = vst [vmem:[#allocation2 + $0x2b8] sm:$0xff] %v1590
  %1799 = vst [vmem:[#allocation2 + $0x2c0] sm:$0xff] %v1591
  %1800 = vst [vmem:[#allocation2 + $0x2c8] sm:$0xff] %v1592
  %1801 = vst [vmem:[#allocation2 + $0x2d0] sm:$0xff] %v1593
  %1802 = vst [vmem:[#allocation2 + $0x2d8] sm:$0xff] %v1594
  %1803 = vst [vmem:[#allocation2 + $0x2e0] sm:$0xff] %v1595
  %1804 = vst [vmem:[#allocation2 + $0x2e8] sm:$0xff] %v1596
  %1805 = vst [vmem:[#allocation2 + $0x2f0] sm:$0xff] %v1597
  %1806 = vst [vmem:[#allocation2 + $0x2f8] sm:$0xff] %v1598
  %1807 = vst [vmem:[#allocation2 + $0x300] sm:$0xff] %v1599
  %1808 = vst [vmem:[#allocation2 + $0x308] sm:$0xff] %v1600
  %1809 = vst [vmem:[#allocation2 + $0x310] sm:$0xff] %v1601
  %1810 = vst [vmem:[#allocation2 + $0x318] sm:$0xff] %v1602
  %1811 = vst [vmem:[#allocation2 + $0x320] sm:$0xff] %v1603
  %1812 = vst [vmem:[#allocation2 + $0x328] sm:$0xff] %v1604
  %1813 = vst [vmem:[#allocation2 + $0x330] sm:$0xff] %v1605
  %1814 = vst [vmem:[#allocation2 + $0x338] sm:$0xff] %v1606
  %1815 = vst [vmem:[#allocation2 + $0x340] sm:$0xff] %v1607
  %1816 = vst [vmem:[#allocation2 + $0x348] sm:$0xff] %v1608
  %1817 = vst [vmem:[#allocation2 + $0x350] sm:$0xff] %v1609
  %1818 = vst [vmem:[#allocation2 + $0x358] sm:$0xff] %v1610
  %1819 = vst [vmem:[#allocation2 + $0x360] sm:$0xff] %v1611
  %1820 = vst [vmem:[#allocation2 + $0x368] sm:$0xff] %v1612
  %1821 = vst [vmem:[#allocation2 + $0x370] sm:$0xff] %v1613
  %1822 = vst [vmem:[#allocation2 + $0x378] sm:$0xff] %v1614
  %1823 = vst [vmem:[#allocation2 + $0x380] sm:$0xff] %v1615
  %1824 = vst [vmem:[#allocation2 + $0x388] sm:$0xff] %v1616
  %1825 = vst [vmem:[#allocation2 + $0x390] sm:$0xff] %v1617
  %1826 = vst [vmem:[#allocation2 + $0x398] sm:$0xff] %v1618
  %1827 = vst [vmem:[#allocation2 + $0x3a0] sm:$0xff] %v1619
  %1828 = vst [vmem:[#allocation2 + $0x3a8] sm:$0xff] %v1620
  %1829 = vst [vmem:[#allocation2 + $0x3b0] sm:$0xff] %v1621
  %1830 = vst [vmem:[#allocation2 + $0x3b8] sm:$0xff] %v1622
  %1831 = vst [vmem:[#allocation2 + $0x3c0] sm:$0xff] %v1623
  %1832 = vst [vmem:[#allocation2 + $0x3c8] sm:$0xff] %v1624
  %1833 = vst [vmem:[#allocation2 + $0x3d0] sm:$0xff] %v1625
  %1834 = vst [vmem:[#allocation2 + $0x3d8] sm:$0xff] %v1626
  %1835 = vst [vmem:[#allocation2 + $0x3e0] sm:$0xff] %v1627
  %1836 = vst [vmem:[#allocation2 + $0x3e8] sm:$0xff] %v1628
  %1837 = vst [vmem:[#allocation2 + $0x3f0] sm:$0xff] %v1629
  %1838 = vst [vmem:[#allocation2 + $0x3f8] sm:$0xff] %v1630
  %1839 = vst [vmem:[#allocation2 + $0x400] sm:$0xff] %v1631
  %1840 = vst [vmem:[#allocation2 + $0x408] sm:$0xff] %v1632
  %1841 = vst [vmem:[#allocation2 + $0x410] sm:$0xff] %v1633
  %1842 = vst [vmem:[#allocation2 + $0x418] sm:$0xff] %v1634
  %1843 = vst [vmem:[#allocation2 + $0x420] sm:$0xff] %v1635
  %1844 = vst [vmem:[#allocation2 + $0x428] sm:$0xff] %v1636
  %1845 = vst [vmem:[#allocation2 + $0x430] sm:$0xff] %v1637
  %1846 = vst [vmem:[#allocation2 + $0x438] sm:$0xff] %v1638
  %1847 = vst [vmem:[#allocation2 + $0x440] sm:$0xff] %v1639
  %1848 = vst [vmem:[#allocation2 + $0x448] sm:$0xff] %v1640
  %1849 = vst [vmem:[#allocation2 + $0x450] sm:$0xff] %v1641
  %1850 = vst [vmem:[#allocation2 + $0x458] sm:$0xff] %v1642
  %1851 = vst [vmem:[#allocation2 + $0x460] sm:$0xff] %v1643
  %1852 = vst [vmem:[#allocation2 + $0x468] sm:$0xff] %v1644
  %1853 = vst [vmem:[#allocation2 + $0x470] sm:$0xff] %v1645
  %1854 = vst [vmem:[#allocation2 + $0x478] sm:$0xff] %v1646
  %1855 = vst [vmem:[#allocation2 + $0x480] sm:$0xff] %v1647
  %1856 = vst [vmem:[#allocation2 + $0x488] sm:$0xff] %v1648
  %1857 = vst [vmem:[#allocation2 + $0x490] sm:$0xff] %v1649
  %1858 = vst [vmem:[#allocation2 + $0x498] sm:$0xff] %v1650
  %1859 = vst [vmem:[#allocation2 + $0x4a0] sm:$0xff] %v1651
  %1860 = vst [vmem:[#allocation2 + $0x4a8] sm:$0xff] %v1652
  %1861 = vst [vmem:[#allocation2 + $0x4b0] sm:$0xff] %v1653
  %1862 = vst [vmem:[#allocation2 + $0x4b8] sm:$0xff] %v1654
  %1863 = vst [vmem:[#allocation2 + $0x4c0] sm:$0xff] %v1655
  %1864 = vst [vmem:[#allocation2 + $0x4c8] sm:$0xff] %v1656
  %1865 = vst [vmem:[#allocation2 + $0x4d0] sm:$0xff] %v1657
  %1866 = vst [vmem:[#allocation2 + $0x4d8] sm:$0xff] %v1658
  %1867 = vst [vmem:[#allocation2 + $0x4e0] sm:$0xff] %v1659
  %1868 = vst [vmem:[#allocation2 + $0x4e8] sm:$0xff] %v1660
  %1869 = vst [vmem:[#allocation2 + $0x4f0] sm:$0xff] %v1661
  %1870 = vst [vmem:[#allocation2 + $0x4f8] sm:$0xff] %v1662
  %1871 = vst [vmem:[#allocation2 + $0x500] sm:$0xff] %v1663
  %1872 = vst [vmem:[#allocation2 + $0x508] sm:$0xff] %v1664
  %1873 = vst [vmem:[#allocation2 + $0x510] sm:$0xff] %v1665
  %1874 = vst [vmem:[#allocation2 + $0x518] sm:$0xff] %v1666
  %1875 = vst [vmem:[#allocation2 + $0x520] sm:$0xff] %v1667
  %1876 = vst [vmem:[#allocation2 + $0x528] sm:$0xff] %v1668
  %1877 = vst [vmem:[#allocation2 + $0x530] sm:$0xff] %v1669
  %1878 = vst [vmem:[#allocation2 + $0x538] sm:$0xff] %v1670
  %1879 = vst [vmem:[#allocation2 + $0x540] sm:$0xff] %v1671
  %1880 = vst [vmem:[#allocation2 + $0x548] sm:$0xff] %v1672
  %1881 = vst [vmem:[#allocation2 + $0x550] sm:$0xff] %v1673
  %1882 = vst [vmem:[#allocation2 + $0x558] sm:$0xff] %v1674
  %1883 = vst [vmem:[#allocation2 + $0x560] sm:$0xff] %v1675
  %1884 = vst [vmem:[#allocation2 + $0x568] sm:$0xff] %v1676
  %1885 = vst [vmem:[#allocation2 + $0x570] sm:$0xff] %v1677
  %1886 = vst [vmem:[#allocation2 + $0x578] sm:$0xff] %v1678
  %1887 = vst [vmem:[#allocation2 + $0x580] sm:$0xff] %v1679
  %1888 = vst [vmem:[#allocation2 + $0x588] sm:$0xff] %v1680
  %1889 = vst [vmem:[#allocation2 + $0x590] sm:$0xff] %v1681
  %1890 = vst [vmem:[#allocation2 + $0x598] sm:$0xff] %v1682
  %1891 = vst [vmem:[#allocation2 + $0x5a0] sm:$0xff] %v1683
  %1892 = vst [vmem:[#allocation2 + $0x5a8] sm:$0xff] %v1684
  %1893 = vst [vmem:[#allocation2 + $0x5b0] sm:$0xff] %v1685
  %1894 = vst [vmem:[#allocation2 + $0x5b8] sm:$0xff] %v1686
  %1895 = vst [vmem:[#allocation2 + $0x5c0] sm:$0xff] %v1687
  %1896 = vst [vmem:[#allocation2 + $0x5c8] sm:$0xff] %v1688
  %1897 = vst [vmem:[#allocation2 + $0x5d0] sm:$0xff] %v1689
  %1898 = vst [vmem:[#allocation2 + $0x5d8] sm:$0xff] %v1690
  %1899 = vst [vmem:[#allocation2 + $0x5e0] sm:$0xff] %v1691
  %1900 = vst [vmem:[#allocation2 + $0x5e8] sm:$0xff] %v1692
  %1901 = vst [vmem:[#allocation2 + $0x5f0] sm:$0xff] %v1693
  %1902 = vst [vmem:[#allocation2 + $0x5f8] sm:$0xff] %v1694
  %1903 = vst [vmem:[#allocation2 + $0x600] sm:$0xff] %v1695
  %1904 = vst [vmem:[#allocation2 + $0x608] sm:$0xff] %v1696
  %1905 = vst [vmem:[#allocation2 + $0x610] sm:$0xff] %v1697
  %1906 = vst [vmem:[#allocation2 + $0x618] sm:$0xff] %v1698
  %1907 = vst [vmem:[#allocation2 + $0x620] sm:$0xff] %v1699
  %1908 = vst [vmem:[#allocation2 + $0x628] sm:$0xff] %v1700
  %1909 = vst [vmem:[#allocation2 + $0x630] sm:$0xff] %v1701
  %1910 = vst [vmem:[#allocation2 + $0x638] sm:$0xff] %v1702
  %1911 = vst [vmem:[#allocation2 + $0x640] sm:$0xff] %v1703
  %1912 = vst [vmem:[#allocation2 + $0x648] sm:$0xff] %v1704
  %1913 = vst [vmem:[#allocation2 + $0x650] sm:$0xff] %v1705
  %1914 = vst [vmem:[#allocation2 + $0x658] sm:$0xff] %v1706
  %1915 = vst [vmem:[#allocation2 + $0x660] sm:$0xff] %v1707
  %1916 = vst [vmem:[#allocation2 + $0x668] sm:$0xff] %v1708
  %1917 = vst [vmem:[#allocation2 + $0x670] sm:$0xff] %v1709
  %1918 = vst [vmem:[#allocation2 + $0x678] sm:$0xff] %v1710
  %v1919 = vld [vmem:[%s2] sm:$0xff]
  %v1920 = vld [vmem:[%s2 + $0x8] sm:$0xff]
  %v1921 = vld [vmem:[%s2 + $0x10] sm:$0xff]
  %v1922 = vld [vmem:[%s2 + $0x18] sm:$0xff]
  %v1923 = vld [vmem:[%s2 + $0x20] sm:$0xff]
  %v1924 = vld [vmem:[%s2 + $0x28] sm:$0xff]
  %v1925 = vld [vmem:[%s2 + $0x30] sm:$0xff]
  %v1926 = vld [vmem:[%s2 + $0x38] sm:$0xff]
  %v1927 = vld [vmem:[%s2 + $0x40] sm:$0xff]
  %v1928 = vld [vmem:[%s2 + $0x48] sm:$0xff]
  %v1929 = vld [vmem:[%s2 + $0x50] sm:$0xff]
  %v1930 = vld [vmem:[%s2 + $0x58] sm:$0xff]
  %v1931 = vld [vmem:[%s2 + $0x60] sm:$0xff]
  %v1932 = vld [vmem:[%s2 + $0x68] sm:$0xff]
  %v1933 = vld [vmem:[%s2 + $0x70] sm:$0xff]
  %v1934 = vld [vmem:[%s2 + $0x78] sm:$0xff]
  %v1935 = vld [vmem:[%s2 + $0x80] sm:$0xff]
  %v1936 = vld [vmem:[%s2 + $0x88] sm:$0xff]
  %v1937 = vld [vmem:[%s2 + $0x90] sm:$0xff]
  %v1938 = vld [vmem:[%s2 + $0x98] sm:$0xff]
  %v1939 = vld [vmem:[%s2 + $0xa0] sm:$0xff]
  %v1940 = vld [vmem:[%s2 + $0xa8] sm:$0xff]
  %v1941 = vld [vmem:[%s2 + $0xb0] sm:$0xff]
  %v1942 = vld [vmem:[%s2 + $0xb8] sm:$0xff]
  %v1943 = vld [vmem:[%s2 + $0xc0] sm:$0xff]
  %v1944 = vld [vmem:[%s2 + $0xc8] sm:$0xff]
  %v1945 = vld [vmem:[%s2 + $0xd0] sm:$0xff]
  %v1946 = vld [vmem:[%s2 + $0xd8] sm:$0xff]
  %v1947 = vld [vmem:[%s2 + $0xe0] sm:$0xff]
  %v1948 = vld [vmem:[%s2 + $0xe8] sm:$0xff]
  %v1949 = vld [vmem:[%s2 + $0xf0] sm:$0xff]
  %v1950 = vld [vmem:[%s2 + $0xf8] sm:$0xff]
  %v1951 = vld [vmem:[%s2 + $0x100] sm:$0xff]
  %v1952 = vld [vmem:[%s2 + $0x108] sm:$0xff]
  %v1953 = vld [vmem:[%s2 + $0x110] sm:$0xff]
  %v1954 = vld [vmem:[%s2 + $0x118] sm:$0xff]
  %v1955 = vld [vmem:[%s2 + $0x120] sm:$0xff]
  %v1956 = vld [vmem:[%s2 + $0x128] sm:$0xff]
  %v1957 = vld [vmem:[%s2 + $0x130] sm:$0xff]
  %v1958 = vld [vmem:[%s2 + $0x138] sm:$0xff]
  %v1959 = vld [vmem:[%s2 + $0x140] sm:$0xff]
  %v1960 = vld [vmem:[%s2 + $0x148] sm:$0xff]
  %v1961 = vld [vmem:[%s2 + $0x150] sm:$0xff]
  %v1962 = vld [vmem:[%s2 + $0x158] sm:$0xff]
  %v1963 = vld [vmem:[%s2 + $0x160] sm:$0xff]
  %v1964 = vld [vmem:[%s2 + $0x168] sm:$0xff]
  %v1965 = vld [vmem:[%s2 + $0x170] sm:$0xff]
  %v1966 = vld [vmem:[%s2 + $0x178] sm:$0xff]
  %v1967 = vld [vmem:[%s2 + $0x180] sm:$0xff]
  %v1968 = vld [vmem:[%s2 + $0x188] sm:$0xff]
  %v1969 = vld [vmem:[%s2 + $0x190] sm:$0xff]
  %v1970 = vld [vmem:[%s2 + $0x198] sm:$0xff]
  %v1971 = vld [vmem:[%s2 + $0x1a0] sm:$0xff]
  %v1972 = vld [vmem:[%s2 + $0x1a8] sm:$0xff]
  %v1973 = vld [vmem:[%s2 + $0x1b0] sm:$0xff]
  %v1974 = vld [vmem:[%s2 + $0x1b8] sm:$0xff]
  %v1975 = vld [vmem:[%s2 + $0x1c0] sm:$0xff]
  %v1976 = vld [vmem:[%s2 + $0x1c8] sm:$0xff]
  %v1977 = vld [vmem:[%s2 + $0x1d0] sm:$0xff]
  %v1978 = vld [vmem:[%s2 + $0x1d8] sm:$0xff]
  %v1979 = vld [vmem:[%s2 + $0x1e0] sm:$0xff]
  %v1980 = vld [vmem:[%s2 + $0x1e8] sm:$0xff]
  %v1981 = vld [vmem:[%s2 + $0x1f0] sm:$0xff]
  %v1982 = vld [vmem:[%s2 + $0x1f8] sm:$0xff]
  %v1983 = vld [vmem:[%s2 + $0x200] sm:$0xff]
  %v1984 = vld [vmem:[%s2 + $0x208] sm:$0xff]
  %v1985 = vld [vmem:[%s2 + $0x210] sm:$0xff]
  %v1986 = vld [vmem:[%s2 + $0x218] sm:$0xff]
  %v1987 = vld [vmem:[%s2 + $0x220] sm:$0xff]
  %v1988 = vld [vmem:[%s2 + $0x228] sm:$0xff]
  %v1989 = vld [vmem:[%s2 + $0x230] sm:$0xff]
  %v1990 = vld [vmem:[%s2 + $0x238] sm:$0xff]
  %v1991 = vld [vmem:[%s2 + $0x240] sm:$0xff]
  %v1992 = vld [vmem:[%s2 + $0x248] sm:$0xff]
  %v1993 = vld [vmem:[%s2 + $0x250] sm:$0xff]
  %v1994 = vld [vmem:[%s2 + $0x258] sm:$0xff]
  %v1995 = vld [vmem:[%s2 + $0x260] sm:$0xff]
  %v1996 = vld [vmem:[%s2 + $0x268] sm:$0xff]
  %v1997 = vld [vmem:[%s2 + $0x270] sm:$0xff]
  %v1998 = vld [vmem:[%s2 + $0x278] sm:$0xff]
  %v1999 = vld [vmem:[%s2 + $0x280] sm:$0xff]
  %v2000 = vld [vmem:[%s2 + $0x288] sm:$0xff]
  %v2001 = vld [vmem:[%s2 + $0x290] sm:$0xff]
  %v2002 = vld [vmem:[%s2 + $0x298] sm:$0xff]
  %v2003 = vld [vmem:[%s2 + $0x2a0] sm:$0xff]
  %v2004 = vld [vmem:[%s2 + $0x2a8] sm:$0xff]
  %v2005 = vld [vmem:[%s2 + $0x2b0] sm:$0xff]
  %v2006 = vld [vmem:[%s2 + $0x2b8] sm:$0xff]
  %v2007 = vld [vmem:[%s2 + $0x2c0] sm:$0xff]
  %v2008 = vld [vmem:[%s2 + $0x2c8] sm:$0xff]
  %v2009 = vld [vmem:[%s2 + $0x2d0] sm:$0xff]
  %v2010 = vld [vmem:[%s2 + $0x2d8] sm:$0xff]
  %v2011 = vld [vmem:[%s2 + $0x2e0] sm:$0xff]
  %v2012 = vld [vmem:[%s2 + $0x2e8] sm:$0xff]
  %v2013 = vld [vmem:[%s2 + $0x2f0] sm:$0xff]
  %v2014 = vld [vmem:[%s2 + $0x2f8] sm:$0xff]
  %v2015 = vld [vmem:[#allocation2] sm:$0xff]
  %v2016 = vld [vmem:[#allocation2 + $0x8] sm:$0xff]
  %v2017 = vld [vmem:[#allocation2 + $0x10] sm:$0xff]
  %v2018 = vld [vmem:[#allocation2 + $0x18] sm:$0xff]
  %v2019 = vld [vmem:[#allocation2 + $0x20] sm:$0xff]
  %v2020 = vld [vmem:[#allocation2 + $0x28] sm:$0xff]
  %v2021 = vld [vmem:[#allocation2 + $0x30] sm:$0xff]
  %v2022 = vld [vmem:[#allocation2 + $0x38] sm:$0xff]
  %v2023 = vld [vmem:[#allocation2 + $0x40] sm:$0xff]
  %v2024 = vld [vmem:[#allocation2 + $0x48] sm:$0xff]
  %v2025 = vld [vmem:[#allocation2 + $0x50] sm:$0xff]
  %v2026 = vld [vmem:[#allocation2 + $0x58] sm:$0xff]
  %v2027 = vld [vmem:[#allocation2 + $0x60] sm:$0xff]
  %v2028 = vld [vmem:[#allocation2 + $0x68] sm:$0xff]
  %v2029 = vld [vmem:[#allocation2 + $0x70] sm:$0xff]
  %v2030 = vld [vmem:[#allocation2 + $0x78] sm:$0xff]
  %v2031 = vld [vmem:[#allocation2 + $0x80] sm:$0xff]
  %v2032 = vld [vmem:[#allocation2 + $0x88] sm:$0xff]
  %v2033 = vld [vmem:[#allocation2 + $0x90] sm:$0xff]
  %v2034 = vld [vmem:[#allocation2 + $0x98] sm:$0xff]
  %v2035 = vld [vmem:[#allocation2 + $0xa0] sm:$0xff]
  %v2036 = vld [vmem:[#allocation2 + $0xa8] sm:$0xff]
  %v2037 = vld [vmem:[#allocation2 + $0xb0] sm:$0xff]
  %v2038 = vld [vmem:[#allocation2 + $0xb8] sm:$0xff]
  %v2039 = vld [vmem:[#allocation2 + $0xc0] sm:$0xff]
  %v2040 = vld [vmem:[#allocation2 + $0xc8] sm:$0xff]
  %v2041 = vld [vmem:[#allocation2 + $0xd0] sm:$0xff]
  %v2042 = vld [vmem:[#allocation2 + $0xd8] sm:$0xff]
  %v2043 = vld [vmem:[#allocation2 + $0xe0] sm:$0xff]
  %v2044 = vld [vmem:[#allocation2 + $0xe8] sm:$0xff]
  %v2045 = vld [vmem:[#allocation2 + $0xf0] sm:$0xff]
  %v2046 = vld [vmem:[#allocation2 + $0xf8] sm:$0xff]
  %v2047 = vld [vmem:[#allocation2 + $0x100] sm:$0xff]
  %v2048 = vld [vmem:[#allocation2 + $0x108] sm:$0xff]
  %v2049 = vld [vmem:[#allocation2 + $0x110] sm:$0xff]
  %v2050 = vld [vmem:[#allocation2 + $0x118] sm:$0xff]
  %v2051 = vld [vmem:[#allocation2 + $0x120] sm:$0xff]
  %v2052 = vld [vmem:[#allocation2 + $0x128] sm:$0xff]
  %v2053 = vld [vmem:[#allocation2 + $0x130] sm:$0xff]
  %v2054 = vld [vmem:[#allocation2 + $0x138] sm:$0xff]
  %v2055 = vld [vmem:[#allocation2 + $0x140] sm:$0xff]
  %v2056 = vld [vmem:[#allocation2 + $0x148] sm:$0xff]
  %v2057 = vld [vmem:[#allocation2 + $0x150] sm:$0xff]
  %v2058 = vld [vmem:[#allocation2 + $0x158] sm:$0xff]
  %v2059 = vld [vmem:[#allocation2 + $0x160] sm:$0xff]
  %v2060 = vld [vmem:[#allocation2 + $0x168] sm:$0xff]
  %v2061 = vld [vmem:[#allocation2 + $0x170] sm:$0xff]
  %v2062 = vld [vmem:[#allocation2 + $0x178] sm:$0xff]
  %v2063 = vld [vmem:[#allocation2 + $0x180] sm:$0xff]
  %v2064 = vld [vmem:[#allocation2 + $0x188] sm:$0xff]
  %v2065 = vld [vmem:[#allocation2 + $0x190] sm:$0xff]
  %v2066 = vld [vmem:[#allocation2 + $0x198] sm:$0xff]
  %v2067 = vld [vmem:[#allocation2 + $0x1a0] sm:$0xff]
  %v2068 = vld [vmem:[#allocation2 + $0x1a8] sm:$0xff]
  %v2069 = vld [vmem:[#allocation2 + $0x1b0] sm:$0xff]
  %v2070 = vld [vmem:[#allocation2 + $0x1b8] sm:$0xff]
  %v2071 = vld [vmem:[#allocation2 + $0x1c0] sm:$0xff]
  %v2072 = vld [vmem:[#allocation2 + $0x1c8] sm:$0xff]
  %v2073 = vld [vmem:[#allocation2 + $0x1d0] sm:$0xff]
  %v2074 = vld [vmem:[#allocation2 + $0x1d8] sm:$0xff]
  %v2075 = vld [vmem:[#allocation2 + $0x1e0] sm:$0xff]
  %v2076 = vld [vmem:[#allocation2 + $0x1e8] sm:$0xff]
  %v2077 = vld [vmem:[#allocation2 + $0x1f0] sm:$0xff]
  %v2078 = vld [vmem:[#allocation2 + $0x1f8] sm:$0xff]
  %2079 = vmatpush.msra.mxu0 %v2030
  %2080 = vmatpush.msra.mxu0 %v2029
  %2081 = vmatpush.msra.mxu0 %v2028
  %2082 = vmatpush.msra.mxu0 %v2027
  %2083 = vmatpush.msra.mxu0 %v2026
  %2084 = vmatpush.msra.mxu0 %v2025
  %2085 = vmatpush.msra.mxu0 %v2024
  %2086 = vmatpush.msra.mxu0 %v2023
  %2087 = vmatpush.msra.mxu0 %v2022
  %2088 = vmatpush.msra.mxu0 %v2021
  %2089 = vmatpush.msra.mxu0 %v2020
  %2090 = vmatpush.msra.mxu0 %v2019
  %2091 = vmatpush.msra.mxu0 %v2018
  %2092 = vmatpush.msra.mxu0 %v2017
  %2093 = vmatpush.msra.mxu0 %v2016
  %2094 = vmatpush.msra.mxu0 %v2015
  %2095 = vmatmul.f32.gmra.mxu0 %v1919
  %v2096 = vpop.f32.mrf.mxu0
  %v2097 = vadd.f32 0.0, %v2096
  %2098 = vmatmul.f32.gmra.mxu0 %v1923
  %v2099 = vpop.f32.mrf.mxu0
  %v2100 = vadd.f32 0.0, %v2099
  %2101 = vmatmul.f32.gmra.mxu0 %v1927
  %v2102 = vpop.f32.mrf.mxu0
  %v2103 = vadd.f32 0.0, %v2102
  %2104 = vmatmul.f32.gmra.mxu0 %v1931
  %v2105 = vpop.f32.mrf.mxu0
  %v2106 = vadd.f32 0.0, %v2105
  %2107 = vmatmul.f32.gmra.mxu0 %v1935
  %v2108 = vpop.f32.mrf.mxu0
  %v2109 = vadd.f32 0.0, %v2108
  %2110 = vmatmul.f32.gmra.mxu0 %v1939
  %v2111 = vpop.f32.mrf.mxu0
  %v2112 = vadd.f32 0.0, %v2111
  %2113 = vmatmul.f32.gmra.mxu0 %v1943
  %v2114 = vpop.f32.mrf.mxu0
  %v2115 = vadd.f32 0.0, %v2114
  %2116 = vmatmul.f32.gmra.mxu0 %v1947
  %v2117 = vpop.f32.mrf.mxu0
  %v2118 = vadd.f32 0.0, %v2117
  %2119 = vmatmul.f32.gmra.mxu0 %v1951
  %v2120 = vpop.f32.mrf.mxu0
  %v2121 = vadd.f32 0.0, %v2120
  %2122 = vmatmul.f32.gmra.mxu0 %v1955
  %v2123 = vpop.f32.mrf.mxu0
  %v2124 = vadd.f32 0.0, %v2123
  %2125 = vmatmul.f32.gmra.mxu0 %v1959
  %v2126 = vpop.f32.mrf.mxu0
  %v2127 = vadd.f32 0.0, %v2126
  %2128 = vmatmul.f32.gmra.mxu0 %v1963
  %v2129 = vpop.f32.mrf.mxu0
  %v2130 = vadd.f32 0.0, %v2129
  %2131 = vmatmul.f32.gmra.mxu0 %v1967
  %v2132 = vpop.f32.mrf.mxu0
  %v2133 = vadd.f32 0.0, %v2132
  %2134 = vmatmul.f32.gmra.mxu0 %v1971
  %v2135 = vpop.f32.mrf.mxu0
  %v2136 = vadd.f32 0.0, %v2135
  %2137 = vmatmul.f32.gmra.mxu0 %v1975
  %v2138 = vpop.f32.mrf.mxu0
  %v2139 = vadd.f32 0.0, %v2138
  %2140 = vmatmul.f32.gmra.mxu0 %v1979
  %v2141 = vpop.f32.mrf.mxu0
  %v2142 = vadd.f32 0.0, %v2141
  %2143 = vmatmul.f32.gmra.mxu0 %v1983
  %v2144 = vpop.f32.mrf.mxu0
  %v2145 = vadd.f32 0.0, %v2144
  %2146 = vmatmul.f32.gmra.mxu0 %v1987
  %v2147 = vpop.f32.mrf.mxu0
  %v2148 = vadd.f32 0.0, %v2147
  %2149 = vmatmul.f32.gmra.mxu0 %v1991
  %v2150 = vpop.f32.mrf.mxu0
  %v2151 = vadd.f32 0.0, %v2150
  %2152 = vmatmul.f32.gmra.mxu0 %v1995
  %v2153 = vpop.f32.mrf.mxu0
  %v2154 = vadd.f32 0.0, %v2153
  %2155 = vmatmul.f32.gmra.mxu0 %v1999
  %v2156 = vpop.f32.mrf.mxu0
  %v2157 = vadd.f32 0.0, %v2156
  %2158 = vmatmul.f32.gmra.mxu0 %v2003
  %v2159 = vpop.f32.mrf.mxu0
  %v2160 = vadd.f32 0.0, %v2159
  %2161 = vmatmul.f32.gmra.mxu0 %v2007
  %v2162 = vpop.f32.mrf.mxu0
  %v2163 = vadd.f32 0.0, %v2162
  %2164 = vmatmul.f32.gmra.mxu0 %v2011
  %v2165 = vpop.f32.mrf.mxu0
  %v2166 = vadd.f32 0.0, %v2165
  %2167 = vdwg.mxu0
  %2168 = vmatpush.msra.mxu0 %v2046
  %2169 = vmatpush.msra.mxu0 %v2045
  %2170 = vmatpush.msra.mxu0 %v2044
  %2171 = vmatpush.msra.mxu0 %v2043
  %2172 = vmatpush.msra.mxu0 %v2042
  %2173 = vmatpush.msra.mxu0 %v2041
  %2174 = vmatpush.msra.mxu0 %v2040
  %2175 = vmatpush.msra.mxu0 %v2039
  %2176 = vmatpush.msra.mxu0 %v2038
  %2177 = vmatpush.msra.mxu0 %v2037
  %2178 = vmatpush.msra.mxu0 %v2036
  %2179 = vmatpush.msra.mxu0 %v2035
  %2180 = vmatpush.msra.mxu0 %v2034
  %2181 = vmatpush.msra.mxu0 %v2033
  %2182 = vmatpush.msra.mxu0 %v2032
  %2183 = vmatpush.msra.mxu0 %v2031
  %2184 = vmatmul.f32.gmra.mxu0 %v1920
  %v2185 = vpop.f32.mrf.mxu0
  %v2186 = vadd.f32 %v2097, %v2185
  %2187 = vmatmul.f32.gmra.mxu0 %v1924
  %v2188 = vpop.f32.mrf.mxu0
  %v2189 = vadd.f32 %v2100, %v2188
  %2190 = vmatmul.f32.gmra.mxu0 %v1928
  %v2191 = vpop.f32.mrf.mxu0
  %v2192 = vadd.f32 %v2103, %v2191
  %2193 = vmatmul.f32.gmra.mxu0 %v1932
  %v2194 = vpop.f32.mrf.mxu0
  %v2195 = vadd.f32 %v2106, %v2194
  %2196 = vmatmul.f32.gmra.mxu0 %v1936
  %v2197 = vpop.f32.mrf.mxu0
  %v2198 = vadd.f32 %v2109, %v2197
  %2199 = vmatmul.f32.gmra.mxu0 %v1940
  %v2200 = vpop.f32.mrf.mxu0
  %v2201 = vadd.f32 %v2112, %v2200
  %2202 = vmatmul.f32.gmra.mxu0 %v1944
  %v2203 = vpop.f32.mrf.mxu0
  %v2204 = vadd.f32 %v2115, %v2203
  %2205 = vmatmul.f32.gmra.mxu0 %v1948
  %v2206 = vpop.f32.mrf.mxu0
  %v2207 = vadd.f32 %v2118, %v2206
  %2208 = vmatmul.f32.gmra.mxu0 %v1952
  %v2209 = vpop.f32.mrf.mxu0
  %v2210 = vadd.f32 %v2121, %v2209
  %2211 = vmatmul.f32.gmra.mxu0 %v1956
  %v2212 = vpop.f32.mrf.mxu0
  %v2213 = vadd.f32 %v2124, %v2212
  %2214 = vmatmul.f32.gmra.mxu0 %v1960
  %v2215 = vpop.f32.mrf.mxu0
  %v2216 = vadd.f32 %v2127, %v2215
  %2217 = vmatmul.f32.gmra.mxu0 %v1964
  %v2218 = vpop.f32.mrf.mxu0
  %v2219 = vadd.f32 %v2130, %v2218
  %2220 = vmatmul.f32.gmra.mxu0 %v1968
  %v2221 = vpop.f32.mrf.mxu0
  %v2222 = vadd.f32 %v2133, %v2221
  %2223 = vmatmul.f32.gmra.mxu0 %v1972
  %v2224 = vpop.f32.mrf.mxu0
  %v2225 = vadd.f32 %v2136, %v2224
  %2226 = vmatmul.f32.gmra.mxu0 %v1976
  %v2227 = vpop.f32.mrf.mxu0
  %v2228 = vadd.f32 %v2139, %v2227
  %2229 = vmatmul.f32.gmra.mxu0 %v1980
  %v2230 = vpop.f32.mrf.mxu0
  %v2231 = vadd.f32 %v2142, %v2230
  %2232 = vmatmul.f32.gmra.mxu0 %v1984
  %v2233 = vpop.f32.mrf.mxu0
  %v2234 = vadd.f32 %v2145, %v2233
  %2235 = vmatmul.f32.gmra.mxu0 %v1988
  %v2236 = vpop.f32.mrf.mxu0
  %v2237 = vadd.f32 %v2148, %v2236
  %2238 = vmatmul.f32.gmra.mxu0 %v1992
  %v2239 = vpop.f32.mrf.mxu0
  %v2240 = vadd.f32 %v2151, %v2239
  %2241 = vmatmul.f32.gmra.mxu0 %v1996
  %v2242 = vpop.f32.mrf.mxu0
  %v2243 = vadd.f32 %v2154, %v2242
  %2244 = vmatmul.f32.gmra.mxu0 %v2000
  %v2245 = vpop.f32.mrf.mxu0
  %v2246 = vadd.f32 %v2157, %v2245
  %2247 = vmatmul.f32.gmra.mxu0 %v2004
  %v2248 = vpop.f32.mrf.mxu0
  %v2249 = vadd.f32 %v2160, %v2248
  %2250 = vmatmul.f32.gmra.mxu0 %v2008
  %v2251 = vpop.f32.mrf.mxu0
  %v2252 = vadd.f32 %v2163, %v2251
  %2253 = vmatmul.f32.gmra.mxu0 %v2012
  %v2254 = vpop.f32.mrf.mxu0
  %v2255 = vadd.f32 %v2166, %v2254
  %2256 = vdwg.mxu0
  %2257 = vmatpush.msra.mxu0 %v2062
  %2258 = vmatpush.msra.mxu0 %v2061
  %2259 = vmatpush.msra.mxu0 %v2060
  %2260 = vmatpush.msra.mxu0 %v2059
  %2261 = vmatpush.msra.mxu0 %v2058
  %2262 = vmatpush.msra.mxu0 %v2057
  %2263 = vmatpush.msra.mxu0 %v2056
  %2264 = vmatpush.msra.mxu0 %v2055
  %2265 = vmatpush.msra.mxu0 %v2054
  %2266 = vmatpush.msra.mxu0 %v2053
  %2267 = vmatpush.msra.mxu0 %v2052
  %2268 = vmatpush.msra.mxu0 %v2051
  %2269 = vmatpush.msra.mxu0 %v2050
  %2270 = vmatpush.msra.mxu0 %v2049
  %2271 = vmatpush.msra.mxu0 %v2048
  %2272 = vmatpush.msra.mxu0 %v2047
  %2273 = vmatmul.f32.gmra.mxu0 %v1921
  %v2274 = vpop.f32.mrf.mxu0
  %v2275 = vadd.f32 %v2186, %v2274
  %2276 = vmatmul.f32.gmra.mxu0 %v1925
  %v2277 = vpop.f32.mrf.mxu0
  %v2278 = vadd.f32 %v2189, %v2277
  %2279 = vmatmul.f32.gmra.mxu0 %v1929
  %v2280 = vpop.f32.mrf.mxu0
  %v2281 = vadd.f32 %v2192, %v2280
  %2282 = vmatmul.f32.gmra.mxu0 %v1933
  %v2283 = vpop.f32.mrf.mxu0
  %v2284 = vadd.f32 %v2195, %v2283
  %2285 = vmatmul.f32.gmra.mxu0 %v1937
  %v2286 = vpop.f32.mrf.mxu0
  %v2287 = vadd.f32 %v2198, %v2286
  %2288 = vmatmul.f32.gmra.mxu0 %v1941
  %v2289 = vpop.f32.mrf.mxu0
  %v2290 = vadd.f32 %v2201, %v2289
  %2291 = vmatmul.f32.gmra.mxu0 %v1945
  %v2292 = vpop.f32.mrf.mxu0
  %v2293 = vadd.f32 %v2204, %v2292
  %2294 = vmatmul.f32.gmra.mxu0 %v1949
  %v2295 = vpop.f32.mrf.mxu0
  %v2296 = vadd.f32 %v2207, %v2295
  %2297 = vmatmul.f32.gmra.mxu0 %v1953
  %v2298 = vpop.f32.mrf.mxu0
  %v2299 = vadd.f32 %v2210, %v2298
  %2300 = vmatmul.f32.gmra.mxu0 %v1957
  %v2301 = vpop.f32.mrf.mxu0
  %v2302 = vadd.f32 %v2213, %v2301
  %2303 = vmatmul.f32.gmra.mxu0 %v1961
  %v2304 = vpop.f32.mrf.mxu0
  %v2305 = vadd.f32 %v2216, %v2304
  %2306 = vmatmul.f32.gmra.mxu0 %v1965
  %v2307 = vpop.f32.mrf.mxu0
  %v2308 = vadd.f32 %v2219, %v2307
  %2309 = vmatmul.f32.gmra.mxu0 %v1969
  %v2310 = vpop.f32.mrf.mxu0
  %v2311 = vadd.f32 %v2222, %v2310
  %2312 = vmatmul.f32.gmra.mxu0 %v1973
  %v2313 = vpop.f32.mrf.mxu0
  %v2314 = vadd.f32 %v2225, %v2313
  %2315 = vmatmul.f32.gmra.mxu0 %v1977
  %v2316 = vpop.f32.mrf.mxu0
  %v2317 = vadd.f32 %v2228, %v2316
  %2318 = vmatmul.f32.gmra.mxu0 %v1981
  %v2319 = vpop.f32.mrf.mxu0
  %v2320 = vadd.f32 %v2231, %v2319
  %2321 = vmatmul.f32.gmra.mxu0 %v1985
  %v2322 = vpop.f32.mrf.mxu0
  %v2323 = vadd.f32 %v2234, %v2322
  %2324 = vmatmul.f32.gmra.mxu0 %v1989
  %v2325 = vpop.f32.mrf.mxu0
  %v2326 = vadd.f32 %v2237, %v2325
  %2327 = vmatmul.f32.gmra.mxu0 %v1993
  %v2328 = vpop.f32.mrf.mxu0
  %v2329 = vadd.f32 %v2240, %v2328
  %2330 = vmatmul.f32.gmra.mxu0 %v1997
  %v2331 = vpop.f32.mrf.mxu0
  %v2332 = vadd.f32 %v2243, %v2331
  %2333 = vmatmul.f32.gmra.mxu0 %v2001
  %v2334 = vpop.f32.mrf.mxu0
  %v2335 = vadd.f32 %v2246, %v2334
  %2336 = vmatmul.f32.gmra.mxu0 %v2005
  %v2337 = vpop.f32.mrf.mxu0
  %v2338 = vadd.f32 %v2249, %v2337
  %2339 = vmatmul.f32.gmra.mxu0 %v2009
  %v2340 = vpop.f32.mrf.mxu0
  %v2341 = vadd.f32 %v2252, %v2340
  %2342 = vmatmul.f32.gmra.mxu0 %v2013
  %v2343 = vpop.f32.mrf.mxu0
  %v2344 = vadd.f32 %v2255, %v2343
  %2345 = vdwg.mxu0
  %2346 = vmatpush.msra.mxu0 %v2078
  %2347 = vmatpush.msra.mxu0 %v2077
  %2348 = vmatpush.msra.mxu0 %v2076
  %2349 = vmatpush.msra.mxu0 %v2075
  %2350 = vmatpush.msra.mxu0 %v2074
  %2351 = vmatpush.msra.mxu0 %v2073
  %2352 = vmatpush.msra.mxu0 %v2072
  %2353 = vmatpush.msra.mxu0 %v2071
  %2354 = vmatpush.msra.mxu0 %v2070
  %2355 = vmatpush.msra.mxu0 %v2069
  %2356 = vmatpush.msra.mxu0 %v2068
  %2357 = vmatpush.msra.mxu0 %v2067
  %2358 = vmatpush.msra.mxu0 %v2066
  %2359 = vmatpush.msra.mxu0 %v2065
  %2360 = vmatpush.msra.mxu0 %v2064
  %2361 = vmatpush.msra.mxu0 %v2063
  %2362 = vmatmul.f32.gmra.mxu0 %v1922
  %v2363 = vpop.f32.mrf.mxu0
  %v2364 = vadd.f32 %v2275, %v2363
  %2365 = vmatmul.f32.gmra.mxu0 %v1926
  %v2366 = vpop.f32.mrf.mxu0
  %v2367 = vadd.f32 %v2278, %v2366
  %2368 = vmatmul.f32.gmra.mxu0 %v1930
  %v2369 = vpop.f32.mrf.mxu0
  %v2370 = vadd.f32 %v2281, %v2369
  %2371 = vmatmul.f32.gmra.mxu0 %v1934
  %v2372 = vpop.f32.mrf.mxu0
  %v2373 = vadd.f32 %v2284, %v2372
  %2374 = vmatmul.f32.gmra.mxu0 %v1938
  %v2375 = vpop.f32.mrf.mxu0
  %v2376 = vadd.f32 %v2287, %v2375
  %2377 = vmatmul.f32.gmra.mxu0 %v1942
  %v2378 = vpop.f32.mrf.mxu0
  %v2379 = vadd.f32 %v2290, %v2378
  %2380 = vmatmul.f32.gmra.mxu0 %v1946
  %v2381 = vpop.f32.mrf.mxu0
  %v2382 = vadd.f32 %v2293, %v2381
  %2383 = vmatmul.f32.gmra.mxu0 %v1950
  %v2384 = vpop.f32.mrf.mxu0
  %v2385 = vadd.f32 %v2296, %v2384
  %2386 = vmatmul.f32.gmra.mxu0 %v1954
  %v2387 = vpop.f32.mrf.mxu0
  %v2388 = vadd.f32 %v2299, %v2387
  %2389 = vmatmul.f32.gmra.mxu0 %v1958
  %v2390 = vpop.f32.mrf.mxu0
  %v2391 = vadd.f32 %v2302, %v2390
  %2392 = vmatmul.f32.gmra.mxu0 %v1962
  %v2393 = vpop.f32.mrf.mxu0
  %v2394 = vadd.f32 %v2305, %v2393
  %2395 = vmatmul.f32.gmra.mxu0 %v1966
  %v2396 = vpop.f32.mrf.mxu0
  %v2397 = vadd.f32 %v2308, %v2396
  %2398 = vmatmul.f32.gmra.mxu0 %v1970
  %v2399 = vpop.f32.mrf.mxu0
  %v2400 = vadd.f32 %v2311, %v2399
  %2401 = vmatmul.f32.gmra.mxu0 %v1974
  %v2402 = vpop.f32.mrf.mxu0
  %v2403 = vadd.f32 %v2314, %v2402
  %2404 = vmatmul.f32.gmra.mxu0 %v1978
  %v2405 = vpop.f32.mrf.mxu0
  %v2406 = vadd.f32 %v2317, %v2405
  %2407 = vmatmul.f32.gmra.mxu0 %v1982
  %v2408 = vpop.f32.mrf.mxu0
  %v2409 = vadd.f32 %v2320, %v2408
  %2410 = vmatmul.f32.gmra.mxu0 %v1986
  %v2411 = vpop.f32.mrf.mxu0
  %v2412 = vadd.f32 %v2323, %v2411
  %2413 = vmatmul.f32.gmra.mxu0 %v1990
  %v2414 = vpop.f32.mrf.mxu0
  %v2415 = vadd.f32 %v2326, %v2414
  %2416 = vmatmul.f32.gmra.mxu0 %v1994
  %v2417 = vpop.f32.mrf.mxu0
  %v2418 = vadd.f32 %v2329, %v2417
  %2419 = vmatmul.f32.gmra.mxu0 %v1998
  %v2420 = vpop.f32.mrf.mxu0
  %v2421 = vadd.f32 %v2332, %v2420
  %2422 = vmatmul.f32.gmra.mxu0 %v2002
  %v2423 = vpop.f32.mrf.mxu0
  %v2424 = vadd.f32 %v2335, %v2423
  %2425 = vmatmul.f32.gmra.mxu0 %v2006
  %v2426 = vpop.f32.mrf.mxu0
  %v2427 = vadd.f32 %v2338, %v2426
  %2428 = vmatmul.f32.gmra.mxu0 %v2010
  %v2429 = vpop.f32.mrf.mxu0
  %v2430 = vadd.f32 %v2341, %v2429
  %2431 = vmatmul.f32.gmra.mxu0 %v2014
  %v2432 = vpop.f32.mrf.mxu0
  %v2433 = vadd.f32 %v2344, %v2432
  %2434 = vdwg.mxu0
  %v2435 = vld [vmem:[%s3] sm:$0xff]
  %v2436 = vld [vmem:[%s3 + $0x8] sm:$0xff]
  %v2437 = vld [vmem:[%s3 + $0x10] sm:$0xff]
  %v2438 = vld [vmem:[%s3 + $0x18] sm:$0xff]
  %2440 = vset.pattern.permute.xlu0 0
  %2441 = vperm.xlu0 %2440, %v2435
  %v2442 = vpop.permute.xlu0 %2441
  %2445 = vset.pattern.permute.xlu0 0
  %2446 = vperm.xlu0 %2445, %v2436
  %v2447 = vpop.permute.xlu0 %2446
  %2450 = vset.pattern.permute.xlu0 0
  %2451 = vperm.xlu0 %2450, %v2437
  %v2452 = vpop.permute.xlu0 %2451
  %2455 = vset.pattern.permute.xlu0 0
  %2456 = vperm.xlu0 %2455, %v2438
  %v2457 = vpop.permute.xlu0 %2456
  %v2459 = vadd.f32 %v2364, %v2442
  %v2460 = vadd.f32 %v2367, %v2447
  %v2461 = vadd.f32 %v2370, %v2452
  %v2462 = vadd.f32 %v2373, %v2457
  %v2463 = vadd.f32 %v2376, %v2442
  %v2464 = vadd.f32 %v2379, %v2447
  %v2465 = vadd.f32 %v2382, %v2452
  %v2466 = vadd.f32 %v2385, %v2457
  %v2467 = vadd.f32 %v2388, %v2442
  %v2468 = vadd.f32 %v2391, %v2447
  %v2469 = vadd.f32 %v2394, %v2452
  %v2470 = vadd.f32 %v2397, %v2457
  %v2471 = vadd.f32 %v2400, %v2442
  %v2472 = vadd.f32 %v2403, %v2447
  %v2473 = vadd.f32 %v2406, %v2452
  %v2474 = vadd.f32 %v2409, %v2457
  %v2475 = vadd.f32 %v2412, %v2442
  %v2476 = vadd.f32 %v2415, %v2447
  %v2477 = vadd.f32 %v2418, %v2452
  %v2478 = vadd.f32 %v2421, %v2457
  %v2479 = vadd.f32 %v2424, %v2442
  %v2480 = vadd.f32 %v2427, %v2447
  %v2481 = vadd.f32 %v2430, %v2452
  %v2482 = vadd.f32 %v2433, %v2457
  %v2483 = vmax.f32 %v2459, 0.0
  %v2484 = vmax.f32 %v2460, 0.0
  %v2485 = vmax.f32 %v2461, 0.0
  %v2486 = vmax.f32 %v2462, 0.0
  %v2487 = vmax.f32 %v2463, 0.0
  %v2488 = vmax.f32 %v2464, 0.0
  %v2489 = vmax.f32 %v2465, 0.0
  %v2490 = vmax.f32 %v2466, 0.0
  %v2491 = vmax.f32 %v2467, 0.0
  %v2492 = vmax.f32 %v2468, 0.0
  %v2493 = vmax.f32 %v2469, 0.0
  %v2494 = vmax.f32 %v2470, 0.0
  %v2495 = vmax.f32 %v2471, 0.0
  %v2496 = vmax.f32 %v2472, 0.0
  %v2497 = vmax.f32 %v2473, 0.0
  %v2498 = vmax.f32 %v2474, 0.0
  %v2499 = vmax.f32 %v2475, 0.0
  %v2500 = vmax.f32 %v2476, 0.0
  %v2501 = vmax.f32 %v2477, 0.0
  %v2502 = vmax.f32 %v2478, 0.0
  %v2503 = vmax.f32 %v2479, 0.0
  %v2504 = vmax.f32 %v2480, 0.0
  %v2505 = vmax.f32 %v2481, 0.0
  %v2506 = vmax.f32 %v2482, 0.0
  %v2507 = vmax.f32 %v2483, %v2487
  %v2508 = vmax.f32 %v2484, %v2488
  %v2509 = vmax.f32 %v2485, %v2489
  %v2510 = vmax.f32 %v2486, %v2490
  %v2511 = vmax.f32 %v2491, %v2495
  %v2512 = vmax.f32 %v2492, %v2496
  %v2513 = vmax.f32 %v2493, %v2497
  %v2514 = vmax.f32 %v2494, %v2498
  %v2515 = vmax.f32 %v2499, %v2503
  %v2516 = vmax.f32 %v2500, %v2504
  %v2517 = vmax.f32 %v2501, %v2505
  %v2518 = vmax.f32 %v2502, %v2506
  %2519 = vst [vmem:[#allocation3] sm:$0xff] %v2507
  %2520 = vst [vmem:[#allocation3 + $0x8] sm:$0xff] %v2508
  %2521 = vst [vmem:[#allocation3 + $0x10] sm:$0xff] %v2509
  %2522 = vst [vmem:[#allocation3 + $0x18] sm:$0xff] %v2510
  %2523 = vst [vmem:[#allocation3 + $0x20] sm:$0xff] %v2511
  %2524 = vst [vmem:[#allocation3 + $0x28] sm:$0xff] %v2512
  %2525 = vst [vmem:[#allocation3 + $0x30] sm:$0xff] %v2513
  %2526 = vst [vmem:[#allocation3 + $0x38] sm:$0xff] %v2514
  %2527 = vst [vmem:[#allocation3 + $0x40] sm:$0xff] %v2515
  %2528 = vst [vmem:[#allocation3 + $0x48] sm:$0xff] %v2516
  %2529 = vst [vmem:[#allocation3 + $0x50] sm:$0xff] %v2517
  %2530 = vst [vmem:[#allocation3 + $0x58] sm:$0xff] %v2518
  %v2531 = vld [vmem:[%s2] sm:$0xff]
  %v2532 = vld [vmem:[%s2 + $0x8] sm:$0xff]
  %v2533 = vld [vmem:[%s2 + $0x10] sm:$0xff]
  %v2534 = vld [vmem:[%s2 + $0x18] sm:$0xff]
  %v2535 = vld [vmem:[%s2 + $0x20] sm:$0xff]
  %v2536 = vld [vmem:[%s2 + $0x28] sm:$0xff]
  %v2537 = vld [vmem:[%s2 + $0x30] sm:$0xff]
  %v2538 = vld [vmem:[%s2 + $0x38] sm:$0xff]
  %v2539 = vld [vmem:[%s2 + $0x40] sm:$0xff]
  %v2540 = vld [vmem:[%s2 + $0x48] sm:$0xff]
  %v2541 = vld [vmem:[%s2 + $0x50] sm:$0xff]
  %v2542 = vld [vmem:[%s2 + $0x58] sm:$0xff]
  %v2543 = vld [vmem:[%s2 + $0x60] sm:$0xff]
  %v2544 = vld [vmem:[%s2 + $0x68] sm:$0xff]
  %v2545 = vld [vmem:[%s2 + $0x70] sm:$0xff]
  %v2546 = vld [vmem:[%s2 + $0x78] sm:$0xff]
  %v2547 = vld [vmem:[%s2 + $0x80] sm:$0xff]
  %v2548 = vld [vmem:[%s2 + $0x88] sm:$0xff]
  %v2549 = vld [vmem:[%s2 + $0x90] sm:$0xff]
  %v2550 = vld [vmem:[%s2 + $0x98] sm:$0xff]
  %v2551 = vld [vmem:[%s2 + $0xa0] sm:$0xff]
  %v2552 = vld [vmem:[%s2 + $0xa8] sm:$0xff]
  %v2553 = vld [vmem:[%s2 + $0xb0] sm:$0xff]
  %v2554 = vld [vmem:[%s2 + $0xb8] sm:$0xff]
  %v2555 = vld [vmem:[%s2 + $0xc0] sm:$0xff]
  %v2556 = vld [vmem:[%s2 + $0xc8] sm:$0xff]
  %v2557 = vld [vmem:[%s2 + $0xd0] sm:$0xff]
  %v2558 = vld [vmem:[%s2 + $0xd8] sm:$0xff]
  %v2559 = vld [vmem:[%s2 + $0xe0] sm:$0xff]
  %v2560 = vld [vmem:[%s2 + $0xe8] sm:$0xff]
  %v2561 = vld [vmem:[%s2 + $0xf0] sm:$0xff]
  %v2562 = vld [vmem:[%s2 + $0xf8] sm:$0xff]
  %v2563 = vld [vmem:[%s2 + $0x100] sm:$0xff]
  %v2564 = vld [vmem:[%s2 + $0x108] sm:$0xff]
  %v2565 = vld [vmem:[%s2 + $0x110] sm:$0xff]
  %v2566 = vld [vmem:[%s2 + $0x118] sm:$0xff]
  %v2567 = vld [vmem:[%s2 + $0x120] sm:$0xff]
  %v2568 = vld [vmem:[%s2 + $0x128] sm:$0xff]
  %v2569 = vld [vmem:[%s2 + $0x130] sm:$0xff]
  %v2570 = vld [vmem:[%s2 + $0x138] sm:$0xff]
  %v2571 = vld [vmem:[%s2 + $0x140] sm:$0xff]
  %v2572 = vld [vmem:[%s2 + $0x148] sm:$0xff]
  %v2573 = vld [vmem:[%s2 + $0x150] sm:$0xff]
  %v2574 = vld [vmem:[%s2 + $0x158] sm:$0xff]
  %v2575 = vld [vmem:[%s2 + $0x160] sm:$0xff]
  %v2576 = vld [vmem:[%s2 + $0x168] sm:$0xff]
  %v2577 = vld [vmem:[%s2 + $0x170] sm:$0xff]
  %v2578 = vld [vmem:[%s2 + $0x178] sm:$0xff]
  %v2579 = vld [vmem:[%s2 + $0x180] sm:$0xff]
  %v2580 = vld [vmem:[%s2 + $0x188] sm:$0xff]
  %v2581 = vld [vmem:[%s2 + $0x190] sm:$0xff]
  %v2582 = vld [vmem:[%s2 + $0x198] sm:$0xff]
  %v2583 = vld [vmem:[%s2 + $0x1a0] sm:$0xff]
  %v2584 = vld [vmem:[%s2 + $0x1a8] sm:$0xff]
  %v2585 = vld [vmem:[%s2 + $0x1b0] sm:$0xff]
  %v2586 = vld [vmem:[%s2 + $0x1b8] sm:$0xff]
  %v2587 = vld [vmem:[%s2 + $0x1c0] sm:$0xff]
  %v2588 = vld [vmem:[%s2 + $0x1c8] sm:$0xff]
  %v2589 = vld [vmem:[%s2 + $0x1d0] sm:$0xff]
  %v2590 = vld [vmem:[%s2 + $0x1d8] sm:$0xff]
  %v2591 = vld [vmem:[%s2 + $0x1e0] sm:$0xff]
  %v2592 = vld [vmem:[%s2 + $0x1e8] sm:$0xff]
  %v2593 = vld [vmem:[%s2 + $0x1f0] sm:$0xff]
  %v2594 = vld [vmem:[%s2 + $0x1f8] sm:$0xff]
  %v2595 = vld [vmem:[%s2 + $0x200] sm:$0xff]
  %v2596 = vld [vmem:[%s2 + $0x208] sm:$0xff]
  %v2597 = vld [vmem:[%s2 + $0x210] sm:$0xff]
  %v2598 = vld [vmem:[%s2 + $0x218] sm:$0xff]
  %v2599 = vld [vmem:[%s2 + $0x220] sm:$0xff]
  %v2600 = vld [vmem:[%s2 + $0x228] sm:$0xff]
  %v2601 = vld [vmem:[%s2 + $0x230] sm:$0xff]
  %v2602 = vld [vmem:[%s2 + $0x238] sm:$0xff]
  %v2603 = vld [vmem:[%s2 + $0x240] sm:$0xff]
  %v2604 = vld [vmem:[%s2 + $0x248] sm:$0xff]
  %v2605 = vld [vmem:[%s2 + $0x250] sm:$0xff]
  %v2606 = vld [vmem:[%s2 + $0x258] sm:$0xff]
  %v2607 = vld [vmem:[%s2 + $0x260] sm:$0xff]
  %v2608 = vld [vmem:[%s2 + $0x268] sm:$0xff]
  %v2609 = vld [vmem:[%s2 + $0x270] sm:$0xff]
  %v2610 = vld [vmem:[%s2 + $0x278] sm:$0xff]
  %v2611 = vld [vmem:[%s2 + $0x280] sm:$0xff]
  %v2612 = vld [vmem:[%s2 + $0x288] sm:$0xff]
  %v2613 = vld [vmem:[%s2 + $0x290] sm:$0xff]
  %v2614 = vld [vmem:[%s2 + $0x298] sm:$0xff]
  %v2615 = vld [vmem:[%s2 + $0x2a0] sm:$0xff]
  %v2616 = vld [vmem:[%s2 + $0x2a8] sm:$0xff]
  %v2617 = vld [vmem:[%s2 + $0x2b0] sm:$0xff]
  %v2618 = vld [vmem:[%s2 + $0x2b8] sm:$0xff]
  %v2619 = vld [vmem:[%s2 + $0x2c0] sm:$0xff]
  %v2620 = vld [vmem:[%s2 + $0x2c8] sm:$0xff]
  %v2621 = vld [vmem:[%s2 + $0x2d0] sm:$0xff]
  %v2622 = vld [vmem:[%s2 + $0x2d8] sm:$0xff]
  %v2623 = vld [vmem:[%s2 + $0x2e0] sm:$0xff]
  %v2624 = vld [vmem:[%s2 + $0x2e8] sm:$0xff]
  %v2625 = vld [vmem:[%s2 + $0x2f0] sm:$0xff]
  %v2626 = vld [vmem:[%s2 + $0x2f8] sm:$0xff]
  %v2627 = vld [vmem:[#allocation2 + $0x180] sm:$0xff]
  %v2628 = vld [vmem:[#allocation2 + $0x188] sm:$0xff]
  %v2629 = vld [vmem:[#allocation2 + $0x190] sm:$0xff]
  %v2630 = vld [vmem:[#allocation2 + $0x198] sm:$0xff]
  %v2631 = vld [vmem:[#allocation2 + $0x1a0] sm:$0xff]
  %v2632 = vld [vmem:[#allocation2 + $0x1a8] sm:$0xff]
  %v2633 = vld [vmem:[#allocation2 + $0x1b0] sm:$0xff]
  %v2634 = vld [vmem:[#allocation2 + $0x1b8] sm:$0xff]
  %v2635 = vld [vmem:[#allocation2 + $0x1c0] sm:$0xff]
  %v2636 = vld [vmem:[#allocation2 + $0x1c8] sm:$0xff]
  %v2637 = vld [vmem:[#allocation2 + $0x1d0] sm:$0xff]
  %v2638 = vld [vmem:[#allocation2 + $0x1d8] sm:$0xff]
  %v2639 = vld [vmem:[#allocation2 + $0x1e0] sm:$0xff]
  %v2640 = vld [vmem:[#allocation2 + $0x1e8] sm:$0xff]
  %v2641 = vld [vmem:[#allocation2 + $0x1f0] sm:$0xff]
  %v2642 = vld [vmem:[#allocation2 + $0x1f8] sm:$0xff]
  %v2643 = vld [vmem:[#allocation2 + $0x200] sm:$0xff]
  %v2644 = vld [vmem:[#allocation2 + $0x208] sm:$0xff]
  %v2645 = vld [vmem:[#allocation2 + $0x210] sm:$0xff]
  %v2646 = vld [vmem:[#allocation2 + $0x218] sm:$0xff]
  %v2647 = vld [vmem:[#allocation2 + $0x220] sm:$0xff]
  %v2648 = vld [vmem:[#allocation2 + $0x228] sm:$0xff]
  %v2649 = vld [vmem:[#allocation2 + $0x230] sm:$0xff]
  %v2650 = vld [vmem:[#allocation2 + $0x238] sm:$0xff]
  %v2651 = vld [vmem:[#allocation2 + $0x240] sm:$0xff]
  %v2652 = vld [vmem:[#allocation2 + $0x248] sm:$0xff]
  %v2653 = vld [vmem:[#allocation2 + $0x250] sm:$0xff]
  %v2654 = vld [vmem:[#allocation2 + $0x258] sm:$0xff]
  %v2655 = vld [vmem:[#allocation2 + $0x260] sm:$0xff]
  %v2656 = vld [vmem:[#allocation2 + $0x268] sm:$0xff]
  %v2657 = vld [vmem:[#allocation2 + $0x270] sm:$0xff]
  %v2658 = vld [vmem:[#allocation2 + $0x278] sm:$0xff]
  %v2659 = vld [vmem:[#allocation2 + $0x280] sm:$0xff]
  %v2660 = vld [vmem:[#allocation2 + $0x288] sm:$0xff]
  %v2661 = vld [vmem:[#allocation2 + $0x290] sm:$0xff]
  %v2662 = vld [vmem:[#allocation2 + $0x298] sm:$0xff]
  %v2663 = vld [vmem:[#allocation2 + $0x2a0] sm:$0xff]
  %v2664 = vld [vmem:[#allocation2 + $0x2a8] sm:$0xff]
  %v2665 = vld [vmem:[#allocation2 + $0x2b0] sm:$0xff]
  %v2666 = vld [vmem:[#allocation2 + $0x2b8] sm:$0xff]
  %v2667 = vld [vmem:[#allocation2 + $0x2c0] sm:$0xff]
  %v2668 = vld [vmem:[#allocation2 + $0x2c8] sm:$0xff]
  %v2669 = vld [vmem:[#allocation2 + $0x2d0] sm:$0xff]
  %v2670 = vld [vmem:[#allocation2 + $0x2d8] sm:$0xff]
  %v2671 = vld [vmem:[#allocation2 + $0x2e0] sm:$0xff]
  %v2672 = vld [vmem:[#allocation2 + $0x2e8] sm:$0xff]
  %v2673 = vld [vmem:[#allocation2 + $0x2f0] sm:$0xff]
  %v2674 = vld [vmem:[#allocation2 + $0x2f8] sm:$0xff]
  %v2675 = vld [vmem:[#allocation2 + $0x300] sm:$0xff]
  %v2676 = vld [vmem:[#allocation2 + $0x308] sm:$0xff]
  %v2677 = vld [vmem:[#allocation2 + $0x310] sm:$0xff]
  %v2678 = vld [vmem:[#allocation2 + $0x318] sm:$0xff]
  %v2679 = vld [vmem:[#allocation2 + $0x320] sm:$0xff]
  %v2680 = vld [vmem:[#allocation2 + $0x328] sm:$0xff]
  %v2681 = vld [vmem:[#allocation2 + $0x330] sm:$0xff]
  %v2682 = vld [vmem:[#allocation2 + $0x338] sm:$0xff]
  %v2683 = vld [vmem:[#allocation2 + $0x340] sm:$0xff]
  %v2684 = vld [vmem:[#allocation2 + $0x348] sm:$0xff]
  %v2685 = vld [vmem:[#allocation2 + $0x350] sm:$0xff]
  %v2686 = vld [vmem:[#allocation2 + $0x358] sm:$0xff]
  %v2687 = vld [vmem:[#allocation2 + $0x360] sm:$0xff]
  %v2688 = vld [vmem:[#allocation2 + $0x368] sm:$0xff]
  %v2689 = vld [vmem:[#allocation2 + $0x370] sm:$0xff]
  %v2690 = vld [vmem:[#allocation2 + $0x378] sm:$0xff]
  %2691 = vmatpush.msra.mxu0 %v2642
  %2692 = vmatpush.msra.mxu0 %v2641
  %2693 = vmatpush.msra.mxu0 %v2640
  %2694 = vmatpush.msra.mxu0 %v2639
  %2695 = vmatpush.msra.mxu0 %v2638
  %2696 = vmatpush.msra.mxu0 %v2637
  %2697 = vmatpush.msra.mxu0 %v2636
  %2698 = vmatpush.msra.mxu0 %v2635
  %2699 = vmatpush.msra.mxu0 %v2634
  %2700 = vmatpush.msra.mxu0 %v2633
  %2701 = vmatpush.msra.mxu0 %v2632
  %2702 = vmatpush.msra.mxu0 %v2631
  %2703 = vmatpush.msra.mxu0 %v2630
  %2704 = vmatpush.msra.mxu0 %v2629
  %2705 = vmatpush.msra.mxu0 %v2628
  %2706 = vmatpush.msra.mxu0 %v2627
  %2707 = vmatmul.f32.gmra.mxu0 %v2531
  %v2708 = vpop.f32.mrf.mxu0
  %v2709 = vadd.f32 0.0, %v2708
  %2710 = vmatmul.f32.gmra.mxu0 %v2535
  %v2711 = vpop.f32.mrf.mxu0
  %v2712 = vadd.f32 0.0, %v2711
  %2713 = vmatmul.f32.gmra.mxu0 %v2539
  %v2714 = vpop.f32.mrf.mxu0
  %v2715 = vadd.f32 0.0, %v2714
  %2716 = vmatmul.f32.gmra.mxu0 %v2543
  %v2717 = vpop.f32.mrf.mxu0
  %v2718 = vadd.f32 0.0, %v2717
  %2719 = vmatmul.f32.gmra.mxu0 %v2547
  %v2720 = vpop.f32.mrf.mxu0
  %v2721 = vadd.f32 0.0, %v2720
  %2722 = vmatmul.f32.gmra.mxu0 %v2551
  %v2723 = vpop.f32.mrf.mxu0
  %v2724 = vadd.f32 0.0, %v2723
  %2725 = vmatmul.f32.gmra.mxu0 %v2555
  %v2726 = vpop.f32.mrf.mxu0
  %v2727 = vadd.f32 0.0, %v2726
  %2728 = vmatmul.f32.gmra.mxu0 %v2559
  %v2729 = vpop.f32.mrf.mxu0
  %v2730 = vadd.f32 0.0, %v2729
  %2731 = vmatmul.f32.gmra.mxu0 %v2563
  %v2732 = vpop.f32.mrf.mxu0
  %v2733 = vadd.f32 0.0, %v2732
  %2734 = vmatmul.f32.gmra.mxu0 %v2567
  %v2735 = vpop.f32.mrf.mxu0
  %v2736 = vadd.f32 0.0, %v2735
  %2737 = vmatmul.f32.gmra.mxu0 %v2571
  %v2738 = vpop.f32.mrf.mxu0
  %v2739 = vadd.f32 0.0, %v2738
  %2740 = vmatmul.f32.gmra.mxu0 %v2575
  %v2741 = vpop.f32.mrf.mxu0
  %v2742 = vadd.f32 0.0, %v2741
  %2743 = vmatmul.f32.gmra.mxu0 %v2579
  %v2744 = vpop.f32.mrf.mxu0
  %v2745 = vadd.f32 0.0, %v2744
  %2746 = vmatmul.f32.gmra.mxu0 %v2583
  %v2747 = vpop.f32.mrf.mxu0
  %v2748 = vadd.f32 0.0, %v2747
  %2749 = vmatmul.f32.gmra.mxu0 %v2587
  %v2750 = vpop.f32.mrf.mxu0
  %v2751 = vadd.f32 0.0, %v2750
  %2752 = vmatmul.f32.gmra.mxu0 %v2591
  %v2753 = vpop.f32.mrf.mxu0
  %v2754 = vadd.f32 0.0, %v2753
  %2755 = vmatmul.f32.gmra.mxu0 %v2595
  %v2756 = vpop.f32.mrf.mxu0
  %v2757 = vadd.f32 0.0, %v2756
  %2758 = vmatmul.f32.gmra.mxu0 %v2599
  %v2759 = vpop.f32.mrf.mxu0
  %v2760 = vadd.f32 0.0, %v2759
  %2761 = vmatmul.f32.gmra.mxu0 %v2603
  %v2762 = vpop.f32.mrf.mxu0
  %v2763 = vadd.f32 0.0, %v2762
  %2764 = vmatmul.f32.gmra.mxu0 %v2607
  %v2765 = vpop.f32.mrf.mxu0
  %v2766 = vadd.f32 0.0, %v2765
  %2767 = vmatmul.f32.gmra.mxu0 %v2611
  %v2768 = vpop.f32.mrf.mxu0
  %v2769 = vadd.f32 0.0, %v2768
  %2770 = vmatmul.f32.gmra.mxu0 %v2615
  %v2771 = vpop.f32.mrf.mxu0
  %v2772 = vadd.f32 0.0, %v2771
  %2773 = vmatmul.f32.gmra.mxu0 %v2619
  %v2774 = vpop.f32.mrf.mxu0
  %v2775 = vadd.f32 0.0, %v2774
  %2776 = vmatmul.f32.gmra.mxu0 %v2623
  %v2777 = vpop.f32.mrf.mxu0
  %v2778 = vadd.f32 0.0, %v2777
  %2779 = vdwg.mxu0
  %2780 = vmatpush.msra.mxu0 %v2658
  %2781 = vmatpush.msra.mxu0 %v2657
  %2782 = vmatpush.msra.mxu0 %v2656
  %2783 = vmatpush.msra.mxu0 %v2655
  %2784 = vmatpush.msra.mxu0 %v2654
  %2785 = vmatpush.msra.mxu0 %v2653
  %2786 = vmatpush.msra.mxu0 %v2652
  %2787 = vmatpush.msra.mxu0 %v2651
  %2788 = vmatpush.msra.mxu0 %v2650
  %2789 = vmatpush.msra.mxu0 %v2649
  %2790 = vmatpush.msra.mxu0 %v2648
  %2791 = vmatpush.msra.mxu0 %v2647
  %2792 = vmatpush.msra.mxu0 %v2646
  %2793 = vmatpush.msra.mxu0 %v2645
  %2794 = vmatpush.msra.mxu0 %v2644
  %2795 = vmatpush.msra.mxu0 %v2643
  %2796 = vmatmul.f32.gmra.mxu0 %v2532
  %v2797 = vpop.f32.mrf.mxu0
  %v2798 = vadd.f32 %v2709, %v2797
  %2799 = vmatmul.f32.gmra.mxu0 %v2536
  %v2800 = vpop.f32.mrf.mxu0
  %v2801 = vadd.f32 %v2712, %v2800
  %2802 = vmatmul.f32.gmra.mxu0 %v2540
  %v2803 = vpop.f32.mrf.mxu0
  %v2804 = vadd.f32 %v2715, %v2803
  %2805 = vmatmul.f32.gmra.mxu0 %v2544
  %v2806 = vpop.f32.mrf.mxu0
  %v2807 = vadd.f32 %v2718, %v2806
  %2808 = vmatmul.f32.gmra.mxu0 %v2548
  %v2809 = vpop.f32.mrf.mxu0
  %v2810 = vadd.f32 %v2721, %v2809
  %2811 = vmatmul.f32.gmra.mxu0 %v2552
  %v2812 = vpop.f32.mrf.mxu0
  %v2813 = vadd.f32 %v2724, %v2812
  %2814 = vmatmul.f32.gmra.mxu0 %v2556
  %v2815 = vpop.f32.mrf.mxu0
  %v2816 = vadd.f32 %v2727, %v2815
  %2817 = vmatmul.f32.gmra.mxu0 %v2560
  %v2818 = vpop.f32.mrf.mxu0
  %v2819 = vadd.f32 %v2730, %v2818
  %2820 = vmatmul.f32.gmra.mxu0 %v2564
  %v2821 = vpop.f32.mrf.mxu0
  %v2822 = vadd.f32 %v2733, %v2821
  %2823 = vmatmul.f32.gmra.mxu0 %v2568
  %v2824 = vpop.f32.mrf.mxu0
  %v2825 = vadd.f32 %v2736, %v2824
  %2826 = vmatmul.f32.gmra.mxu0 %v2572
  %v2827 = vpop.f32.mrf.mxu0
  %v2828 = vadd.f32 %v2739, %v2827
  %2829 = vmatmul.f32.gmra.mxu0 %v2576
  %v2830 = vpop.f32.mrf.mxu0
  %v2831 = vadd.f32 %v2742, %v2830
  %2832 = vmatmul.f32.gmra.mxu0 %v2580
  %v2833 = vpop.f32.mrf.mxu0
  %v2834 = vadd.f32 %v2745, %v2833
  %2835 = vmatmul.f32.gmra.mxu0 %v2584
  %v2836 = vpop.f32.mrf.mxu0
  %v2837 = vadd.f32 %v2748, %v2836
  %2838 = vmatmul.f32.gmra.mxu0 %v2588
  %v2839 = vpop.f32.mrf.mxu0
  %v2840 = vadd.f32 %v2751, %v2839
  %2841 = vmatmul.f32.gmra.mxu0 %v2592
  %v2842 = vpop.f32.mrf.mxu0
  %v2843 = vadd.f32 %v2754, %v2842
  %2844 = vmatmul.f32.gmra.mxu0 %v2596
  %v2845 = vpop.f32.mrf.mxu0
  %v2846 = vadd.f32 %v2757, %v2845
  %2847 = vmatmul.f32.gmra.mxu0 %v2600
  %v2848 = vpop.f32.mrf.mxu0
  %v2849 = vadd.f32 %v2760, %v2848
  %2850 = vmatmul.f32.gmra.mxu0 %v2604
  %v2851 = vpop.f32.mrf.mxu0
  %v2852 = vadd.f32 %v2763, %v2851
  %2853 = vmatmul.f32.gmra.mxu0 %v2608
  %v2854 = vpop.f32.mrf.mxu0
  %v2855 = vadd.f32 %v2766, %v2854
  %2856 = vmatmul.f32.gmra.mxu0 %v2612
  %v2857 = vpop.f32.mrf.mxu0
  %v2858 = vadd.f32 %v2769, %v2857
  %2859 = vmatmul.f32.gmra.mxu0 %v2616
  %v2860 = vpop.f32.mrf.mxu0
  %v2861 = vadd.f32 %v2772, %v2860
  %2862 = vmatmul.f32.gmra.mxu0 %v2620
  %v2863 = vpop.f32.mrf.mxu0
  %v2864 = vadd.f32 %v2775, %v2863
  %2865 = vmatmul.f32.gmra.mxu0 %v2624
  %v2866 = vpop.f32.mrf.mxu0
  %v2867 = vadd.f32 %v2778, %v2866
  %2868 = vdwg.mxu0
  %2869 = vmatpush.msra.mxu0 %v2674
  %2870 = vmatpush.msra.mxu0 %v2673
  %2871 = vmatpush.msra.mxu0 %v2672
  %2872 = vmatpush.msra.mxu0 %v2671
  %2873 = vmatpush.msra.mxu0 %v2670
  %2874 = vmatpush.msra.mxu0 %v2669
  %2875 = vmatpush.msra.mxu0 %v2668
  %2876 = vmatpush.msra.mxu0 %v2667
  %2877 = vmatpush.msra.mxu0 %v2666
  %2878 = vmatpush.msra.mxu0 %v2665
  %2879 = vmatpush.msra.mxu0 %v2664
  %2880 = vmatpush.msra.mxu0 %v2663
  %2881 = vmatpush.msra.mxu0 %v2662
  %2882 = vmatpush.msra.mxu0 %v2661
  %2883 = vmatpush.msra.mxu0 %v2660
  %2884 = vmatpush.msra.mxu0 %v2659
  %2885 = vmatmul.f32.gmra.mxu0 %v2533
  %v2886 = vpop.f32.mrf.mxu0
  %v2887 = vadd.f32 %v2798, %v2886
  %2888 = vmatmul.f32.gmra.mxu0 %v2537
  %v2889 = vpop.f32.mrf.mxu0
  %v2890 = vadd.f32 %v2801, %v2889
  %2891 = vmatmul.f32.gmra.mxu0 %v2541
  %v2892 = vpop.f32.mrf.mxu0
  %v2893 = vadd.f32 %v2804, %v2892
  %2894 = vmatmul.f32.gmra.mxu0 %v2545
  %v2895 = vpop.f32.mrf.mxu0
  %v2896 = vadd.f32 %v2807, %v2895
  %2897 = vmatmul.f32.gmra.mxu0 %v2549
  %v2898 = vpop.f32.mrf.mxu0
  %v2899 = vadd.f32 %v2810, %v2898
  %2900 = vmatmul.f32.gmra.mxu0 %v2553
  %v2901 = vpop.f32.mrf.mxu0
  %v2902 = vadd.f32 %v2813, %v2901
  %2903 = vmatmul.f32.gmra.mxu0 %v2557
  %v2904 = vpop.f32.mrf.mxu0
  %v2905 = vadd.f32 %v2816, %v2904
  %2906 = vmatmul.f32.gmra.mxu0 %v2561
  %v2907 = vpop.f32.mrf.mxu0
  %v2908 = vadd.f32 %v2819, %v2907
  %2909 = vmatmul.f32.gmra.mxu0 %v2565
  %v2910 = vpop.f32.mrf.mxu0
  %v2911 = vadd.f32 %v2822, %v2910
  %2912 = vmatmul.f32.gmra.mxu0 %v2569
  %v2913 = vpop.f32.mrf.mxu0
  %v2914 = vadd.f32 %v2825, %v2913
  %2915 = vmatmul.f32.gmra.mxu0 %v2573
  %v2916 = vpop.f32.mrf.mxu0
  %v2917 = vadd.f32 %v2828, %v2916
  %2918 = vmatmul.f32.gmra.mxu0 %v2577
  %v2919 = vpop.f32.mrf.mxu0
  %v2920 = vadd.f32 %v2831, %v2919
  %2921 = vmatmul.f32.gmra.mxu0 %v2581
  %v2922 = vpop.f32.mrf.mxu0
  %v2923 = vadd.f32 %v2834, %v2922
  %2924 = vmatmul.f32.gmra.mxu0 %v2585
  %v2925 = vpop.f32.mrf.mxu0
  %v2926 = vadd.f32 %v2837, %v2925
  %2927 = vmatmul.f32.gmra.mxu0 %v2589
  %v2928 = vpop.f32.mrf.mxu0
  %v2929 = vadd.f32 %v2840, %v2928
  %2930 = vmatmul.f32.gmra.mxu0 %v2593
  %v2931 = vpop.f32.mrf.mxu0
  %v2932 = vadd.f32 %v2843, %v2931
  %2933 = vmatmul.f32.gmra.mxu0 %v2597
  %v2934 = vpop.f32.mrf.mxu0
  %v2935 = vadd.f32 %v2846, %v2934
  %2936 = vmatmul.f32.gmra.mxu0 %v2601
  %v2937 = vpop.f32.mrf.mxu0
  %v2938 = vadd.f32 %v2849, %v2937
  %2939 = vmatmul.f32.gmra.mxu0 %v2605
  %v2940 = vpop.f32.mrf.mxu0
  %v2941 = vadd.f32 %v2852, %v2940
  %2942 = vmatmul.f32.gmra.mxu0 %v2609
  %v2943 = vpop.f32.mrf.mxu0
  %v2944 = vadd.f32 %v2855, %v2943
  %2945 = vmatmul.f32.gmra.mxu0 %v2613
  %v2946 = vpop.f32.mrf.mxu0
  %v2947 = vadd.f32 %v2858, %v2946
  %2948 = vmatmul.f32.gmra.mxu0 %v2617
  %v2949 = vpop.f32.mrf.mxu0
  %v2950 = vadd.f32 %v2861, %v2949
  %2951 = vmatmul.f32.gmra.mxu0 %v2621
  %v2952 = vpop.f32.mrf.mxu0
  %v2953 = vadd.f32 %v2864, %v2952
  %2954 = vmatmul.f32.gmra.mxu0 %v2625
  %v2955 = vpop.f32.mrf.mxu0
  %v2956 = vadd.f32 %v2867, %v2955
  %2957 = vdwg.mxu0
  %2958 = vmatpush.msra.mxu0 %v2690
  %2959 = vmatpush.msra.mxu0 %v2689
  %2960 = vmatpush.msra.mxu0 %v2688
  %2961 = vmatpush.msra.mxu0 %v2687
  %2962 = vmatpush.msra.mxu0 %v2686
  %2963 = vmatpush.msra.mxu0 %v2685
  %2964 = vmatpush.msra.mxu0 %v2684
  %2965 = vmatpush.msra.mxu0 %v2683
  %2966 = vmatpush.msra.mxu0 %v2682
  %2967 = vmatpush.msra.mxu0 %v2681
  %2968 = vmatpush.msra.mxu0 %v2680
  %2969 = vmatpush.msra.mxu0 %v2679
  %2970 = vmatpush.msra.mxu0 %v2678
  %2971 = vmatpush.msra.mxu0 %v2677
  %2972 = vmatpush.msra.mxu0 %v2676
  %2973 = vmatpush.msra.mxu0 %v2675
  %2974 = vmatmul.f32.gmra.mxu0 %v2534
  %v2975 = vpop.f32.mrf.mxu0
  %v2976 = vadd.f32 %v2887, %v2975
  %2977 = vmatmul.f32.gmra.mxu0 %v2538
  %v2978 = vpop.f32.mrf.mxu0
  %v2979 = vadd.f32 %v2890, %v2978
  %2980 = vmatmul.f32.gmra.mxu0 %v2542
  %v2981 = vpop.f32.mrf.mxu0
  %v2982 = vadd.f32 %v2893, %v2981
  %2983 = vmatmul.f32.gmra.mxu0 %v2546
  %v2984 = vpop.f32.mrf.mxu0
  %v2985 = vadd.f32 %v2896, %v2984
  %2986 = vmatmul.f32.gmra.mxu0 %v2550
  %v2987 = vpop.f32.mrf.mxu0
  %v2988 = vadd.f32 %v2899, %v2987
  %2989 = vmatmul.f32.gmra.mxu0 %v2554
  %v2990 = vpop.f32.mrf.mxu0
  %v2991 = vadd.f32 %v2902, %v2990
  %2992 = vmatmul.f32.gmra.mxu0 %v2558
  %v2993 = vpop.f32.mrf.mxu0
  %v2994 = vadd.f32 %v2905, %v2993
  %2995 = vmatmul.f32.gmra.mxu0 %v2562
  %v2996 = vpop.f32.mrf.mxu0
  %v2997 = vadd.f32 %v2908, %v2996
  %2998 = vmatmul.f32.gmra.mxu0 %v2566
  %v2999 = vpop.f32.mrf.mxu0
  %v3000 = vadd.f32 %v2911, %v2999
  %3001 = vmatmul.f32.gmra.mxu0 %v2570
  %v3002 = vpop.f32.mrf.mxu0
  %v3003 = vadd.f32 %v2914, %v3002
  %3004 = vmatmul.f32.gmra.mxu0 %v2574
  %v3005 = vpop.f32.mrf.mxu0
  %v3006 = vadd.f32 %v2917, %v3005
  %3007 = vmatmul.f32.gmra.mxu0 %v2578
  %v3008 = vpop.f32.mrf.mxu0
  %v3009 = vadd.f32 %v2920, %v3008
  %3010 = vmatmul.f32.gmra.mxu0 %v2582
  %v3011 = vpop.f32.mrf.mxu0
  %v3012 = vadd.f32 %v2923, %v3011
  %3013 = vmatmul.f32.gmra.mxu0 %v2586
  %v3014 = vpop.f32.mrf.mxu0
  %v3015 = vadd.f32 %v2926, %v3014
  %3016 = vmatmul.f32.gmra.mxu0 %v2590
  %v3017 = vpop.f32.mrf.mxu0
  %v3018 = vadd.f32 %v2929, %v3017
  %3019 = vmatmul.f32.gmra.mxu0 %v2594
  %v3020 = vpop.f32.mrf.mxu0
  %v3021 = vadd.f32 %v2932, %v3020
  %3022 = vmatmul.f32.gmra.mxu0 %v2598
  %v3023 = vpop.f32.mrf.mxu0
  %v3024 = vadd.f32 %v2935, %v3023
  %3025 = vmatmul.f32.gmra.mxu0 %v2602
  %v3026 = vpop.f32.mrf.mxu0
  %v3027 = vadd.f32 %v2938, %v3026
  %3028 = vmatmul.f32.gmra.mxu0 %v2606
  %v3029 = vpop.f32.mrf.mxu0
  %v3030 = vadd.f32 %v2941, %v3029
  %3031 = vmatmul.f32.gmra.mxu0 %v2610
  %v3032 = vpop.f32.mrf.mxu0
  %v3033 = vadd.f32 %v2944, %v3032
  %3034 = vmatmul.f32.gmra.mxu0 %v2614
  %v3035 = vpop.f32.mrf.mxu0
  %v3036 = vadd.f32 %v2947, %v3035
  %3037 = vmatmul.f32.gmra.mxu0 %v2618
  %v3038 = vpop.f32.mrf.mxu0
  %v3039 = vadd.f32 %v2950, %v3038
  %3040 = vmatmul.f32.gmra.mxu0 %v2622
  %v3041 = vpop.f32.mrf.mxu0
  %v3042 = vadd.f32 %v2953, %v3041
  %3043 = vmatmul.f32.gmra.mxu0 %v2626
  %v3044 = vpop.f32.mrf.mxu0
  %v3045 = vadd.f32 %v2956, %v3044
  %3046 = vdwg.mxu0
  %v3047 = vld [vmem:[%s3] sm:$0xff]
  %v3048 = vld [vmem:[%s3 + $0x8] sm:$0xff]
  %v3049 = vld [vmem:[%s3 + $0x10] sm:$0xff]
  %v3050 = vld [vmem:[%s3 + $0x18] sm:$0xff]
  %3052 = vset.pattern.permute.xlu0 0
  %3053 = vperm.xlu0 %3052, %v3047
  %v3054 = vpop.permute.xlu0 %3053
  %3057 = vset.pattern.permute.xlu0 0
  %3058 = vperm.xlu0 %3057, %v3048
  %v3059 = vpop.permute.xlu0 %3058
  %3062 = vset.pattern.permute.xlu0 0
  %3063 = vperm.xlu0 %3062, %v3049
  %v3064 = vpop.permute.xlu0 %3063
  %3067 = vset.pattern.permute.xlu0 0
  %3068 = vperm.xlu0 %3067, %v3050
  %v3069 = vpop.permute.xlu0 %3068
  %v3071 = vadd.f32 %v2976, %v3054
  %v3072 = vadd.f32 %v2979, %v3059
  %v3073 = vadd.f32 %v2982, %v3064
  %v3074 = vadd.f32 %v2985, %v3069
  %v3075 = vadd.f32 %v2988, %v3054
  %v3076 = vadd.f32 %v2991, %v3059
  %v3077 = vadd.f32 %v2994, %v3064
  %v3078 = vadd.f32 %v2997, %v3069
  %v3079 = vadd.f32 %v3000, %v3054
  %v3080 = vadd.f32 %v3003, %v3059
  %v3081 = vadd.f32 %v3006, %v3064
  %v3082 = vadd.f32 %v3009, %v3069
  %v3083 = vadd.f32 %v3012, %v3054
  %v3084 = vadd.f32 %v3015, %v3059
  %v3085 = vadd.f32 %v3018, %v3064
  %v3086 = vadd.f32 %v3021, %v3069
  %v3087 = vadd.f32 %v3024, %v3054
  %v3088 = vadd.f32 %v3027, %v3059
  %v3089 = vadd.f32 %v3030, %v3064
  %v3090 = vadd.f32 %v3033, %v3069
  %v3091 = vadd.f32 %v3036, %v3054
  %v3092 = vadd.f32 %v3039, %v3059
  %v3093 = vadd.f32 %v3042, %v3064
  %v3094 = vadd.f32 %v3045, %v3069
  %v3095 = vmax.f32 %v3071, 0.0
  %v3096 = vmax.f32 %v3072, 0.0
  %v3097 = vmax.f32 %v3073, 0.0
  %v3098 = vmax.f32 %v3074, 0.0
  %v3099 = vmax.f32 %v3075, 0.0
  %v3100 = vmax.f32 %v3076, 0.0
  %v3101 = vmax.f32 %v3077, 0.0
  %v3102 = vmax.f32 %v3078, 0.0
  %v3103 = vmax.f32 %v3079, 0.0
  %v3104 = vmax.f32 %v3080, 0.0
  %v3105 = vmax.f32 %v3081, 0.0
  %v3106 = vmax.f32 %v3082, 0.0
  %v3107 = vmax.f32 %v3083, 0.0
  %v3108 = vmax.f32 %v3084, 0.0
  %v3109 = vmax.f32 %v3085, 0.0
  %v3110 = vmax.f32 %v3086, 0.0
  %v3111 = vmax.f32 %v3087, 0.0
  %v3112 = vmax.f32 %v3088, 0.0
  %v3113 = vmax.f32 %v3089, 0.0
  %v3114 = vmax.f32 %v3090, 0.0
  %v3115 = vmax.f32 %v3091, 0.0
  %v3116 = vmax.f32 %v3092, 0.0
  %v3117 = vmax.f32 %v3093, 0.0
  %v3118 = vmax.f32 %v3094, 0.0
  %v3119 = vmax.f32 %v3095, %v3099
  %v3120 = vmax.f32 %v3096, %v3100
  %v3121 = vmax.f32 %v3097, %v3101
  %v3122 = vmax.f32 %v3098, %v3102
  %v3123 = vmax.f32 %v3103, %v3107
  %v3124 = vmax.f32 %v3104, %v3108
  %v3125 = vmax.f32 %v3105, %v3109
  %v3126 = vmax.f32 %v3106, %v3110
  %v3127 = vmax.f32 %v3111, %v3115
  %v3128 = vmax.f32 %v3112, %v3116
  %v3129 = vmax.f32 %v3113, %v3117
  %v3130 = vmax.f32 %v3114, %v3118
  %3131 = vst [vmem:[#allocation3 + $0x60] sm:$0xff] %v3119
  %3132 = vst [vmem:[#allocation3 + $0x68] sm:$0xff] %v3120
  %3133 = vst [vmem:[#allocation3 + $0x70] sm:$0xff] %v3121
  %3134 = vst [vmem:[#allocation3 + $0x78] sm:$0xff] %v3122
  %3135 = vst [vmem:[#allocation3 + $0x80] sm:$0xff] %v3123
  %3136 = vst [vmem:[#allocation3 + $0x88] sm:$0xff] %v3124
  %3137 = vst [vmem:[#allocation3 + $0x90] sm:$0xff] %v3125
  %3138 = vst [vmem:[#allocation3 + $0x98] sm:$0xff] %v3126
  %3139 = vst [vmem:[#allocation3 + $0xa0] sm:$0xff] %v3127
  %3140 = vst [vmem:[#allocation3 + $0xa8] sm:$0xff] %v3128
  %3141 = vst [vmem:[#allocation3 + $0xb0] sm:$0xff] %v3129
  %3142 = vst [vmem:[#allocation3 + $0xb8] sm:$0xff] %v3130
  %v3143 = vld [vmem:[%s2] sm:$0xff]
  %v3144 = vld [vmem:[%s2 + $0x8] sm:$0xff]
  %v3145 = vld [vmem:[%s2 + $0x10] sm:$0xff]
  %v3146 = vld [vmem:[%s2 + $0x18] sm:$0xff]
  %v3147 = vld [vmem:[%s2 + $0x20] sm:$0xff]
  %v3148 = vld [vmem:[%s2 + $0x28] sm:$0xff]
  %v3149 = vld [vmem:[%s2 + $0x30] sm:$0xff]
  %v3150 = vld [vmem:[%s2 + $0x38] sm:$0xff]
  %v3151 = vld [vmem:[%s2 + $0x40] sm:$0xff]
  %v3152 = vld [vmem:[%s2 + $0x48] sm:$0xff]
  %v3153 = vld [vmem:[%s2 + $0x50] sm:$0xff]
  %v3154 = vld [vmem:[%s2 + $0x58] sm:$0xff]
  %v3155 = vld [vmem:[%s2 + $0x60] sm:$0xff]
  %v3156 = vld [vmem:[%s2 + $0x68] sm:$0xff]
  %v3157 = vld [vmem:[%s2 + $0x70] sm:$0xff]
  %v3158 = vld [vmem:[%s2 + $0x78] sm:$0xff]
  %v3159 = vld [vmem:[%s2 + $0x80] sm:$0xff]
  %v3160 = vld [vmem:[%s2 + $0x88] sm:$0xff]
  %v3161 = vld [vmem:[%s2 + $0x90] sm:$0xff]
  %v3162 = vld [vmem:[%s2 + $0x98] sm:$0xff]
  %v3163 = vld [vmem:[%s2 + $0xa0] sm:$0xff]
  %v3164 = vld [vmem:[%s2 + $0xa8] sm:$0xff]
  %v3165 = vld [vmem:[%s2 + $0xb0] sm:$0xff]
  %v3166 = vld [vmem:[%s2 + $0xb8] sm:$0xff]
  %v3167 = vld [vmem:[%s2 + $0xc0] sm:$0xff]
  %v3168 = vld [vmem:[%s2 + $0xc8] sm:$0xff]
  %v3169 = vld [vmem:[%s2 + $0xd0] sm:$0xff]
  %v3170 = vld [vmem:[%s2 + $0xd8] sm:$0xff]
  %v3171 = vld [vmem:[%s2 + $0xe0] sm:$0xff]
  %v3172 = vld [vmem:[%s2 + $0xe8] sm:$0xff]
  %v3173 = vld [vmem:[%s2 + $0xf0] sm:$0xff]
  %v3174 = vld [vmem:[%s2 + $0xf8] sm:$0xff]
  %v3175 = vld [vmem:[%s2 + $0x100] sm:$0xff]
  %v3176 = vld [vmem:[%s2 + $0x108] sm:$0xff]
  %v3177 = vld [vmem:[%s2 + $0x110] sm:$0xff]
  %v3178 = vld [vmem:[%s2 + $0x118] sm:$0xff]
  %v3179 = vld [vmem:[%s2 + $0x120] sm:$0xff]
  %v3180 = vld [vmem:[%s2 + $0x128] sm:$0xff]
  %v3181 = vld [vmem:[%s2 + $0x130] sm:$0xff]
  %v3182 = vld [vmem:[%s2 + $0x138] sm:$0xff]
  %v3183 = vld [vmem:[%s2 + $0x140] sm:$0xff]
  %v3184 = vld [vmem:[%s2 + $0x148] sm:$0xff]
  %v3185 = vld [vmem:[%s2 + $0x150] sm:$0xff]
  %v3186 = vld [vmem:[%s2 + $0x158] sm:$0xff]
  %v3187 = vld [vmem:[%s2 + $0x160] sm:$0xff]
  %v3188 = vld [vmem:[%s2 + $0x168] sm:$0xff]
  %v3189 = vld [vmem:[%s2 + $0x170] sm:$0xff]
  %v3190 = vld [vmem:[%s2 + $0x178] sm:$0xff]
  %v3191 = vld [vmem:[%s2 + $0x180] sm:$0xff]
  %v3192 = vld [vmem:[%s2 + $0x188] sm:$0xff]
  %v3193 = vld [vmem:[%s2 + $0x190] sm:$0xff]
  %v3194 = vld [vmem:[%s2 + $0x198] sm:$0xff]
  %v3195 = vld [vmem:[%s2 + $0x1a0] sm:$0xff]
  %v3196 = vld [vmem:[%s2 + $0x1a8] sm:$0xff]
  %v3197 = vld [vmem:[%s2 + $0x1b0] sm:$0xff]
  %v3198 = vld [vmem:[%s2 + $0x1b8] sm:$0xff]
  %v3199 = vld [vmem:[%s2 + $0x1c0] sm:$0xff]
  %v3200 = vld [vmem:[%s2 + $0x1c8] sm:$0xff]
  %v3201 = vld [vmem:[%s2 + $0x1d0] sm:$0xff]
  %v3202 = vld [vmem:[%s2 + $0x1d8] sm:$0xff]
  %v3203 = vld [vmem:[%s2 + $0x1e0] sm:$0xff]
  %v3204 = vld [vmem:[%s2 + $0x1e8] sm:$0xff]
  %v3205 = vld [vmem:[%s2 + $0x1f0] sm:$0xff]
  %v3206 = vld [vmem:[%s2 + $0x1f8] sm:$0xff]
  %v3207 = vld [vmem:[%s2 + $0x200] sm:$0xff]
  %v3208 = vld [vmem:[%s2 + $0x208] sm:$0xff]
  %v3209 = vld [vmem:[%s2 + $0x210] sm:$0xff]
  %v3210 = vld [vmem:[%s2 + $0x218] sm:$0xff]
  %v3211 = vld [vmem:[%s2 + $0x220] sm:$0xff]
  %v3212 = vld [vmem:[%s2 + $0x228] sm:$0xff]
  %v3213 = vld [vmem:[%s2 + $0x230] sm:$0xff]
  %v3214 = vld [vmem:[%s2 + $0x238] sm:$0xff]
  %v3215 = vld [vmem:[%s2 + $0x240] sm:$0xff]
  %v3216 = vld [vmem:[%s2 + $0x248] sm:$0xff]
  %v3217 = vld [vmem:[%s2 + $0x250] sm:$0xff]
  %v3218 = vld [vmem:[%s2 + $0x258] sm:$0xff]
  %v3219 = vld [vmem:[%s2 + $0x260] sm:$0xff]
  %v3220 = vld [vmem:[%s2 + $0x268] sm:$0xff]
  %v3221 = vld [vmem:[%s2 + $0x270] sm:$0xff]
  %v3222 = vld [vmem:[%s2 + $0x278] sm:$0xff]
  %v3223 = vld [vmem:[%s2 + $0x280] sm:$0xff]
  %v3224 = vld [vmem:[%s2 + $0x288] sm:$0xff]
  %v3225 = vld [vmem:[%s2 + $0x290] sm:$0xff]
  %v3226 = vld [vmem:[%s2 + $0x298] sm:$0xff]
  %v3227 = vld [vmem:[%s2 + $0x2a0] sm:$0xff]
  %v3228 = vld [vmem:[%s2 + $0x2a8] sm:$0xff]
  %v3229 = vld [vmem:[%s2 + $0x2b0] sm:$0xff]
  %v3230 = vld [vmem:[%s2 + $0x2b8] sm:$0xff]
  %v3231 = vld [vmem:[%s2 + $0x2c0] sm:$0xff]
  %v3232 = vld [vmem:[%s2 + $0x2c8] sm:$0xff]
  %v3233 = vld [vmem:[%s2 + $0x2d0] sm:$0xff]
  %v3234 = vld [vmem:[%s2 + $0x2d8] sm:$0xff]
  %v3235 = vld [vmem:[%s2 + $0x2e0] sm:$0xff]
  %v3236 = vld [vmem:[%s2 + $0x2e8] sm:$0xff]
  %v3237 = vld [vmem:[%s2 + $0x2f0] sm:$0xff]
  %v3238 = vld [vmem:[%s2 + $0x2f8] sm:$0xff]
  %v3239 = vld [vmem:[#allocation2 + $0x300] sm:$0xff]
  %v3240 = vld [vmem:[#allocation2 + $0x308] sm:$0xff]
  %v3241 = vld [vmem:[#allocation2 + $0x310] sm:$0xff]
  %v3242 = vld [vmem:[#allocation2 + $0x318] sm:$0xff]
  %v3243 = vld [vmem:[#allocation2 + $0x320] sm:$0xff]
  %v3244 = vld [vmem:[#allocation2 + $0x328] sm:$0xff]
  %v3245 = vld [vmem:[#allocation2 + $0x330] sm:$0xff]
  %v3246 = vld [vmem:[#allocation2 + $0x338] sm:$0xff]
  %v3247 = vld [vmem:[#allocation2 + $0x340] sm:$0xff]
  %v3248 = vld [vmem:[#allocation2 + $0x348] sm:$0xff]
  %v3249 = vld [vmem:[#allocation2 + $0x350] sm:$0xff]
  %v3250 = vld [vmem:[#allocation2 + $0x358] sm:$0xff]
  %v3251 = vld [vmem:[#allocation2 + $0x360] sm:$0xff]
  %v3252 = vld [vmem:[#allocation2 + $0x368] sm:$0xff]
  %v3253 = vld [vmem:[#allocation2 + $0x370] sm:$0xff]
  %v3254 = vld [vmem:[#allocation2 + $0x378] sm:$0xff]
  %v3255 = vld [vmem:[#allocation2 + $0x380] sm:$0xff]
  %v3256 = vld [vmem:[#allocation2 + $0x388] sm:$0xff]
  %v3257 = vld [vmem:[#allocation2 + $0x390] sm:$0xff]
  %v3258 = vld [vmem:[#allocation2 + $0x398] sm:$0xff]
  %v3259 = vld [vmem:[#allocation2 + $0x3a0] sm:$0xff]
  %v3260 = vld [vmem:[#allocation2 + $0x3a8] sm:$0xff]
  %v3261 = vld [vmem:[#allocation2 + $0x3b0] sm:$0xff]
  %v3262 = vld [vmem:[#allocation2 + $0x3b8] sm:$0xff]
  %v3263 = vld [vmem:[#allocation2 + $0x3c0] sm:$0xff]
  %v3264 = vld [vmem:[#allocation2 + $0x3c8] sm:$0xff]
  %v3265 = vld [vmem:[#allocation2 + $0x3d0] sm:$0xff]
  %v3266 = vld [vmem:[#allocation2 + $0x3d8] sm:$0xff]
  %v3267 = vld [vmem:[#allocation2 + $0x3e0] sm:$0xff]
  %v3268 = vld [vmem:[#allocation2 + $0x3e8] sm:$0xff]
  %v3269 = vld [vmem:[#allocation2 + $0x3f0] sm:$0xff]
  %v3270 = vld [vmem:[#allocation2 + $0x3f8] sm:$0xff]
  %v3271 = vld [vmem:[#allocation2 + $0x400] sm:$0xff]
  %v3272 = vld [vmem:[#allocation2 + $0x408] sm:$0xff]
  %v3273 = vld [vmem:[#allocation2 + $0x410] sm:$0xff]
  %v3274 = vld [vmem:[#allocation2 + $0x418] sm:$0xff]
  %v3275 = vld [vmem:[#allocation2 + $0x420] sm:$0xff]
  %v3276 = vld [vmem:[#allocation2 + $0x428] sm:$0xff]
  %v3277 = vld [vmem:[#allocation2 + $0x430] sm:$0xff]
  %v3278 = vld [vmem:[#allocation2 + $0x438] sm:$0xff]
  %v3279 = vld [vmem:[#allocation2 + $0x440] sm:$0xff]
  %v3280 = vld [vmem:[#allocation2 + $0x448] sm:$0xff]
  %v3281 = vld [vmem:[#allocation2 + $0x450] sm:$0xff]
  %v3282 = vld [vmem:[#allocation2 + $0x458] sm:$0xff]
  %v3283 = vld [vmem:[#allocation2 + $0x460] sm:$0xff]
  %v3284 = vld [vmem:[#allocation2 + $0x468] sm:$0xff]
  %v3285 = vld [vmem:[#allocation2 + $0x470] sm:$0xff]
  %v3286 = vld [vmem:[#allocation2 + $0x478] sm:$0xff]
  %v3287 = vld [vmem:[#allocation2 + $0x480] sm:$0xff]
  %v3288 = vld [vmem:[#allocation2 + $0x488] sm:$0xff]
  %v3289 = vld [vmem:[#allocation2 + $0x490] sm:$0xff]
  %v3290 = vld [vmem:[#allocation2 + $0x498] sm:$0xff]
  %v3291 = vld [vmem:[#allocation2 + $0x4a0] sm:$0xff]
  %v3292 = vld [vmem:[#allocation2 + $0x4a8] sm:$0xff]
  %v3293 = vld [vmem:[#allocation2 + $0x4b0] sm:$0xff]
  %v3294 = vld [vmem:[#allocation2 + $0x4b8] sm:$0xff]
  %v3295 = vld [vmem:[#allocation2 + $0x4c0] sm:$0xff]
  %v3296 = vld [vmem:[#allocation2 + $0x4c8] sm:$0xff]
  %v3297 = vld [vmem:[#allocation2 + $0x4d0] sm:$0xff]
  %v3298 = vld [vmem:[#allocation2 + $0x4d8] sm:$0xff]
  %v3299 = vld [vmem:[#allocation2 + $0x4e0] sm:$0xff]
  %v3300 = vld [vmem:[#allocation2 + $0x4e8] sm:$0xff]
  %v3301 = vld [vmem:[#allocation2 + $0x4f0] sm:$0xff]
  %v3302 = vld [vmem:[#allocation2 + $0x4f8] sm:$0xff]
  %3303 = vmatpush.msra.mxu0 %v3254
  %3304 = vmatpush.msra.mxu0 %v3253
  %3305 = vmatpush.msra.mxu0 %v3252
  %3306 = vmatpush.msra.mxu0 %v3251
  %3307 = vmatpush.msra.mxu0 %v3250
  %3308 = vmatpush.msra.mxu0 %v3249
  %3309 = vmatpush.msra.mxu0 %v3248
  %3310 = vmatpush.msra.mxu0 %v3247
  %3311 = vmatpush.msra.mxu0 %v3246
  %3312 = vmatpush.msra.mxu0 %v3245
  %3313 = vmatpush.msra.mxu0 %v3244
  %3314 = vmatpush.msra.mxu0 %v3243
  %3315 = vmatpush.msra.mxu0 %v3242
  %3316 = vmatpush.msra.mxu0 %v3241
  %3317 = vmatpush.msra.mxu0 %v3240
  %3318 = vmatpush.msra.mxu0 %v3239
  %3319 = vmatmul.f32.gmra.mxu0 %v3143
  %v3320 = vpop.f32.mrf.mxu0
  %v3321 = vadd.f32 0.0, %v3320
  %3322 = vmatmul.f32.gmra.mxu0 %v3147
  %v3323 = vpop.f32.mrf.mxu0
  %v3324 = vadd.f32 0.0, %v3323
  %3325 = vmatmul.f32.gmra.mxu0 %v3151
  %v3326 = vpop.f32.mrf.mxu0
  %v3327 = vadd.f32 0.0, %v3326
  %3328 = vmatmul.f32.gmra.mxu0 %v3155
  %v3329 = vpop.f32.mrf.mxu0
  %v3330 = vadd.f32 0.0, %v3329
  %3331 = vmatmul.f32.gmra.mxu0 %v3159
  %v3332 = vpop.f32.mrf.mxu0
  %v3333 = vadd.f32 0.0, %v3332
  %3334 = vmatmul.f32.gmra.mxu0 %v3163
  %v3335 = vpop.f32.mrf.mxu0
  %v3336 = vadd.f32 0.0, %v3335
  %3337 = vmatmul.f32.gmra.mxu0 %v3167
  %v3338 = vpop.f32.mrf.mxu0
  %v3339 = vadd.f32 0.0, %v3338
  %3340 = vmatmul.f32.gmra.mxu0 %v3171
  %v3341 = vpop.f32.mrf.mxu0
  %v3342 = vadd.f32 0.0, %v3341
  %3343 = vmatmul.f32.gmra.mxu0 %v3175
  %v3344 = vpop.f32.mrf.mxu0
  %v3345 = vadd.f32 0.0, %v3344
  %3346 = vmatmul.f32.gmra.mxu0 %v3179
  %v3347 = vpop.f32.mrf.mxu0
  %v3348 = vadd.f32 0.0, %v3347
  %3349 = vmatmul.f32.gmra.mxu0 %v3183
  %v3350 = vpop.f32.mrf.mxu0
  %v3351 = vadd.f32 0.0, %v3350
  %3352 = vmatmul.f32.gmra.mxu0 %v3187
  %v3353 = vpop.f32.mrf.mxu0
  %v3354 = vadd.f32 0.0, %v3353
  %3355 = vmatmul.f32.gmra.mxu0 %v3191
  %v3356 = vpop.f32.mrf.mxu0
  %v3357 = vadd.f32 0.0, %v3356
  %3358 = vmatmul.f32.gmra.mxu0 %v3195
  %v3359 = vpop.f32.mrf.mxu0
  %v3360 = vadd.f32 0.0, %v3359
  %3361 = vmatmul.f32.gmra.mxu0 %v3199
  %v3362 = vpop.f32.mrf.mxu0
  %v3363 = vadd.f32 0.0, %v3362
  %3364 = vmatmul.f32.gmra.mxu0 %v3203
  %v3365 = vpop.f32.mrf.mxu0
  %v3366 = vadd.f32 0.0, %v3365
  %3367 = vmatmul.f32.gmra.mxu0 %v3207
  %v3368 = vpop.f32.mrf.mxu0
  %v3369 = vadd.f32 0.0, %v3368
  %3370 = vmatmul.f32.gmra.mxu0 %v3211
  %v3371 = vpop.f32.mrf.mxu0
  %v3372 = vadd.f32 0.0, %v3371
  %3373 = vmatmul.f32.gmra.mxu0 %v3215
  %v3374 = vpop.f32.mrf.mxu0
  %v3375 = vadd.f32 0.0, %v3374
  %3376 = vmatmul.f32.gmra.mxu0 %v3219
  %v3377 = vpop.f32.mrf.mxu0
  %v3378 = vadd.f32 0.0, %v3377
  %3379 = vmatmul.f32.gmra.mxu0 %v3223
  %v3380 = vpop.f32.mrf.mxu0
  %v3381 = vadd.f32 0.0, %v3380
  %3382 = vmatmul.f32.gmra.mxu0 %v3227
  %v3383 = vpop.f32.mrf.mxu0
  %v3384 = vadd.f32 0.0, %v3383
  %3385 = vmatmul.f32.gmra.mxu0 %v3231
  %v3386 = vpop.f32.mrf.mxu0
  %v3387 = vadd.f32 0.0, %v3386
  %3388 = vmatmul.f32.gmra.mxu0 %v3235
  %v3389 = vpop.f32.mrf.mxu0
  %v3390 = vadd.f32 0.0, %v3389
  %3391 = vdwg.mxu0
  %3392 = vmatpush.msra.mxu0 %v3270
  %3393 = vmatpush.msra.mxu0 %v3269
  %3394 = vmatpush.msra.mxu0 %v3268
  %3395 = vmatpush.msra.mxu0 %v3267
  %3396 = vmatpush.msra.mxu0 %v3266
  %3397 = vmatpush.msra.mxu0 %v3265
  %3398 = vmatpush.msra.mxu0 %v3264
  %3399 = vmatpush.msra.mxu0 %v3263
  %3400 = vmatpush.msra.mxu0 %v3262
  %3401 = vmatpush.msra.mxu0 %v3261
  %3402 = vmatpush.msra.mxu0 %v3260
  %3403 = vmatpush.msra.mxu0 %v3259
  %3404 = vmatpush.msra.mxu0 %v3258
  %3405 = vmatpush.msra.mxu0 %v3257
  %3406 = vmatpush.msra.mxu0 %v3256
  %3407 = vmatpush.msra.mxu0 %v3255
  %3408 = vmatmul.f32.gmra.mxu0 %v3144
  %v3409 = vpop.f32.mrf.mxu0
  %v3410 = vadd.f32 %v3321, %v3409
  %3411 = vmatmul.f32.gmra.mxu0 %v3148
  %v3412 = vpop.f32.mrf.mxu0
  %v3413 = vadd.f32 %v3324, %v3412
  %3414 = vmatmul.f32.gmra.mxu0 %v3152
  %v3415 = vpop.f32.mrf.mxu0
  %v3416 = vadd.f32 %v3327, %v3415
  %3417 = vmatmul.f32.gmra.mxu0 %v3156
  %v3418 = vpop.f32.mrf.mxu0
  %v3419 = vadd.f32 %v3330, %v3418
  %3420 = vmatmul.f32.gmra.mxu0 %v3160
  %v3421 = vpop.f32.mrf.mxu0
  %v3422 = vadd.f32 %v3333, %v3421
  %3423 = vmatmul.f32.gmra.mxu0 %v3164
  %v3424 = vpop.f32.mrf.mxu0
  %v3425 = vadd.f32 %v3336, %v3424
  %3426 = vmatmul.f32.gmra.mxu0 %v3168
  %v3427 = vpop.f32.mrf.mxu0
  %v3428 = vadd.f32 %v3339, %v3427
  %3429 = vmatmul.f32.gmra.mxu0 %v3172
  %v3430 = vpop.f32.mrf.mxu0
  %v3431 = vadd.f32 %v3342, %v3430
  %3432 = vmatmul.f32.gmra.mxu0 %v3176
  %v3433 = vpop.f32.mrf.mxu0
  %v3434 = vadd.f32 %v3345, %v3433
  %3435 = vmatmul.f32.gmra.mxu0 %v3180
  %v3436 = vpop.f32.mrf.mxu0
  %v3437 = vadd.f32 %v3348, %v3436
  %3438 = vmatmul.f32.gmra.mxu0 %v3184
  %v3439 = vpop.f32.mrf.mxu0
  %v3440 = vadd.f32 %v3351, %v3439
  %3441 = vmatmul.f32.gmra.mxu0 %v3188
  %v3442 = vpop.f32.mrf.mxu0
  %v3443 = vadd.f32 %v3354, %v3442
  %3444 = vmatmul.f32.gmra.mxu0 %v3192
  %v3445 = vpop.f32.mrf.mxu0
  %v3446 = vadd.f32 %v3357, %v3445
  %3447 = vmatmul.f32.gmra.mxu0 %v3196
  %v3448 = vpop.f32.mrf.mxu0
  %v3449 = vadd.f32 %v3360, %v3448
  %3450 = vmatmul.f32.gmra.mxu0 %v3200
  %v3451 = vpop.f32.mrf.mxu0
  %v3452 = vadd.f32 %v3363, %v3451
  %3453 = vmatmul.f32.gmra.mxu0 %v3204
  %v3454 = vpop.f32.mrf.mxu0
  %v3455 = vadd.f32 %v3366, %v3454
  %3456 = vmatmul.f32.gmra.mxu0 %v3208
  %v3457 = vpop.f32.mrf.mxu0
  %v3458 = vadd.f32 %v3369, %v3457
  %3459 = vmatmul.f32.gmra.mxu0 %v3212
  %v3460 = vpop.f32.mrf.mxu0
  %v3461 = vadd.f32 %v3372, %v3460
  %3462 = vmatmul.f32.gmra.mxu0 %v3216
  %v3463 = vpop.f32.mrf.mxu0
  %v3464 = vadd.f32 %v3375, %v3463
  %3465 = vmatmul.f32.gmra.mxu0 %v3220
  %v3466 = vpop.f32.mrf.mxu0
  %v3467 = vadd.f32 %v3378, %v3466
  %3468 = vmatmul.f32.gmra.mxu0 %v3224
  %v3469 = vpop.f32.mrf.mxu0
  %v3470 = vadd.f32 %v3381, %v3469
  %3471 = vmatmul.f32.gmra.mxu0 %v3228
  %v3472 = vpop.f32.mrf.mxu0
  %v3473 = vadd.f32 %v3384, %v3472
  %3474 = vmatmul.f32.gmra.mxu0 %v3232
  %v3475 = vpop.f32.mrf.mxu0
  %v3476 = vadd.f32 %v3387, %v3475
  %3477 = vmatmul.f32.gmra.mxu0 %v3236
  %v3478 = vpop.f32.mrf.mxu0
  %v3479 = vadd.f32 %v3390, %v3478
  %3480 = vdwg.mxu0
  %3481 = vmatpush.msra.mxu0 %v3286
  %3482 = vmatpush.msra.mxu0 %v3285
  %3483 = vmatpush.msra.mxu0 %v3284
  %3484 = vmatpush.msra.mxu0 %v3283
  %3485 = vmatpush.msra.mxu0 %v3282
  %3486 = vmatpush.msra.mxu0 %v3281
  %3487 = vmatpush.msra.mxu0 %v3280
  %3488 = vmatpush.msra.mxu0 %v3279
  %3489 = vmatpush.msra.mxu0 %v3278
  %3490 = vmatpush.msra.mxu0 %v3277
  %3491 = vmatpush.msra.mxu0 %v3276
  %3492 = vmatpush.msra.mxu0 %v3275
  %3493 = vmatpush.msra.mxu0 %v3274
  %3494 = vmatpush.msra.mxu0 %v3273
  %3495 = vmatpush.msra.mxu0 %v3272
  %3496 = vmatpush.msra.mxu0 %v3271
  %3497 = vmatmul.f32.gmra.mxu0 %v3145
  %v3498 = vpop.f32.mrf.mxu0
  %v3499 = vadd.f32 %v3410, %v3498
  %3500 = vmatmul.f32.gmra.mxu0 %v3149
  %v3501 = vpop.f32.mrf.mxu0
  %v3502 = vadd.f32 %v3413, %v3501
  %3503 = vmatmul.f32.gmra.mxu0 %v3153
  %v3504 = vpop.f32.mrf.mxu0
  %v3505 = vadd.f32 %v3416, %v3504
  %3506 = vmatmul.f32.gmra.mxu0 %v3157
  %v3507 = vpop.f32.mrf.mxu0
  %v3508 = vadd.f32 %v3419, %v3507
  %3509 = vmatmul.f32.gmra.mxu0 %v3161
  %v3510 = vpop.f32.mrf.mxu0
  %v3511 = vadd.f32 %v3422, %v3510
  %3512 = vmatmul.f32.gmra.mxu0 %v3165
  %v3513 = vpop.f32.mrf.mxu0
  %v3514 = vadd.f32 %v3425, %v3513
  %3515 = vmatmul.f32.gmra.mxu0 %v3169
  %v3516 = vpop.f32.mrf.mxu0
  %v3517 = vadd.f32 %v3428, %v3516
  %3518 = vmatmul.f32.gmra.mxu0 %v3173
  %v3519 = vpop.f32.mrf.mxu0
  %v3520 = vadd.f32 %v3431, %v3519
  %3521 = vmatmul.f32.gmra.mxu0 %v3177
  %v3522 = vpop.f32.mrf.mxu0
  %v3523 = vadd.f32 %v3434, %v3522
  %3524 = vmatmul.f32.gmra.mxu0 %v3181
  %v3525 = vpop.f32.mrf.mxu0
  %v3526 = vadd.f32 %v3437, %v3525
  %3527 = vmatmul.f32.gmra.mxu0 %v3185
  %v3528 = vpop.f32.mrf.mxu0
  %v3529 = vadd.f32 %v3440, %v3528
  %3530 = vmatmul.f32.gmra.mxu0 %v3189
  %v3531 = vpop.f32.mrf.mxu0
  %v3532 = vadd.f32 %v3443, %v3531
  %3533 = vmatmul.f32.gmra.mxu0 %v3193
  %v3534 = vpop.f32.mrf.mxu0
  %v3535 = vadd.f32 %v3446, %v3534
  %3536 = vmatmul.f32.gmra.mxu0 %v3197
  %v3537 = vpop.f32.mrf.mxu0
  %v3538 = vadd.f32 %v3449, %v3537
  %3539 = vmatmul.f32.gmra.mxu0 %v3201
  %v3540 = vpop.f32.mrf.mxu0
  %v3541 = vadd.f32 %v3452, %v3540
  %3542 = vmatmul.f32.gmra.mxu0 %v3205
  %v3543 = vpop.f32.mrf.mxu0
  %v3544 = vadd.f32 %v3455, %v3543
  %3545 = vmatmul.f32.gmra.mxu0 %v3209
  %v3546 = vpop.f32.mrf.mxu0
  %v3547 = vadd.f32 %v3458, %v3546
  %3548 = vmatmul.f32.gmra.mxu0 %v3213
  %v3549 = vpop.f32.mrf.mxu0
  %v3550 = vadd.f32 %v3461, %v3549
  %3551 = vmatmul.f32.gmra.mxu0 %v3217
  %v3552 = vpop.f32.mrf.mxu0
  %v3553 = vadd.f32 %v3464, %v3552
  %3554 = vmatmul.f32.gmra.mxu0 %v3221
  %v3555 = vpop.f32.mrf.mxu0
  %v3556 = vadd.f32 %v3467, %v3555
  %3557 = vmatmul.f32.gmra.mxu0 %v3225
  %v3558 = vpop.f32.mrf.mxu0
  %v3559 = vadd.f32 %v3470, %v3558
  %3560 = vmatmul.f32.gmra.mxu0 %v3229
  %v3561 = vpop.f32.mrf.mxu0
  %v3562 = vadd.f32 %v3473, %v3561
  %3563 = vmatmul.f32.gmra.mxu0 %v3233
  %v3564 = vpop.f32.mrf.mxu0
  %v3565 = vadd.f32 %v3476, %v3564
  %3566 = vmatmul.f32.gmra.mxu0 %v3237
  %v3567 = vpop.f32.mrf.mxu0
  %v3568 = vadd.f32 %v3479, %v3567
  %3569 = vdwg.mxu0
  %3570 = vmatpush.msra.mxu0 %v3302
  %3571 = vmatpush.msra.mxu0 %v3301
  %3572 = vmatpush.msra.mxu0 %v3300
  %3573 = vmatpush.msra.mxu0 %v3299
  %3574 = vmatpush.msra.mxu0 %v3298
  %3575 = vmatpush.msra.mxu0 %v3297
  %3576 = vmatpush.msra.mxu0 %v3296
  %3577 = vmatpush.msra.mxu0 %v3295
  %3578 = vmatpush.msra.mxu0 %v3294
  %3579 = vmatpush.msra.mxu0 %v3293
  %3580 = vmatpush.msra.mxu0 %v3292
  %3581 = vmatpush.msra.mxu0 %v3291
  %3582 = vmatpush.msra.mxu0 %v3290
  %3583 = vmatpush.msra.mxu0 %v3289
  %3584 = vmatpush.msra.mxu0 %v3288
  %3585 = vmatpush.msra.mxu0 %v3287
  %3586 = vmatmul.f32.gmra.mxu0 %v3146
  %v3587 = vpop.f32.mrf.mxu0
  %v3588 = vadd.f32 %v3499, %v3587
  %3589 = vmatmul.f32.gmra.mxu0 %v3150
  %v3590 = vpop.f32.mrf.mxu0
  %v3591 = vadd.f32 %v3502, %v3590
  %3592 = vmatmul.f32.gmra.mxu0 %v3154
  %v3593 = vpop.f32.mrf.mxu0
  %v3594 = vadd.f32 %v3505, %v3593
  %3595 = vmatmul.f32.gmra.mxu0 %v3158
  %v3596 = vpop.f32.mrf.mxu0
  %v3597 = vadd.f32 %v3508, %v3596
  %3598 = vmatmul.f32.gmra.mxu0 %v3162
  %v3599 = vpop.f32.mrf.mxu0
  %v3600 = vadd.f32 %v3511, %v3599
  %3601 = vmatmul.f32.gmra.mxu0 %v3166
  %v3602 = vpop.f32.mrf.mxu0
  %v3603 = vadd.f32 %v3514, %v3602
  %3604 = vmatmul.f32.gmra.mxu0 %v3170
  %v3605 = vpop.f32.mrf.mxu0
  %v3606 = vadd.f32 %v3517, %v3605
  %3607 = vmatmul.f32.gmra.mxu0 %v3174
  %v3608 = vpop.f32.mrf.mxu0
  %v3609 = vadd.f32 %v3520, %v3608
  %3610 = vmatmul.f32.gmra.mxu0 %v3178
  %v3611 = vpop.f32.mrf.mxu0
  %v3612 = vadd.f32 %v3523, %v3611
  %3613 = vmatmul.f32.gmra.mxu0 %v3182
  %v3614 = vpop.f32.mrf.mxu0
  %v3615 = vadd.f32 %v3526, %v3614
  %3616 = vmatmul.f32.gmra.mxu0 %v3186
  %v3617 = vpop.f32.mrf.mxu0
  %v3618 = vadd.f32 %v3529, %v3617
  %3619 = vmatmul.f32.gmra.mxu0 %v3190
  %v3620 = vpop.f32.mrf.mxu0
  %v3621 = vadd.f32 %v3532, %v3620
  %3622 = vmatmul.f32.gmra.mxu0 %v3194
  %v3623 = vpop.f32.mrf.mxu0
  %v3624 = vadd.f32 %v3535, %v3623
  %3625 = vmatmul.f32.gmra.mxu0 %v3198
  %v3626 = vpop.f32.mrf.mxu0
  %v3627 = vadd.f32 %v3538, %v3626
  %3628 = vmatmul.f32.gmra.mxu0 %v3202
  %v3629 = vpop.f32.mrf.mxu0
  %v3630 = vadd.f32 %v3541, %v3629
  %3631 = vmatmul.f32.gmra.mxu0 %v3206
  %v3632 = vpop.f32.mrf.mxu0
  %v3633 = vadd.f32 %v3544, %v3632
  %3634 = vmatmul.f32.gmra.mxu0 %v3210
  %v3635 = vpop.f32.mrf.mxu0
  %v3636 = vadd.f32 %v3547, %v3635
  %3637 = vmatmul.f32.gmra.mxu0 %v3214
  %v3638 = vpop.f32.mrf.mxu0
  %v3639 = vadd.f32 %v3550, %v3638
  %3640 = vmatmul.f32.gmra.mxu0 %v3218
  %v3641 = vpop.f32.mrf.mxu0
  %v3642 = vadd.f32 %v3553, %v3641
  %3643 = vmatmul.f32.gmra.mxu0 %v3222
  %v3644 = vpop.f32.mrf.mxu0
  %v3645 = vadd.f32 %v3556, %v3644
  %3646 = vmatmul.f32.gmra.mxu0 %v3226
  %v3647 = vpop.f32.mrf.mxu0
  %v3648 = vadd.f32 %v3559, %v3647
  %3649 = vmatmul.f32.gmra.mxu0 %v3230
  %v3650 = vpop.f32.mrf.mxu0
  %v3651 = vadd.f32 %v3562, %v3650
  %3652 = vmatmul.f32.gmra.mxu0 %v3234
  %v3653 = vpop.f32.mrf.mxu0
  %v3654 = vadd.f32 %v3565, %v3653
  %3655 = vmatmul.f32.gmra.mxu0 %v3238
  %v3656 = vpop.f32.mrf.mxu0
  %v3657 = vadd.f32 %v3568, %v3656
  %3658 = vdwg.mxu0
  %v3659 = vld [vmem:[%s3] sm:$0xff]
  %v3660 = vld [vmem:[%s3 + $0x8] sm:$0xff]
  %v3661 = vld [vmem:[%s3 + $0x10] sm:$0xff]
  %v3662 = vld [vmem:[%s3 + $0x18] sm:$0xff]
  %3664 = vset.pattern.permute.xlu0 0
  %3665 = vperm.xlu0 %3664, %v3659
  %v3666 = vpop.permute.xlu0 %3665
  %3669 = vset.pattern.permute.xlu0 0
  %3670 = vperm.xlu0 %3669, %v3660
  %v3671 = vpop.permute.xlu0 %3670
  %3674 = vset.pattern.permute.xlu0 0
  %3675 = vperm.xlu0 %3674, %v3661
  %v3676 = vpop.permute.xlu0 %3675
  %3679 = vset.pattern.permute.xlu0 0
  %3680 = vperm.xlu0 %3679, %v3662
  %v3681 = vpop.permute.xlu0 %3680
  %v3683 = vadd.f32 %v3588, %v3666
  %v3684 = vadd.f32 %v3591, %v3671
  %v3685 = vadd.f32 %v3594, %v3676
  %v3686 = vadd.f32 %v3597, %v3681
  %v3687 = vadd.f32 %v3600, %v3666
  %v3688 = vadd.f32 %v3603, %v3671
  %v3689 = vadd.f32 %v3606, %v3676
  %v3690 = vadd.f32 %v3609, %v3681
  %v3691 = vadd.f32 %v3612, %v3666
  %v3692 = vadd.f32 %v3615, %v3671
  %v3693 = vadd.f32 %v3618, %v3676
  %v3694 = vadd.f32 %v3621, %v3681
  %v3695 = vadd.f32 %v3624, %v3666
  %v3696 = vadd.f32 %v3627, %v3671
  %v3697 = vadd.f32 %v3630, %v3676
  %v3698 = vadd.f32 %v3633, %v3681
  %v3699 = vadd.f32 %v3636, %v3666
  %v3700 = vadd.f32 %v3639, %v3671
  %v3701 = vadd.f32 %v3642, %v3676
  %v3702 = vadd.f32 %v3645, %v3681
  %v3703 = vadd.f32 %v3648, %v3666
  %v3704 = vadd.f32 %v3651, %v3671
  %v3705 = vadd.f32 %v3654, %v3676
  %v3706 = vadd.f32 %v3657, %v3681
  %v3707 = vmax.f32 %v3683, 0.0
  %v3708 = vmax.f32 %v3684, 0.0
  %v3709 = vmax.f32 %v3685, 0.0
  %v3710 = vmax.f32 %v3686, 0.0
  %v3711 = vmax.f32 %v3687, 0.0
  %v3712 = vmax.f32 %v3688, 0.0
  %v3713 = vmax.f32 %v3689, 0.0
  %v3714 = vmax.f32 %v3690, 0.0
  %v3715 = vmax.f32 %v3691, 0.0
  %v3716 = vmax.f32 %v3692, 0.0
  %v3717 = vmax.f32 %v3693, 0.0
  %v3718 = vmax.f32 %v3694, 0.0
  %v3719 = vmax.f32 %v3695, 0.0
  %v3720 = vmax.f32 %v3696, 0.0
  %v3721 = vmax.f32 %v3697, 0.0
  %v3722 = vmax.f32 %v3698, 0.0
  %v3723 = vmax.f32 %v3699, 0.0
  %v3724 = vmax.f32 %v3700, 0.0
  %v3725 = vmax.f32 %v3701, 0.0
  %v3726 = vmax.f32 %v3702, 0.0
  %v3727 = vmax.f32 %v3703, 0.0
  %v3728 = vmax.f32 %v3704, 0.0
  %v3729 = vmax.f32 %v3705, 0.0
  %v3730 = vmax.f32 %v3706, 0.0
  %v3731 = vmax.f32 %v3707, %v3711
  %v3732 = vmax.f32 %v3708, %v3712
  %v3733 = vmax.f32 %v3709, %v3713
  %v3734 = vmax.f32 %v3710, %v3714
  %v3735 = vmax.f32 %v3715, %v3719
  %v3736 = vmax.f32 %v3716, %v3720
  %v3737 = vmax.f32 %v3717, %v3721
  %v3738 = vmax.f32 %v3718, %v3722
  %v3739 = vmax.f32 %v3723, %v3727
  %v3740 = vmax.f32 %v3724, %v3728
  %v3741 = vmax.f32 %v3725, %v3729
  %v3742 = vmax.f32 %v3726, %v3730
  %3743 = vst [vmem:[#allocation3 + $0xc0] sm:$0xff] %v3731
  %3744 = vst [vmem:[#allocation3 + $0xc8] sm:$0xff] %v3732
  %3745 = vst [vmem:[#allocation3 + $0xd0] sm:$0xff] %v3733
  %3746 = vst [vmem:[#allocation3 + $0xd8] sm:$0xff] %v3734
  %3747 = vst [vmem:[#allocation3 + $0xe0] sm:$0xff] %v3735
  %3748 = vst [vmem:[#allocation3 + $0xe8] sm:$0xff] %v3736
  %3749 = vst [vmem:[#allocation3 + $0xf0] sm:$0xff] %v3737
  %3750 = vst [vmem:[#allocation3 + $0xf8] sm:$0xff] %v3738
  %3751 = vst [vmem:[#allocation3 + $0x100] sm:$0xff] %v3739
  %3752 = vst [vmem:[#allocation3 + $0x108] sm:$0xff] %v3740
  %3753 = vst [vmem:[#allocation3 + $0x110] sm:$0xff] %v3741
  %3754 = vst [vmem:[#allocation3 + $0x118] sm:$0xff] %v3742
  %v3755 = vld [vmem:[%s2] sm:$0xff]
  %v3756 = vld [vmem:[%s2 + $0x8] sm:$0xff]
  %v3757 = vld [vmem:[%s2 + $0x10] sm:$0xff]
  %v3758 = vld [vmem:[%s2 + $0x18] sm:$0xff]
  %v3759 = vld [vmem:[%s2 + $0x20] sm:$0xff]
  %v3760 = vld [vmem:[%s2 + $0x28] sm:$0xff]
  %v3761 = vld [vmem:[%s2 + $0x30] sm:$0xff]
  %v3762 = vld [vmem:[%s2 + $0x38] sm:$0xff]
  %v3763 = vld [vmem:[%s2 + $0x40] sm:$0xff]
  %v3764 = vld [vmem:[%s2 + $0x48] sm:$0xff]
  %v3765 = vld [vmem:[%s2 + $0x50] sm:$0xff]
  %v3766 = vld [vmem:[%s2 + $0x58] sm:$0xff]
  %v3767 = vld [vmem:[%s2 + $0x60] sm:$0xff]
  %v3768 = vld [vmem:[%s2 + $0x68] sm:$0xff]
  %v3769 = vld [vmem:[%s2 + $0x70] sm:$0xff]
  %v3770 = vld [vmem:[%s2 + $0x78] sm:$0xff]
  %v3771 = vld [vmem:[%s2 + $0x80] sm:$0xff]
  %v3772 = vld [vmem:[%s2 + $0x88] sm:$0xff]
  %v3773 = vld [vmem:[%s2 + $0x90] sm:$0xff]
  %v3774 = vld [vmem:[%s2 + $0x98] sm:$0xff]
  %v3775 = vld [vmem:[%s2 + $0xa0] sm:$0xff]
  %v3776 = vld [vmem:[%s2 + $0xa8] sm:$0xff]
  %v3777 = vld [vmem:[%s2 + $0xb0] sm:$0xff]
  %v3778 = vld [vmem:[%s2 + $0xb8] sm:$0xff]
  %v3779 = vld [vmem:[%s2 + $0xc0] sm:$0xff]
  %v3780 = vld [vmem:[%s2 + $0xc8] sm:$0xff]
  %v3781 = vld [vmem:[%s2 + $0xd0] sm:$0xff]
  %v3782 = vld [vmem:[%s2 + $0xd8] sm:$0xff]
  %v3783 = vld [vmem:[%s2 + $0xe0] sm:$0xff]
  %v3784 = vld [vmem:[%s2 + $0xe8] sm:$0xff]
  %v3785 = vld [vmem:[%s2 + $0xf0] sm:$0xff]
  %v3786 = vld [vmem:[%s2 + $0xf8] sm:$0xff]
  %v3787 = vld [vmem:[%s2 + $0x100] sm:$0xff]
  %v3788 = vld [vmem:[%s2 + $0x108] sm:$0xff]
  %v3789 = vld [vmem:[%s2 + $0x110] sm:$0xff]
  %v3790 = vld [vmem:[%s2 + $0x118] sm:$0xff]
  %v3791 = vld [vmem:[%s2 + $0x120] sm:$0xff]
  %v3792 = vld [vmem:[%s2 + $0x128] sm:$0xff]
  %v3793 = vld [vmem:[%s2 + $0x130] sm:$0xff]
  %v3794 = vld [vmem:[%s2 + $0x138] sm:$0xff]
  %v3795 = vld [vmem:[%s2 + $0x140] sm:$0xff]
  %v3796 = vld [vmem:[%s2 + $0x148] sm:$0xff]
  %v3797 = vld [vmem:[%s2 + $0x150] sm:$0xff]
  %v3798 = vld [vmem:[%s2 + $0x158] sm:$0xff]
  %v3799 = vld [vmem:[%s2 + $0x160] sm:$0xff]
  %v3800 = vld [vmem:[%s2 + $0x168] sm:$0xff]
  %v3801 = vld [vmem:[%s2 + $0x170] sm:$0xff]
  %v3802 = vld [vmem:[%s2 + $0x178] sm:$0xff]
  %v3803 = vld [vmem:[%s2 + $0x180] sm:$0xff]
  %v3804 = vld [vmem:[%s2 + $0x188] sm:$0xff]
  %v3805 = vld [vmem:[%s2 + $0x190] sm:$0xff]
  %v3806 = vld [vmem:[%s2 + $0x198] sm:$0xff]
  %v3807 = vld [vmem:[%s2 + $0x1a0] sm:$0xff]
  %v3808 = vld [vmem:[%s2 + $0x1a8] sm:$0xff]
  %v3809 = vld [vmem:[%s2 + $0x1b0] sm:$0xff]
  %v3810 = vld [vmem:[%s2 + $0x1b8] sm:$0xff]
  %v3811 = vld [vmem:[%s2 + $0x1c0] sm:$0xff]
  %v3812 = vld [vmem:[%s2 + $0x1c8] sm:$0xff]
  %v3813 = vld [vmem:[%s2 + $0x1d0] sm:$0xff]
  %v3814 = vld [vmem:[%s2 + $0x1d8] sm:$0xff]
  %v3815 = vld [vmem:[%s2 + $0x1e0] sm:$0xff]
  %v3816 = vld [vmem:[%s2 + $0x1e8] sm:$0xff]
  %v3817 = vld [vmem:[%s2 + $0x1f0] sm:$0xff]
  %v3818 = vld [vmem:[%s2 + $0x1f8] sm:$0xff]
  %v3819 = vld [vmem:[%s2 + $0x200] sm:$0xff]
  %v3820 = vld [vmem:[%s2 + $0x208] sm:$0xff]
  %v3821 = vld [vmem:[%s2 + $0x210] sm:$0xff]
  %v3822 = vld [vmem:[%s2 + $0x218] sm:$0xff]
  %v3823 = vld [vmem:[%s2 + $0x220] sm:$0xff]
  %v3824 = vld [vmem:[%s2 + $0x228] sm:$0xff]
  %v3825 = vld [vmem:[%s2 + $0x230] sm:$0xff]
  %v3826 = vld [vmem:[%s2 + $0x238] sm:$0xff]
  %v3827 = vld [vmem:[%s2 + $0x240] sm:$0xff]
  %v3828 = vld [vmem:[%s2 + $0x248] sm:$0xff]
  %v3829 = vld [vmem:[%s2 + $0x250] sm:$0xff]
  %v3830 = vld [vmem:[%s2 + $0x258] sm:$0xff]
  %v3831 = vld [vmem:[%s2 + $0x260] sm:$0xff]
  %v3832 = vld [vmem:[%s2 + $0x268] sm:$0xff]
  %v3833 = vld [vmem:[%s2 + $0x270] sm:$0xff]
  %v3834 = vld [vmem:[%s2 + $0x278] sm:$0xff]
  %v3835 = vld [vmem:[%s2 + $0x280] sm:$0xff]
  %v3836 = vld [vmem:[%s2 + $0x288] sm:$0xff]
  %v3837 = vld [vmem:[%s2 + $0x290] sm:$0xff]
  %v3838 = vld [vmem:[%s2 + $0x298] sm:$0xff]
  %v3839 = vld [vmem:[%s2 + $0x2a0] sm:$0xff]
  %v3840 = vld [vmem:[%s2 + $0x2a8] sm:$0xff]
  %v3841 = vld [vmem:[%s2 + $0x2b0] sm:$0xff]
  %v3842 = vld [vmem:[%s2 + $0x2b8] sm:$0xff]
  %v3843 = vld [vmem:[%s2 + $0x2c0] sm:$0xff]
  %v3844 = vld [vmem:[%s2 + $0x2c8] sm:$0xff]
  %v3845 = vld [vmem:[%s2 + $0x2d0] sm:$0xff]
  %v3846 = vld [vmem:[%s2 + $0x2d8] sm:$0xff]
  %v3847 = vld [vmem:[%s2 + $0x2e0] sm:$0xff]
  %v3848 = vld [vmem:[%s2 + $0x2e8] sm:$0xff]
  %v3849 = vld [vmem:[%s2 + $0x2f0] sm:$0xff]
  %v3850 = vld [vmem:[%s2 + $0x2f8] sm:$0xff]
  %v3851 = vld [vmem:[#allocation2 + $0x480] sm:$0xff]
  %v3852 = vld [vmem:[#allocation2 + $0x488] sm:$0xff]
  %v3853 = vld [vmem:[#allocation2 + $0x490] sm:$0xff]
  %v3854 = vld [vmem:[#allocation2 + $0x498] sm:$0xff]
  %v3855 = vld [vmem:[#allocation2 + $0x4a0] sm:$0xff]
  %v3856 = vld [vmem:[#allocation2 + $0x4a8] sm:$0xff]
  %v3857 = vld [vmem:[#allocation2 + $0x4b0] sm:$0xff]
  %v3858 = vld [vmem:[#allocation2 + $0x4b8] sm:$0xff]
  %v3859 = vld [vmem:[#allocation2 + $0x4c0] sm:$0xff]
  %v3860 = vld [vmem:[#allocation2 + $0x4c8] sm:$0xff]
  %v3861 = vld [vmem:[#allocation2 + $0x4d0] sm:$0xff]
  %v3862 = vld [vmem:[#allocation2 + $0x4d8] sm:$0xff]
  %v3863 = vld [vmem:[#allocation2 + $0x4e0] sm:$0xff]
  %v3864 = vld [vmem:[#allocation2 + $0x4e8] sm:$0xff]
  %v3865 = vld [vmem:[#allocation2 + $0x4f0] sm:$0xff]
  %v3866 = vld [vmem:[#allocation2 + $0x4f8] sm:$0xff]
  %v3867 = vld [vmem:[#allocation2 + $0x500] sm:$0xff]
  %v3868 = vld [vmem:[#allocation2 + $0x508] sm:$0xff]
  %v3869 = vld [vmem:[#allocation2 + $0x510] sm:$0xff]
  %v3870 = vld [vmem:[#allocation2 + $0x518] sm:$0xff]
  %v3871 = vld [vmem:[#allocation2 + $0x520] sm:$0xff]
  %v3872 = vld [vmem:[#allocation2 + $0x528] sm:$0xff]
  %v3873 = vld [vmem:[#allocation2 + $0x530] sm:$0xff]
  %v3874 = vld [vmem:[#allocation2 + $0x538] sm:$0xff]
  %v3875 = vld [vmem:[#allocation2 + $0x540] sm:$0xff]
  %v3876 = vld [vmem:[#allocation2 + $0x548] sm:$0xff]
  %v3877 = vld [vmem:[#allocation2 + $0x550] sm:$0xff]
  %v3878 = vld [vmem:[#allocation2 + $0x558] sm:$0xff]
  %v3879 = vld [vmem:[#allocation2 + $0x560] sm:$0xff]
  %v3880 = vld [vmem:[#allocation2 + $0x568] sm:$0xff]
  %v3881 = vld [vmem:[#allocation2 + $0x570] sm:$0xff]
  %v3882 = vld [vmem:[#allocation2 + $0x578] sm:$0xff]
  %v3883 = vld [vmem:[#allocation2 + $0x580] sm:$0xff]
  %v3884 = vld [vmem:[#allocation2 + $0x588] sm:$0xff]
  %v3885 = vld [vmem:[#allocation2 + $0x590] sm:$0xff]
  %v3886 = vld [vmem:[#allocation2 + $0x598] sm:$0xff]
  %v3887 = vld [vmem:[#allocation2 + $0x5a0] sm:$0xff]
  %v3888 = vld [vmem:[#allocation2 + $0x5a8] sm:$0xff]
  %v3889 = vld [vmem:[#allocation2 + $0x5b0] sm:$0xff]
  %v3890 = vld [vmem:[#allocation2 + $0x5b8] sm:$0xff]
  %v3891 = vld [vmem:[#allocation2 + $0x5c0] sm:$0xff]
  %v3892 = vld [vmem:[#allocation2 + $0x5c8] sm:$0xff]
  %v3893 = vld [vmem:[#allocation2 + $0x5d0] sm:$0xff]
  %v3894 = vld [vmem:[#allocation2 + $0x5d8] sm:$0xff]
  %v3895 = vld [vmem:[#allocation2 + $0x5e0] sm:$0xff]
  %v3896 = vld [vmem:[#allocation2 + $0x5e8] sm:$0xff]
  %v3897 = vld [vmem:[#allocation2 + $0x5f0] sm:$0xff]
  %v3898 = vld [vmem:[#allocation2 + $0x5f8] sm:$0xff]
  %v3899 = vld [vmem:[#allocation2 + $0x600] sm:$0xff]
  %v3900 = vld [vmem:[#allocation2 + $0x608] sm:$0xff]
  %v3901 = vld [vmem:[#allocation2 + $0x610] sm:$0xff]
  %v3902 = vld [vmem:[#allocation2 + $0x618] sm:$0xff]
  %v3903 = vld [vmem:[#allocation2 + $0x620] sm:$0xff]
  %v3904 = vld [vmem:[#allocation2 + $0x628] sm:$0xff]
  %v3905 = vld [vmem:[#allocation2 + $0x630] sm:$0xff]
  %v3906 = vld [vmem:[#allocation2 + $0x638] sm:$0xff]
  %v3907 = vld [vmem:[#allocation2 + $0x640] sm:$0xff]
  %v3908 = vld [vmem:[#allocation2 + $0x648] sm:$0xff]
  %v3909 = vld [vmem:[#allocation2 + $0x650] sm:$0xff]
  %v3910 = vld [vmem:[#allocation2 + $0x658] sm:$0xff]
  %v3911 = vld [vmem:[#allocation2 + $0x660] sm:$0xff]
  %v3912 = vld [vmem:[#allocation2 + $0x668] sm:$0xff]
  %v3913 = vld [vmem:[#allocation2 + $0x670] sm:$0xff]
  %v3914 = vld [vmem:[#allocation2 + $0x678] sm:$0xff]
  %3915 = vmatpush.msra.mxu0 %v3866
  %3916 = vmatpush.msra.mxu0 %v3865
  %3917 = vmatpush.msra.mxu0 %v3864
  %3918 = vmatpush.msra.mxu0 %v3863
  %3919 = vmatpush.msra.mxu0 %v3862
  %3920 = vmatpush.msra.mxu0 %v3861
  %3921 = vmatpush.msra.mxu0 %v3860
  %3922 = vmatpush.msra.mxu0 %v3859
  %3923 = vmatpush.msra.mxu0 %v3858
  %3924 = vmatpush.msra.mxu0 %v3857
  %3925 = vmatpush.msra.mxu0 %v3856
  %3926 = vmatpush.msra.mxu0 %v3855
  %3927 = vmatpush.msra.mxu0 %v3854
  %3928 = vmatpush.msra.mxu0 %v3853
  %3929 = vmatpush.msra.mxu0 %v3852
  %3930 = vmatpush.msra.mxu0 %v3851
  %3931 = vmatmul.f32.gmra.mxu0 %v3755
  %v3932 = vpop.f32.mrf.mxu0
  %v3933 = vadd.f32 0.0, %v3932
  %3934 = vmatmul.f32.gmra.mxu0 %v3759
  %v3935 = vpop.f32.mrf.mxu0
  %v3936 = vadd.f32 0.0, %v3935
  %3937 = vmatmul.f32.gmra.mxu0 %v3763
  %v3938 = vpop.f32.mrf.mxu0
  %v3939 = vadd.f32 0.0, %v3938
  %3940 = vmatmul.f32.gmra.mxu0 %v3767
  %v3941 = vpop.f32.mrf.mxu0
  %v3942 = vadd.f32 0.0, %v3941
  %3943 = vmatmul.f32.gmra.mxu0 %v3771
  %v3944 = vpop.f32.mrf.mxu0
  %v3945 = vadd.f32 0.0, %v3944
  %3946 = vmatmul.f32.gmra.mxu0 %v3775
  %v3947 = vpop.f32.mrf.mxu0
  %v3948 = vadd.f32 0.0, %v3947
  %3949 = vmatmul.f32.gmra.mxu0 %v3779
  %v3950 = vpop.f32.mrf.mxu0
  %v3951 = vadd.f32 0.0, %v3950
  %3952 = vmatmul.f32.gmra.mxu0 %v3783
  %v3953 = vpop.f32.mrf.mxu0
  %v3954 = vadd.f32 0.0, %v3953
  %3955 = vmatmul.f32.gmra.mxu0 %v3787
  %v3956 = vpop.f32.mrf.mxu0
  %v3957 = vadd.f32 0.0, %v3956
  %3958 = vmatmul.f32.gmra.mxu0 %v3791
  %v3959 = vpop.f32.mrf.mxu0
  %v3960 = vadd.f32 0.0, %v3959
  %3961 = vmatmul.f32.gmra.mxu0 %v3795
  %v3962 = vpop.f32.mrf.mxu0
  %v3963 = vadd.f32 0.0, %v3962
  %3964 = vmatmul.f32.gmra.mxu0 %v3799
  %v3965 = vpop.f32.mrf.mxu0
  %v3966 = vadd.f32 0.0, %v3965
  %3967 = vmatmul.f32.gmra.mxu0 %v3803
  %v3968 = vpop.f32.mrf.mxu0
  %v3969 = vadd.f32 0.0, %v3968
  %3970 = vmatmul.f32.gmra.mxu0 %v3807
  %v3971 = vpop.f32.mrf.mxu0
  %v3972 = vadd.f32 0.0, %v3971
  %3973 = vmatmul.f32.gmra.mxu0 %v3811
  %v3974 = vpop.f32.mrf.mxu0
  %v3975 = vadd.f32 0.0, %v3974
  %3976 = vmatmul.f32.gmra.mxu0 %v3815
  %v3977 = vpop.f32.mrf.mxu0
  %v3978 = vadd.f32 0.0, %v3977
  %3979 = vmatmul.f32.gmra.mxu0 %v3819
  %v3980 = vpop.f32.mrf.mxu0
  %v3981 = vadd.f32 0.0, %v3980
  %3982 = vmatmul.f32.gmra.mxu0 %v3823
  %v3983 = vpop.f32.mrf.mxu0
  %v3984 = vadd.f32 0.0, %v3983
  %3985 = vmatmul.f32.gmra.mxu0 %v3827
  %v3986 = vpop.f32.mrf.mxu0
  %v3987 = vadd.f32 0.0, %v3986
  %3988 = vmatmul.f32.gmra.mxu0 %v3831
  %v3989 = vpop.f32.mrf.mxu0
  %v3990 = vadd.f32 0.0, %v3989
  %3991 = vmatmul.f32.gmra.mxu0 %v3835
  %v3992 = vpop.f32.mrf.mxu0
  %v3993 = vadd.f32 0.0, %v3992
  %3994 = vmatmul.f32.gmra.mxu0 %v3839
  %v3995 = vpop.f32.mrf.mxu0
  %v3996 = vadd.f32 0.0, %v3995
  %3997 = vmatmul.f32.gmra.mxu0 %v3843
  %v3998 = vpop.f32.mrf.mxu0
  %v3999 = vadd.f32 0.0, %v3998
  %4000 = vmatmul.f32.gmra.mxu0 %v3847
  %v4001 = vpop.f32.mrf.mxu0
  %v4002 = vadd.f32 0.0, %v4001
  %4003 = vdwg.mxu0
  %4004 = vmatpush.msra.mxu0 %v3882
  %4005 = vmatpush.msra.mxu0 %v3881
  %4006 = vmatpush.msra.mxu0 %v3880
  %4007 = vmatpush.msra.mxu0 %v3879
  %4008 = vmatpush.msra.mxu0 %v3878
  %4009 = vmatpush.msra.mxu0 %v3877
  %4010 = vmatpush.msra.mxu0 %v3876
  %4011 = vmatpush.msra.mxu0 %v3875
  %4012 = vmatpush.msra.mxu0 %v3874
  %4013 = vmatpush.msra.mxu0 %v3873
  %4014 = vmatpush.msra.mxu0 %v3872
  %4015 = vmatpush.msra.mxu0 %v3871
  %4016 = vmatpush.msra.mxu0 %v3870
  %4017 = vmatpush.msra.mxu0 %v3869
  %4018 = vmatpush.msra.mxu0 %v3868
  %4019 = vmatpush.msra.mxu0 %v3867
  %4020 = vmatmul.f32.gmra.mxu0 %v3756
  %v4021 = vpop.f32.mrf.mxu0
  %v4022 = vadd.f32 %v3933, %v4021
  %4023 = vmatmul.f32.gmra.mxu0 %v3760
  %v4024 = vpop.f32.mrf.mxu0
  %v4025 = vadd.f32 %v3936, %v4024
  %4026 = vmatmul.f32.gmra.mxu0 %v3764
  %v4027 = vpop.f32.mrf.mxu0
  %v4028 = vadd.f32 %v3939, %v4027
  %4029 = vmatmul.f32.gmra.mxu0 %v3768
  %v4030 = vpop.f32.mrf.mxu0
  %v4031 = vadd.f32 %v3942, %v4030
  %4032 = vmatmul.f32.gmra.mxu0 %v3772
  %v4033 = vpop.f32.mrf.mxu0
  %v4034 = vadd.f32 %v3945, %v4033
  %4035 = vmatmul.f32.gmra.mxu0 %v3776
  %v4036 = vpop.f32.mrf.mxu0
  %v4037 = vadd.f32 %v3948, %v4036
  %4038 = vmatmul.f32.gmra.mxu0 %v3780
  %v4039 = vpop.f32.mrf.mxu0
  %v4040 = vadd.f32 %v3951, %v4039
  %4041 = vmatmul.f32.gmra.mxu0 %v3784
  %v4042 = vpop.f32.mrf.mxu0
  %v4043 = vadd.f32 %v3954, %v4042
  %4044 = vmatmul.f32.gmra.mxu0 %v3788
  %v4045 = vpop.f32.mrf.mxu0
  %v4046 = vadd.f32 %v3957, %v4045
  %4047 = vmatmul.f32.gmra.mxu0 %v3792
  %v4048 = vpop.f32.mrf.mxu0
  %v4049 = vadd.f32 %v3960, %v4048
  %4050 = vmatmul.f32.gmra.mxu0 %v3796
  %v4051 = vpop.f32.mrf.mxu0
  %v4052 = vadd.f32 %v3963, %v4051
  %4053 = vmatmul.f32.gmra.mxu0 %v3800
  %v4054 = vpop.f32.mrf.mxu0
  %v4055 = vadd.f32 %v3966, %v4054
  %4056 = vmatmul.f32.gmra.mxu0 %v3804
  %v4057 = vpop.f32.mrf.mxu0
  %v4058 = vadd.f32 %v3969, %v4057
  %4059 = vmatmul.f32.gmra.mxu0 %v3808
  %v4060 = vpop.f32.mrf.mxu0
  %v4061 = vadd.f32 %v3972, %v4060
  %4062 = vmatmul.f32.gmra.mxu0 %v3812
  %v4063 = vpop.f32.mrf.mxu0
  %v4064 = vadd.f32 %v3975, %v4063
  %4065 = vmatmul.f32.gmra.mxu0 %v3816
  %v4066 = vpop.f32.mrf.mxu0
  %v4067 = vadd.f32 %v3978, %v4066
  %4068 = vmatmul.f32.gmra.mxu0 %v3820
  %v4069 = vpop.f32.mrf.mxu0
  %v4070 = vadd.f32 %v3981, %v4069
  %4071 = vmatmul.f32.gmra.mxu0 %v3824
  %v4072 = vpop.f32.mrf.mxu0
  %v4073 = vadd.f32 %v3984, %v4072
  %4074 = vmatmul.f32.gmra.mxu0 %v3828
  %v4075 = vpop.f32.mrf.mxu0
  %v4076 = vadd.f32 %v3987, %v4075
  %4077 = vmatmul.f32.gmra.mxu0 %v3832
  %v4078 = vpop.f32.mrf.mxu0
  %v4079 = vadd.f32 %v3990, %v4078
  %4080 = vmatmul.f32.gmra.mxu0 %v3836
  %v4081 = vpop.f32.mrf.mxu0
  %v4082 = vadd.f32 %v3993, %v4081
  %4083 = vmatmul.f32.gmra.mxu0 %v3840
  %v4084 = vpop.f32.mrf.mxu0
  %v4085 = vadd.f32 %v3996, %v4084
  %4086 = vmatmul.f32.gmra.mxu0 %v3844
  %v4087 = vpop.f32.mrf.mxu0
  %v4088 = vadd.f32 %v3999, %v4087
  %4089 = vmatmul.f32.gmra.mxu0 %v3848
  %v4090 = vpop.f32.mrf.mxu0
  %v4091 = vadd.f32 %v4002, %v4090
  %4092 = vdwg.mxu0
  %4093 = vmatpush.msra.mxu0 %v3898
  %4094 = vmatpush.msra.mxu0 %v3897
  %4095 = vmatpush.msra.mxu0 %v3896
  %4096 = vmatpush.msra.mxu0 %v3895
  %4097 = vmatpush.msra.mxu0 %v3894
  %4098 = vmatpush.msra.mxu0 %v3893
  %4099 = vmatpush.msra.mxu0 %v3892
  %4100 = vmatpush.msra.mxu0 %v3891
  %4101 = vmatpush.msra.mxu0 %v3890
  %4102 = vmatpush.msra.mxu0 %v3889
  %4103 = vmatpush.msra.mxu0 %v3888
  %4104 = vmatpush.msra.mxu0 %v3887
  %4105 = vmatpush.msra.mxu0 %v3886
  %4106 = vmatpush.msra.mxu0 %v3885
  %4107 = vmatpush.msra.mxu0 %v3884
  %4108 = vmatpush.msra.mxu0 %v3883
  %4109 = vmatmul.f32.gmra.mxu0 %v3757
  %v4110 = vpop.f32.mrf.mxu0
  %v4111 = vadd.f32 %v4022, %v4110
  %4112 = vmatmul.f32.gmra.mxu0 %v3761
  %v4113 = vpop.f32.mrf.mxu0
  %v4114 = vadd.f32 %v4025, %v4113
  %4115 = vmatmul.f32.gmra.mxu0 %v3765
  %v4116 = vpop.f32.mrf.mxu0
  %v4117 = vadd.f32 %v4028, %v4116
  %4118 = vmatmul.f32.gmra.mxu0 %v3769
  %v4119 = vpop.f32.mrf.mxu0
  %v4120 = vadd.f32 %v4031, %v4119
  %4121 = vmatmul.f32.gmra.mxu0 %v3773
  %v4122 = vpop.f32.mrf.mxu0
  %v4123 = vadd.f32 %v4034, %v4122
  %4124 = vmatmul.f32.gmra.mxu0 %v3777
  %v4125 = vpop.f32.mrf.mxu0
  %v4126 = vadd.f32 %v4037, %v4125
  %4127 = vmatmul.f32.gmra.mxu0 %v3781
  %v4128 = vpop.f32.mrf.mxu0
  %v4129 = vadd.f32 %v4040, %v4128
  %4130 = vmatmul.f32.gmra.mxu0 %v3785
  %v4131 = vpop.f32.mrf.mxu0
  %v4132 = vadd.f32 %v4043, %v4131
  %4133 = vmatmul.f32.gmra.mxu0 %v3789
  %v4134 = vpop.f32.mrf.mxu0
  %v4135 = vadd.f32 %v4046, %v4134
  %4136 = vmatmul.f32.gmra.mxu0 %v3793
  %v4137 = vpop.f32.mrf.mxu0
  %v4138 = vadd.f32 %v4049, %v4137
  %4139 = vmatmul.f32.gmra.mxu0 %v3797
  %v4140 = vpop.f32.mrf.mxu0
  %v4141 = vadd.f32 %v4052, %v4140
  %4142 = vmatmul.f32.gmra.mxu0 %v3801
  %v4143 = vpop.f32.mrf.mxu0
  %v4144 = vadd.f32 %v4055, %v4143
  %4145 = vmatmul.f32.gmra.mxu0 %v3805
  %v4146 = vpop.f32.mrf.mxu0
  %v4147 = vadd.f32 %v4058, %v4146
  %4148 = vmatmul.f32.gmra.mxu0 %v3809
  %v4149 = vpop.f32.mrf.mxu0
  %v4150 = vadd.f32 %v4061, %v4149
  %4151 = vmatmul.f32.gmra.mxu0 %v3813
  %v4152 = vpop.f32.mrf.mxu0
  %v4153 = vadd.f32 %v4064, %v4152
  %4154 = vmatmul.f32.gmra.mxu0 %v3817
  %v4155 = vpop.f32.mrf.mxu0
  %v4156 = vadd.f32 %v4067, %v4155
  %4157 = vmatmul.f32.gmra.mxu0 %v3821
  %v4158 = vpop.f32.mrf.mxu0
  %v4159 = vadd.f32 %v4070, %v4158
  %4160 = vmatmul.f32.gmra.mxu0 %v3825
  %v4161 = vpop.f32.mrf.mxu0
  %v4162 = vadd.f32 %v4073, %v4161
  %4163 = vmatmul.f32.gmra.mxu0 %v3829
  %v4164 = vpop.f32.mrf.mxu0
  %v4165 = vadd.f32 %v4076, %v4164
  %4166 = vmatmul.f32.gmra.mxu0 %v3833
  %v4167 = vpop.f32.mrf.mxu0
  %v4168 = vadd.f32 %v4079, %v4167
  %4169 = vmatmul.f32.gmra.mxu0 %v3837
  %v4170 = vpop.f32.mrf.mxu0
  %v4171 = vadd.f32 %v4082, %v4170
  %4172 = vmatmul.f32.gmra.mxu0 %v3841
  %v4173 = vpop.f32.mrf.mxu0
  %v4174 = vadd.f32 %v4085, %v4173
  %4175 = vmatmul.f32.gmra.mxu0 %v3845
  %v4176 = vpop.f32.mrf.mxu0
  %v4177 = vadd.f32 %v4088, %v4176
  %4178 = vmatmul.f32.gmra.mxu0 %v3849
  %v4179 = vpop.f32.mrf.mxu0
  %v4180 = vadd.f32 %v4091, %v4179
  %4181 = vdwg.mxu0
  %4182 = vmatpush.msra.mxu0 %v3914
  %4183 = vmatpush.msra.mxu0 %v3913
  %4184 = vmatpush.msra.mxu0 %v3912
  %4185 = vmatpush.msra.mxu0 %v3911
  %4186 = vmatpush.msra.mxu0 %v3910
  %4187 = vmatpush.msra.mxu0 %v3909
  %4188 = vmatpush.msra.mxu0 %v3908
  %4189 = vmatpush.msra.mxu0 %v3907
  %4190 = vmatpush.msra.mxu0 %v3906
  %4191 = vmatpush.msra.mxu0 %v3905
  %4192 = vmatpush.msra.mxu0 %v3904
  %4193 = vmatpush.msra.mxu0 %v3903
  %4194 = vmatpush.msra.mxu0 %v3902
  %4195 = vmatpush.msra.mxu0 %v3901
  %4196 = vmatpush.msra.mxu0 %v3900
  %4197 = vmatpush.msra.mxu0 %v3899
  %4198 = vmatmul.f32.gmra.mxu0 %v3758
  %v4199 = vpop.f32.mrf.mxu0
  %v4200 = vadd.f32 %v4111, %v4199
  %4201 = vmatmul.f32.gmra.mxu0 %v3762
  %v4202 = vpop.f32.mrf.mxu0
  %v4203 = vadd.f32 %v4114, %v4202
  %4204 = vmatmul.f32.gmra.mxu0 %v3766
  %v4205 = vpop.f32.mrf.mxu0
  %v4206 = vadd.f32 %v4117, %v4205
  %4207 = vmatmul.f32.gmra.mxu0 %v3770
  %v4208 = vpop.f32.mrf.mxu0
  %v4209 = vadd.f32 %v4120, %v4208
  %4210 = vmatmul.f32.gmra.mxu0 %v3774
  %v4211 = vpop.f32.mrf.mxu0
  %v4212 = vadd.f32 %v4123, %v4211
  %4213 = vmatmul.f32.gmra.mxu0 %v3778
  %v4214 = vpop.f32.mrf.mxu0
  %v4215 = vadd.f32 %v4126, %v4214
  %4216 = vmatmul.f32.gmra.mxu0 %v3782
  %v4217 = vpop.f32.mrf.mxu0
  %v4218 = vadd.f32 %v4129, %v4217
  %4219 = vmatmul.f32.gmra.mxu0 %v3786
  %v4220 = vpop.f32.mrf.mxu0
  %v4221 = vadd.f32 %v4132, %v4220
  %4222 = vmatmul.f32.gmra.mxu0 %v3790
  %v4223 = vpop.f32.mrf.mxu0
  %v4224 = vadd.f32 %v4135, %v4223
  %4225 = vmatmul.f32.gmra.mxu0 %v3794
  %v4226 = vpop.f32.mrf.mxu0
  %v4227 = vadd.f32 %v4138, %v4226
  %4228 = vmatmul.f32.gmra.mxu0 %v3798
  %v4229 = vpop.f32.mrf.mxu0
  %v4230 = vadd.f32 %v4141, %v4229
  %4231 = vmatmul.f32.gmra.mxu0 %v3802
  %v4232 = vpop.f32.mrf.mxu0
  %v4233 = vadd.f32 %v4144, %v4232
  %4234 = vmatmul.f32.gmra.mxu0 %v3806
  %v4235 = vpop.f32.mrf.mxu0
  %v4236 = vadd.f32 %v4147, %v4235
  %4237 = vmatmul.f32.gmra.mxu0 %v3810
  %v4238 = vpop.f32.mrf.mxu0
  %v4239 = vadd.f32 %v4150, %v4238
  %4240 = vmatmul.f32.gmra.mxu0 %v3814
  %v4241 = vpop.f32.mrf.mxu0
  %v4242 = vadd.f32 %v4153, %v4241
  %4243 = vmatmul.f32.gmra.mxu0 %v3818
  %v4244 = vpop.f32.mrf.mxu0
  %v4245 = vadd.f32 %v4156, %v4244
  %4246 = vmatmul.f32.gmra.mxu0 %v3822
  %v4247 = vpop.f32.mrf.mxu0
  %v4248 = vadd.f32 %v4159, %v4247
  %4249 = vmatmul.f32.gmra.mxu0 %v3826
  %v4250 = vpop.f32.mrf.mxu0
  %v4251 = vadd.f32 %v4162, %v4250
  %4252 = vmatmul.f32.gmra.mxu0 %v3830
  %v4253 = vpop.f32.mrf.mxu0
  %v4254 = vadd.f32 %v4165, %v4253
  %4255 = vmatmul.f32.gmra.mxu0 %v3834
  %v4256 = vpop.f32.mrf.mxu0
  %v4257 = vadd.f32 %v4168, %v4256
  %4258 = vmatmul.f32.gmra.mxu0 %v3838
  %v4259 = vpop.f32.mrf.mxu0
  %v4260 = vadd.f32 %v4171, %v4259
  %4261 = vmatmul.f32.gmra.mxu0 %v3842
  %v4262 = vpop.f32.mrf.mxu0
  %v4263 = vadd.f32 %v4174, %v4262
  %4264 = vmatmul.f32.gmra.mxu0 %v3846
  %v4265 = vpop.f32.mrf.mxu0
  %v4266 = vadd.f32 %v4177, %v4265
  %4267 = vmatmul.f32.gmra.mxu0 %v3850
  %v4268 = vpop.f32.mrf.mxu0
  %v4269 = vadd.f32 %v4180, %v4268
  %4270 = vdwg.mxu0
  %v4271 = vld [vmem:[%s3] sm:$0xff]
  %v4272 = vld [vmem:[%s3 + $0x8] sm:$0xff]
  %v4273 = vld [vmem:[%s3 + $0x10] sm:$0xff]
  %v4274 = vld [vmem:[%s3 + $0x18] sm:$0xff]
  %4276 = vset.pattern.permute.xlu0 0
  %4277 = vperm.xlu0 %4276, %v4271
  %v4278 = vpop.permute.xlu0 %4277
  %4281 = vset.pattern.permute.xlu0 0
  %4282 = vperm.xlu0 %4281, %v4272
  %v4283 = vpop.permute.xlu0 %4282
  %4286 = vset.pattern.permute.xlu0 0
  %4287 = vperm.xlu0 %4286, %v4273
  %v4288 = vpop.permute.xlu0 %4287
  %4291 = vset.pattern.permute.xlu0 0
  %4292 = vperm.xlu0 %4291, %v4274
  %v4293 = vpop.permute.xlu0 %4292
  %v4295 = vadd.f32 %v4200, %v4278
  %v4296 = vadd.f32 %v4203, %v4283
  %v4297 = vadd.f32 %v4206, %v4288
  %v4298 = vadd.f32 %v4209, %v4293
  %v4299 = vadd.f32 %v4212, %v4278
  %v4300 = vadd.f32 %v4215, %v4283
  %v4301 = vadd.f32 %v4218, %v4288
  %v4302 = vadd.f32 %v4221, %v4293
  %v4303 = vadd.f32 %v4224, %v4278
  %v4304 = vadd.f32 %v4227, %v4283
  %v4305 = vadd.f32 %v4230, %v4288
  %v4306 = vadd.f32 %v4233, %v4293
  %v4307 = vadd.f32 %v4236, %v4278
  %v4308 = vadd.f32 %v4239, %v4283
  %v4309 = vadd.f32 %v4242, %v4288
  %v4310 = vadd.f32 %v4245, %v4293
  %v4311 = vadd.f32 %v4248, %v4278
  %v4312 = vadd.f32 %v4251, %v4283
  %v4313 = vadd.f32 %v4254, %v4288
  %v4314 = vadd.f32 %v4257, %v4293
  %v4315 = vadd.f32 %v4260, %v4278
  %v4316 = vadd.f32 %v4263, %v4283
  %v4317 = vadd.f32 %v4266, %v4288
  %v4318 = vadd.f32 %v4269, %v4293
  %v4319 = vmax.f32 %v4295, 0.0
  %v4320 = vmax.f32 %v4296, 0.0
  %v4321 = vmax.f32 %v4297, 0.0
  %v4322 = vmax.f32 %v4298, 0.0
  %v4323 = vmax.f32 %v4299, 0.0
  %v4324 = vmax.f32 %v4300, 0.0
  %v4325 = vmax.f32 %v4301, 0.0
  %v4326 = vmax.f32 %v4302, 0.0
  %v4327 = vmax.f32 %v4303, 0.0
  %v4328 = vmax.f32 %v4304, 0.0
  %v4329 = vmax.f32 %v4305, 0.0
  %v4330 = vmax.f32 %v4306, 0.0
  %v4331 = vmax.f32 %v4307, 0.0
  %v4332 = vmax.f32 %v4308, 0.0
  %v4333 = vmax.f32 %v4309, 0.0
  %v4334 = vmax.f32 %v4310, 0.0
  %v4335 = vmax.f32 %v4311, 0.0
  %v4336 = vmax.f32 %v4312, 0.0
  %v4337 = vmax.f32 %v4313, 0.0
  %v4338 = vmax.f32 %v4314, 0.0
  %v4339 = vmax.f32 %v4315, 0.0
  %v4340 = vmax.f32 %v4316, 0.0
  %v4341 = vmax.f32 %v4317, 0.0
  %v4342 = vmax.f32 %v4318, 0.0
  %v4343 = vmax.f32 %v4319, %v4323
  %v4344 = vmax.f32 %v4320, %v4324
  %v4345 = vmax.f32 %v4321, %v4325
  %v4346 = vmax.f32 %v4322, %v4326
  %v4347 = vmax.f32 %v4327, %v4331
  %v4348 = vmax.f32 %v4328, %v4332
  %v4349 = vmax.f32 %v4329, %v4333
  %v4350 = vmax.f32 %v4330, %v4334
  %v4351 = vmax.f32 %v4335, %v4339
  %v4352 = vmax.f32 %v4336, %v4340
  %v4353 = vmax.f32 %v4337, %v4341
  %v4354 = vmax.f32 %v4338, %v4342
  %4355 = vst [vmem:[#allocation3 + $0x120] sm:$0xff] %v4343
  %4356 = vst [vmem:[#allocation3 + $0x128] sm:$0xff] %v4344
  %4357 = vst [vmem:[#allocation3 + $0x130] sm:$0xff] %v4345
  %4358 = vst [vmem:[#allocation3 + $0x138] sm:$0xff] %v4346
  %4359 = vst [vmem:[#allocation3 + $0x140] sm:$0xff] %v4347
  %4360 = vst [vmem:[#allocation3 + $0x148] sm:$0xff] %v4348
  %4361 = vst [vmem:[#allocation3 + $0x150] sm:$0xff] %v4349
  %4362 = vst [vmem:[#allocation3 + $0x158] sm:$0xff] %v4350
  %4363 = vst [vmem:[#allocation3 + $0x160] sm:$0xff] %v4351
  %4364 = vst [vmem:[#allocation3 + $0x168] sm:$0xff] %v4352
  %4365 = vst [vmem:[#allocation3 + $0x170] sm:$0xff] %v4353
  %4366 = vst [vmem:[#allocation3 + $0x178] sm:$0xff] %v4354
  %v4367 = vld [vmem:[%s4] sm:$0xff]
  %v4368 = vld [vmem:[%s4 + $0x8] sm:$0xff]
  %v4369 = vld [vmem:[%s4 + $0x10] sm:$0xff]
  %v4370 = vld [vmem:[#allocation3] sm:$0xff]
  %v4371 = vld [vmem:[#allocation3 + $0x8] sm:$0xff]
  %v4372 = vld [vmem:[#allocation3 + $0x10] sm:$0xff]
  %v4373 = vld [vmem:[#allocation3 + $0x18] sm:$0xff]
  %v4374 = vld [vmem:[#allocation3 + $0x20] sm:$0xff]
  %v4375 = vld [vmem:[#allocation3 + $0x28] sm:$0xff]
  %v4376 = vld [vmem:[#allocation3 + $0x30] sm:$0xff]
  %v4377 = vld [vmem:[#allocation3 + $0x38] sm:$0xff]
  %v4378 = vld [vmem:[#allocation3 + $0x40] sm:$0xff]
  %v4379 = vld [vmem:[#allocation3 + $0x48] sm:$0xff]
  %v4380 = vld [vmem:[#allocation3 + $0x50] sm:$0xff]
  %v4381 = vld [vmem:[#allocation3 + $0x58] sm:$0xff]
  %v4382 = vld [vmem:[#allocation3 + $0x60] sm:$0xff]
  %v4383 = vld [vmem:[#allocation3 + $0x68] sm:$0xff]
  %v4384 = vld [vmem:[#allocation3 + $0x70] sm:$0xff]
  %v4385 = vld [vmem:[#allocation3 + $0x78] sm:$0xff]
  %v4386 = vld [vmem:[#allocation3 + $0x80] sm:$0xff]
  %v4387 = vld [vmem:[#allocation3 + $0x88] sm:$0xff]
  %v4388 = vld [vmem:[#allocation3 + $0x90] sm:$0xff]
  %v4389 = vld [vmem:[#allocation3 + $0x98] sm:$0xff]
  %v4390 = vld [vmem:[#allocation3 + $0xa0] sm:$0xff]
  %v4391 = vld [vmem:[#allocation3 + $0xa8] sm:$0xff]
  %v4392 = vld [vmem:[#allocation3 + $0xb0] sm:$0xff]
  %v4393 = vld [vmem:[#allocation3 + $0xb8] sm:$0xff]
  %v4394 = vld [vmem:[#allocation3 + $0xc0] sm:$0xff]
  %v4395 = vld [vmem:[#allocation3 + $0xc8] sm:$0xff]
  %v4396 = vld [vmem:[#allocation3 + $0xd0] sm:$0xff]
  %v4397 = vld [vmem:[#allocation3 + $0xd8] sm:$0xff]
  %v4398 = vld [vmem:[#allocation3 + $0xe0] sm:$0xff]
  %v4399 = vld [vmem:[#allocation3 + $0xe8] sm:$0xff]
  %v4400 = vld [vmem:[#allocation3 + $0xf0] sm:$0xff]
  %v4401 = vld [vmem:[#allocation3 + $0xf8] sm:$0xff]
  %v4402 = vld [vmem:[#allocation3 + $0x100] sm:$0xff]
  %v4403 = vld [vmem:[#allocation3 + $0x108] sm:$0xff]
  %v4404 = vld [vmem:[#allocation3 + $0x110] sm:$0xff]
  %v4405 = vld [vmem:[#allocation3 + $0x118] sm:$0xff]
  %v4406 = vld [vmem:[#allocation3 + $0x120] sm:$0xff]
  %v4407 = vld [vmem:[#allocation3 + $0x128] sm:$0xff]
  %v4408 = vld [vmem:[#allocation3 + $0x130] sm:$0xff]
  %v4409 = vld [vmem:[#allocation3 + $0x138] sm:$0xff]
  %v4410 = vld [vmem:[#allocation3 + $0x140] sm:$0xff]
  %v4411 = vld [vmem:[#allocation3 + $0x148] sm:$0xff]
  %v4412 = vld [vmem:[#allocation3 + $0x150] sm:$0xff]
  %v4413 = vld [vmem:[#allocation3 + $0x158] sm:$0xff]
  %v4414 = vld [vmem:[#allocation3 + $0x160] sm:$0xff]
  %v4415 = vld [vmem:[#allocation3 + $0x168] sm:$0xff]
  %v4416 = vld [vmem:[#allocation3 + $0x170] sm:$0xff]
  %v4417 = vld [vmem:[#allocation3 + $0x178] sm:$0xff]
  %v4418 = vld [vmem:[#allocation4] sm:$0x1]
  %v4420 = vperm.slane %v4418, 0
  %4421 = vset.pattern.permute.xlu0 0
  %4422 = vperm.xlu0 %4421, %v4420
  %v4423 = vpop.permute.xlu0 %4422
  %4425 = vmatpush.msra.mxu0 %v4385
  %4426 = vmatpush.msra.mxu0 %v4384
  %4427 = vmatpush.msra.mxu0 %v4383
  %4428 = vmatpush.msra.mxu0 %v4382
  %4429 = vmatpush.msra.mxu0 %v4381
  %4430 = vmatpush.msra.mxu0 %v4380
  %4431 = vmatpush.msra.mxu0 %v4379
  %4432 = vmatpush.msra.mxu0 %v4378
  %4433 = vmatpush.msra.mxu0 %v4377
  %4434 = vmatpush.msra.mxu0 %v4376
  %4435 = vmatpush.msra.mxu0 %v4375
  %4436 = vmatpush.msra.mxu0 %v4374
  %4437 = vmatpush.msra.mxu0 %v4373
  %4438 = vmatpush.msra.mxu0 %v4372
  %4439 = vmatpush.msra.mxu0 %v4371
  %4440 = vmatpush.msra.mxu0 %v4370
  %4441 = vmatmul.f32.gmra.mxu0 %v4367
  %v4442 = vpop.f32.mrf.mxu0
  %v4443 = vadd.f32 %v4423, %v4442
  %4444 = vdwg.mxu0
  %4445 = vmatpush.msra.mxu0 %v4401
  %4446 = vmatpush.msra.mxu0 %v4400
  %4447 = vmatpush.msra.mxu0 %v4399
  %4448 = vmatpush.msra.mxu0 %v4398
  %4449 = vmatpush.msra.mxu0 %v4397
  %4450 = vmatpush.msra.mxu0 %v4396
  %4451 = vmatpush.msra.mxu0 %v4395
  %4452 = vmatpush.msra.mxu0 %v4394
  %4453 = vmatpush.msra.mxu0 %v4393
  %4454 = vmatpush.msra.mxu0 %v4392
  %4455 = vmatpush.msra.mxu0 %v4391
  %4456 = vmatpush.msra.mxu0 %v4390
  %4457 = vmatpush.msra.mxu0 %v4389
  %4458 = vmatpush.msra.mxu0 %v4388
  %4459 = vmatpush.msra.mxu0 %v4387
  %4460 = vmatpush.msra.mxu0 %v4386
  %4461 = vmatmul.f32.gmra.mxu0 %v4368
  %v4462 = vpop.f32.mrf.mxu0
  %v4463 = vadd.f32 %v4443, %v4462
  %4464 = vdwg.mxu0
  %4465 = vmatpush.msra.mxu0 %v4417
  %4466 = vmatpush.msra.mxu0 %v4416
  %4467 = vmatpush.msra.mxu0 %v4415
  %4468 = vmatpush.msra.mxu0 %v4414
  %4469 = vmatpush.msra.mxu0 %v4413
  %4470 = vmatpush.msra.mxu0 %v4412
  %4471 = vmatpush.msra.mxu0 %v4411
  %4472 = vmatpush.msra.mxu0 %v4410
  %4473 = vmatpush.msra.mxu0 %v4409
  %4474 = vmatpush.msra.mxu0 %v4408
  %4475 = vmatpush.msra.mxu0 %v4407
  %4476 = vmatpush.msra.mxu0 %v4406
  %4477 = vmatpush.msra.mxu0 %v4405
  %4478 = vmatpush.msra.mxu0 %v4404
  %4479 = vmatpush.msra.mxu0 %v4403
  %4480 = vmatpush.msra.mxu0 %v4402
  %4481 = vmatmul.f32.gmra.mxu0 %v4369
  %v4482 = vpop.f32.mrf.mxu0
  %v4483 = vadd.f32 %v4463, %v4482
  %4484 = vdwg.mxu0
  %v4485 = vsub.f32 0.0, %v4483
  %v4486 = vmul.f32 %v4485, 1.442695
  %v4487 = vpow.pop %v4486
  %v4488 = vadd.f32 %v4487, 1.0
  %v4489 = vrcp.pop %v4488
  %v4490 = vmul.f32 %v4488, %v4489
  %v4491 = vsub.f32 1.0, %v4490
  %v4492 = vmul.f32 %v4489, %v4491
  %v4493 = vadd.f32 %v4489, %v4492
  %vm4494 = vweird.f32 %v4488
  %vm4495 = vweird.f32 %v4489
  %vm4496 = vmor %vm4494, %vm4495
  %v4497 = vsel %vm4496, %v4489, %v4493
  %v4498 = vand.u32 2147483647, %v4488
  %vm4499 = vcmp.eq.f32.partialorder %v4498, 8.507059e+37
  %v4500 = vand.u32 %v4488, 2147483648
  %v4501 = vor.u32 1.1754944e-38, %v4500
  %v4502 = vsel %vm4499, %v4501, %v4497
  %v4503 = vmul.f32 1.0, %v4502
  %4504 = vst [vmem:[%s6] sm:$0xff] %v4503
  // Predicated region
  $region26: #{net_forward.1} parent=0 // pred_check
    _
  $region27: #{net_forward.1} parent=0 // pred_check_branch
    %4506 = sbr.rel (0) target = $region29
  $region28: #{net_forward.1} parent=0 // pred_region
    _
  $region29: #{net_forward.1} parent=0 // pred_fallthru
    _
  // Predicated region
  $region30: #{net_forward.1} parent=0 // pred_check
    _
  $region31: #{net_forward.1} parent=0 // pred_check_branch
    %4508 = sbr.rel (0) target = $region33
  $region32: #{net_forward.1} parent=0 // pred_region
    _
  $region33: #{net_forward.1} parent=0 // pred_fallthru
    _

</llo_original>
